<compile_context>
chip_gen: v6e
topology: v6e:2x2x1
jax: 0.10.0
libtpu: 0.0.40
codegen_flags: <defaults>
</compile_context>

<pallas_src>
import functools

import jax
import jax.numpy as jnp
from jax.experimental import pallas as pl
from jax.experimental.pallas import tpu as pltpu


_LN_EPS = 1e-5
_MASK_VAL = -1e30          # finite large-negative (avoids -inf - -inf = NaN)


# -------------------- generation-aware limits / tiles ------------------------

def _tpu_vmem_capacity_bytes():
    try:
        return int(pltpu.get_tpu_info().vmem_capacity_bytes)
    except Exception:                       # unknown chip / interpret mode
        return 64 * 1024 * 1024             # v7x-sized conservative default


_VMEM_CAP = _tpu_vmem_capacity_bytes()
_VMEM_LIMIT = min(int(_VMEM_CAP * 0.75), 100 * 1024 * 1024)   # 96M v5e/v6e, 48M v7x
_TN_PREF = 2048 if _VMEM_CAP >= 100 * 1024 * 1024 else 1024   # lm_head lane tile


def _row_tile(m, pref=256):
    """Row tile: multiple of 8 sublanes, <= pref, divides m; prefers >= 2 grid
    steps so work can shard across 2 TensorCores on v7x."""
    if m % 8 != 0:
        return m
    half = m // 2
    cap = min(pref, half if (half >= 8 and half % 8 == 0) else m)
    t = cap - cap % 8
    while t >= 8 and m % t != 0:
        t -= 8
    return t if t >= 8 else m


def _col_tile(n, pref):
    """Lane-dense tile: multiple of 128, <= pref, divides n (else full n)."""
    if n % 128 != 0:
        return n
    t = min(pref, n)
    t -= t % 128
    while t >= 128 and n % t != 0:
        t -= 128
    return t if t >= 128 else n


def _const_spec(shape, index_map):
    """BlockSpec for an input whose block never changes across the grid:
    request single-buffering (halves weight VMEM).  Falls back to the default
    spec if pipeline_mode is not supported by the installed JAX."""
    try:
        return pl.BlockSpec(shape, index_map, pipeline_mode=pl.Buffered(1))
    except Exception:
        return pl.BlockSpec(shape, index_map)


def _layer_norm_f32(x, g, b):
    mean = jnp.mean(x, axis=-1, keepdims=True)
    var = jnp.mean((x - mean) ** 2, axis=-1, keepdims=True)
    return (x - mean) * jax.lax.rsqrt(var + _LN_EPS) * g + b


# ----------------------------- fused kernels --------------------------------

def _attn_block_kernel(hq_ref, hkv_ref, g1_ref, b1_ref,
                       wq_ref, bq_ref, wkv_ref, bkv_ref, wo_ref, bo_ref,
                       o_ref,
                       q_scr, m_scr, l_scr, acc_scr,
                       *, n_heads):
    """Pre-LN -> Q/K/V proj -> flash (online-softmax) causal SDPA ->
    out-proj -> +residual.   Grid: (batch, q_tile, kv_tile)."""
    qi = pl.program_id(1)
    ki = pl.program_id(2)
    n_kv = pl.num_programs(2)

    tq = hq_ref.shape[1]
    tk = hkv_ref.shape[1]
    D = wq_ref.shape[0]
    hd = D // n_heads
    scale = 1.0 / (hd ** 0.5)

    q_start = qi * tq
    k_start = ki * tk

    # ---- init at the first KV tile: running stats + hoisted Q projection ----
    @pl.when(ki == 0)
    def _init():
        m_scr[...] = jnp.full_like(m_scr, _MASK_VAL)
        l_scr[...] = jnp.zeros_like(l_scr)
        acc_scr[...] = jnp.zeros_like(acc_scr)
        xq = _layer_norm_f32(hq_ref[0].astype(jnp.float32),
                             g1_ref[...], b1_ref[...])
        q = jnp.dot(xq.astype(jnp.bfloat16), wq_ref[...],
                    preferred_element_type=jnp.float32) + bq_ref[...]
        q_scr[...] = (q * scale).astype(jnp.bfloat16)   # fold 1/sqrt(hd) into q

    # ---- causal block skipping: kv tile entirely above the diagonal ----
    @pl.when(k_start <= q_start + (tq - 1))
    def _compute():
        # K/V projection for this kv tile (bf16 MXU operands, f32 accumulate).
        xkv = _layer_norm_f32(hkv_ref[0].astype(jnp.float32),
                              g1_ref[...], b1_ref[...])
        kv = jnp.dot(xkv.astype(jnp.bfloat16), wkv_ref[...],
                     preferred_element_type=jnp.float32) + bkv_ref[...]
        k = kv[:, :D].astype(jnp.bfloat16)
        v = kv[:, D:].astype(jnp.bfloat16)

        rows = q_start + jax.lax.broadcasted_iota(jnp.int32, (tq, tk), 0)
        cols = k_start + jax.lax.broadcasted_iota(jnp.int32, (tq, tk), 1)
        causal = cols <= rows

        # Per-head online softmax; state (m, l, acc) lives in VMEM scratch
        # slices, so temporaries never accumulate across heads.
        for h in range(n_heads):
            sl = slice(h * hd, (h + 1) * hd)
            s = jax.lax.dot_general(q_scr[:, sl], k[:, sl],
                                    (((1,), (1,)), ((), ())),
                                    preferred_element_type=jnp.float32)
            s = jnp.where(causal, s, _MASK_VAL)
            m_prev = m_scr[h]
            m_new = jnp.maximum(m_prev, jnp.max(s, axis=-1, keepdims=True))
            alpha = jnp.exp(m_prev - m_new)
            p = jnp.exp(s - m_new)
            l_scr[h] = alpha * l_scr[h] + jnp.sum(p, axis=-1, keepdims=True)
            acc_scr[:, sl] = alpha * acc_scr[:, sl] + jnp.dot(
                p.astype(jnp.bfloat16), v[:, sl],
                preferred_element_type=jnp.float32)
            m_scr[h] = m_new

    # ---- finalize at the last KV tile: normalize, out-proj, +residual ----
    @pl.when(ki == n_kv - 1)
    def _finalize():
        for h in range(n_heads):
            sl = slice(h * hd, (h + 1) * hd)
            acc_scr[:, sl] = acc_scr[:, sl] * pl.reciprocal(l_scr[h],
                                                            approx=True)
        attn = acc_scr[...].astype(jnp.bfloat16)
        proj = jnp.dot(attn, wo_ref[...],
                       preferred_element_type=jnp.float32) + bo_ref[...]
        o_ref[0] = (hq_ref[0].astype(jnp.float32) + proj).astype(o_ref.dtype)


def _mlp_block_kernel(x_ref, g_ref, b_ref, w1_ref, b1_ref, w2_ref, b2_ref,
                      o_ref, xn_scr, acc_scr):
    """Pre-LN -> FC1+ReLU -> FC2 -> +residual, streaming the FFN dimension.
    Grid: (row_tile, ffn_tile); ffn axis is the reduction ("arbitrary")."""
    k = pl.program_id(1)
    n_k = pl.num_programs(1)

    @pl.when(k == 0)
    def _init():
        x = x_ref[...].astype(jnp.float32)
        xn_scr[...] = _layer_norm_f32(x, g_ref[...], b_ref[...]
                                      ).astype(jnp.bfloat16)
        acc_scr[...] = jnp.zeros_like(acc_scr)

    f = jnp.dot(xn_scr[...], w1_ref[...],
                preferred_element_type=jnp.float32) + b1_ref[...]
    f = jnp.maximum(f, 0.0)
    acc_scr[...] += jnp.dot(f.astype(jnp.bfloat16), w2_ref[...],
                            preferred_element_type=jnp.float32)

    @pl.when(k == n_k - 1)
    def _finalize():
        out = x_ref[...].astype(jnp.float32) + acc_scr[...] + b2_ref[...]
        o_ref[...] = out.astype(o_ref.dtype)


def _lnf_lm_head_kernel(x_ref, g_ref, b_ref, w_ref, o_ref, xn_scr):
    """final_layer_norm fused with the (no-bias) lm_head matmul.  LN is
    computed once per row tile (vocab axis is the inner "arbitrary" axis)."""
    @pl.when(pl.program_id(1) == 0)
    def _():
        x = x_ref[...].astype(jnp.float32)
        xn_scr[...] = _layer_norm_f32(x, g_ref[...], b_ref[...]
                                      ).astype(jnp.bfloat16)

    o_ref[...] = jnp.dot(xn_scr[...], w_ref[...],
                         preferred_element_type=jnp.float32)


# ----------------------------- thin wrappers ---------------------------------

def attn_block(h, lp, n_heads):
    B, T, D = h.shape
    tq = _row_tile(T)
    tk = _row_tile(T)
    n_q, n_kv = T // tq, T // tk
    kern = functools.partial(_attn_block_kernel, n_heads=n_heads)

    def _w(shape):
        zeros = (0,) * len(shape)
        return _const_spec(shape, lambda b, qi, ki, _z=zeros: _z)

    return pl.pallas_call(
        kern,
        grid=(B, n_q, n_kv),
        in_specs=[
            pl.BlockSpec((1, tq, D), lambda b, qi, ki: (b, qi, 0)),   # residual/Q rows
            pl.BlockSpec((1, tk, D), lambda b, qi, ki: (b, ki, 0)),   # K/V rows
            _w((1, D)), _w((1, D)),                                   # ln1 gamma/beta
            _w((D, D)), _w((1, D)),                                   # Wq / bq
            _w((D, 2 * D)), _w((1, 2 * D)),                           # Wkv / bkv
            _w((D, D)), _w((1, D)),                                   # Wo / bo
        ],
        out_specs=pl.BlockSpec((1, tq, D), lambda b, qi, ki: (b, qi, 0)),
        out_shape=jax.ShapeDtypeStruct((B, T, D), jnp.bfloat16),
        scratch_shapes=[
            pltpu.VMEM((tq, D), jnp.bfloat16),              # hoisted Q
            pltpu.VMEM((n_heads, tq, 1), jnp.float32),      # running max
            pltpu.VMEM((n_heads, tq, 1), jnp.float32),      # running denom
            pltpu.VMEM((tq, D), jnp.float32),               # per-head acc (lane slices)
        ],
        compiler_params=pltpu.CompilerParams(
            dimension_semantics=("parallel", "parallel", "arbitrary"),
            vmem_limit_bytes=_VMEM_LIMIT),
    )(h, h, lp["ln1_g"], lp["ln1_b"], lp["wq"], lp["bq"],
      lp["wkv"], lp["bkv"], lp["wo"], lp["bo"])


def mlp_block(x, lp):
    M, D = x.shape
    F = lp["w1"].shape[1]
    tm = _row_tile(M)
    tf = _col_tile(F, 512)
    return pl.pallas_call(
        _mlp_block_kernel,
        grid=(M // tm, F // tf),
        in_specs=[
            pl.BlockSpec((tm, D), lambda i, k: (i, 0)),               # residual rows
            _const_spec((1, D), lambda i, k: (0, 0)),                 # ln2 gamma
            _const_spec((1, D), lambda i, k: (0, 0)),                 # ln2 beta
            pl.BlockSpec((D, tf), lambda i, k: (0, k)),               # W1 slab (streamed)
            pl.BlockSpec((1, tf), lambda i, k: (0, k)),               # b1 slab
            pl.BlockSpec((tf, D), lambda i, k: (k, 0)),               # W2 slab (streamed)
            _const_spec((1, D), lambda i, k: (0, 0)),                 # b2
        ],
        out_specs=pl.BlockSpec((tm, D), lambda i, k: (i, 0)),
        out_shape=jax.ShapeDtypeStruct((M, D), jnp.bfloat16),
        scratch_shapes=[
            pltpu.VMEM((tm, D), jnp.bfloat16),    # LN(x), computed once per row tile
            pltpu.VMEM((tm, D), jnp.float32),     # FC2 accumulator
        ],
        compiler_params=pltpu.CompilerParams(
            dimension_semantics=("parallel", "arbitrary"),
            vmem_limit_bytes=_VMEM_LIMIT),
    )(x, lp["ln2_g"], lp["ln2_b"], lp["w1"], lp["b1"], lp["w2"], lp["b2"])


def lnf_lm_head(x, g, b, w):
    M, D = x.shape
    V = w.shape[1]
    tm = _row_tile(M)
    tn = _col_tile(V, _TN_PREF)
    return pl.pallas_call(
        _lnf_lm_head_kernel,
        grid=(M // tm, V // tn),
        in_specs=[
            pl.BlockSpec((tm, D), lambda i, j: (i, 0)),
            _const_spec((1, D), lambda i, j: (0, 0)),
            _const_spec((1, D), lambda i, j: (0, 0)),
            pl.BlockSpec((D, tn), lambda i, j: (0, j)),               # vocab slab
        ],
        out_specs=pl.BlockSpec((tm, tn), lambda i, j: (i, j)),
        out_shape=jax.ShapeDtypeStruct((M, V), jnp.float32),
        scratch_shapes=[pltpu.VMEM((tm, D), jnp.bfloat16)],           # LN(x), hoisted
        compiler_params=pltpu.CompilerParams(
            dimension_semantics=("parallel", "arbitrary"),
            vmem_limit_bytes=_VMEM_LIMIT),
    )(x, g, b, w)


# ----------------------------- model forward ---------------------------------

def opt_forward(input_ids, params, *, n_heads):
    B, T = input_ids.shape
    D = params["tok_emb"].shape[1]

    # Token / learned-positional embedding gather kept as XLA glue (data-
    # dependent gather).  attention_mask defaults to all ones -> position_ids
    # = [0..T-1]; OPT positional embedding adds an offset of 2.
    h = params["tok_emb"][input_ids]                           # (B, T, D) f32
    pos_ids = jnp.arange(T, dtype=jnp.int32) + 2
    h = (h + params["pos_emb"][pos_ids][None, :, :]).astype(jnp.bfloat16)

    for lp in params["layers"]:
        h = attn_block(h, lp, n_heads)                 # LN1+QKV+flash SDPA+OutProj+res
        h = mlp_block(h.reshape(B * T, D), lp).reshape(B, T, D)   # LN2+FFN+res

    logits = lnf_lm_head(h.reshape(B * T, D),
                         params["lnf_g"], params["lnf_b"], params["lm_head"])
    return logits.reshape(B, T, -1)


# ----------------------------- parameter init --------------------------------

def init_params(key, vocab, max_pos, D, ffn, n_layers):
    scale = 0.02
    keys = jax.random.split(key, 3 + n_layers)
    f32, bf16 = jnp.float32, jnp.bfloat16

    tok = jax.random.normal(keys[0], (vocab, D), f32) * scale
    tok = tok.at[1].set(0.0)                            # padding_idx = 1
    pos = jax.random.normal(keys[1], (max_pos + 2, D), f32) * scale
    lm = (jax.random.normal(keys[2], (D, vocab), f32) * scale).astype(bf16)

    layers = []
    for i in range(n_layers):
        lk = jax.random.split(keys[3 + i], 10)

        def w(k, din, dout):
            # stored (in, out) so kernels compute x @ W; bf16 for the MXU
            return (jax.random.normal(k, (din, dout), f32) * scale).astype(bf16)

        def b(k, dout):
            # biases kept f32 (added post-accumulation), shaped (1, dout)
            return (jax.random.normal(k, (dout,), f32) * scale).reshape(1, dout)

        layers.append(dict(
            ln1_g=jnp.ones((1, D), f32), ln1_b=jnp.zeros((1, D), f32),
            wq=w(lk[0], D, D), bq=b(lk[1], D),
            wkv=w(lk[2], D, 2 * D), bkv=b(lk[3], 2 * D),   # [Wk | Wv]
            wo=w(lk[4], D, D), bo=b(lk[5], D),
            ln2_g=jnp.ones((1, D), f32), ln2_b=jnp.zeros((1, D), f32),
            w1=w(lk[6], D, ffn), b1=b(lk[7], ffn),
            w2=w(lk[8], ffn, D), b2=b(lk[9], D),
        ))

    return dict(tok_emb=tok, pos_emb=pos, lm_head=lm,
                lnf_g=jnp.ones((1, D), f32),
                lnf_b=jnp.zeros((1, D), f32),
                layers=layers)


# --------------------------------- main ---------------------------------------

if __name__ == "__main__":
    B, T = 2, 8
    VOCAB, MAX_POS, D, FFN, N_LAYERS, N_HEADS = 128, 16, 32, 64, 2, 4

    key = jax.random.PRNGKey(0)
    pkey, ikey = jax.random.split(key)
    params = init_params(pkey, VOCAB, MAX_POS, D, FFN, N_LAYERS)
    input_ids = jax.random.randint(ikey, (B, T), 0, VOCAB, dtype=jnp.int32)

    fwd = jax.jit(functools.partial(opt_forward, n_heads=N_HEADS))
    logits = fwd(input_ids, params)
    jax.block_until_ready(logits)

    assert logits.shape == (B, T, VOCAB), logits.shape
    assert logits.dtype == jnp.float32
    assert bool(jnp.all(jnp.isfinite(logits)))
    print("KERNEL_OK")
</pallas_src>

<mosaic_0001>
module attributes {stable_mosaic.version = 11 : i64} {
  func.func @_lnf_lm_head_kernel(%arg0: i32, %arg1: i32, %arg2: memref<8x32xbf16, #tpu.memory_space<vmem>>, %arg3: memref<1x32xf32, #tpu.memory_space<vmem>>, %arg4: memref<1x32xf32, #tpu.memory_space<vmem>>, %arg5: memref<32x128xbf16, #tpu.memory_space<vmem>>, %arg6: memref<8x128xf32, #tpu.memory_space<vmem>>, %arg7: memref<8x32xbf16, #tpu.memory_space<vmem>>) attributes {dimension_semantics = [#tpu.dimension_semantics<parallel>, #tpu.dimension_semantics<arbitrary>], iteration_bounds = array<i64: 2, 1>, scalar_prefetch = 0 : i64, scratch_operands = 1 : i64, tpu.core_type = #tpu.core_type<tc>, window_params = [{transform_indices = @transform_0, window_bounds = array<i64: 8, 32>}, {pipeline_mode = #tpu.pipeline_mode<synchronous>, transform_indices = @transform_1, window_bounds = array<i64: 1, 32>}, {pipeline_mode = #tpu.pipeline_mode<synchronous>, transform_indices = @transform_2, window_bounds = array<i64: 1, 32>}, {transform_indices = @transform_3, window_bounds = array<i64: 32, 128>}, {transform_indices = @transform_4, window_bounds = array<i64: 8, 128>}]} {
    %c0_i32 = arith.constant 0 : i32
    %0 = arith.cmpi eq, %arg1, %c0_i32 : i32
    %1 = arith.extui %0 : i1 to i32
    %c0_i32_0 = arith.constant 0 : i32
    %2 = arith.cmpi ne, %1, %c0_i32_0 : i32
    scf.if %2 {
      %c0_6 = arith.constant 0 : index
      %c0_7 = arith.constant 0 : index
      %7 = vector.load %arg2[%c0_6, %c0_7] : memref<8x32xbf16, #tpu.memory_space<vmem>>, vector<8x32xbf16>
      %8 = arith.extf %7 : vector<8x32xbf16> to vector<8x32xf32>
      %c0_8 = arith.constant 0 : index
      %c0_9 = arith.constant 0 : index
      %9 = vector.load %arg3[%c0_8, %c0_9] : memref<1x32xf32, #tpu.memory_space<vmem>>, vector<1x32xf32>
      %c0_10 = arith.constant 0 : index
      %c0_11 = arith.constant 0 : index
      %10 = vector.load %arg4[%c0_10, %c0_11] : memref<1x32xf32, #tpu.memory_space<vmem>>, vector<1x32xf32>
      %cst_12 = arith.constant dense<0.000000e+00> : vector<8xf32>
      %11 = vector.multi_reduction <add>, %8, %cst_12 [1] : vector<8x32xf32> to vector<8xf32>
      %12 = vector.shape_cast %11 : vector<8xf32> to vector<8x1xf32>
      %cst_13 = arith.constant 3.200000e+01 : f32
      %13 = vector.broadcast %cst_13 : f32 to vector<8x1xf32>
      %14 = arith.divf %12, %13 : vector<8x1xf32>
      %15 = vector.broadcast %14 : vector<8x1xf32> to vector<8x32xf32>
      %16 = arith.subf %8, %15 : vector<8x32xf32>
      %17 = arith.mulf %16, %16 : vector<8x32xf32>
      %cst_14 = arith.constant dense<0.000000e+00> : vector<8xf32>
      %18 = vector.multi_reduction <add>, %17, %cst_14 [1] : vector<8x32xf32> to vector<8xf32>
      %19 = vector.shape_cast %18 : vector<8xf32> to vector<8x1xf32>
      %cst_15 = arith.constant 3.200000e+01 : f32
      %20 = vector.broadcast %cst_15 : f32 to vector<8x1xf32>
      %21 = arith.divf %19, %20 : vector<8x1xf32>
      %22 = vector.broadcast %14 : vector<8x1xf32> to vector<8x32xf32>
      %23 = arith.subf %8, %22 : vector<8x32xf32>
      %cst_16 = arith.constant 9.99999974E-6 : f32
      %24 = vector.broadcast %cst_16 : f32 to vector<8x1xf32>
      %25 = arith.addf %21, %24 : vector<8x1xf32>
      %26 = math.rsqrt %25 : vector<8x1xf32>
      %27 = vector.broadcast %26 : vector<8x1xf32> to vector<8x32xf32>
      %28 = arith.mulf %23, %27 : vector<8x32xf32>
      %29 = vector.broadcast %9 : vector<1x32xf32> to vector<8x32xf32>
      %30 = arith.mulf %28, %29 : vector<8x32xf32>
      %31 = vector.broadcast %10 : vector<1x32xf32> to vector<8x32xf32>
      %32 = arith.addf %30, %31 : vector<8x32xf32>
      %33 = arith.truncf %32 : vector<8x32xf32> to vector<8x32xbf16>
      %c0_17 = arith.constant 0 : index
      %c0_18 = arith.constant 0 : index
      %34 = vector.load %arg7[%c0_17, %c0_18] : memref<8x32xbf16, #tpu.memory_space<vmem>>, vector<8x32xbf16>
      tpu.vector_store %arg7[%c0_17, %c0_18], %33 {strides = array<i32>} : memref<8x32xbf16, #tpu.memory_space<vmem>>, vector<8x32xbf16>,
    } else {
    }
    %c0 = arith.constant 0 : index
    %c0_1 = arith.constant 0 : index
    %3 = vector.load %arg7[%c0, %c0_1] : memref<8x32xbf16, #tpu.memory_space<vmem>>, vector<8x32xbf16>
    %c0_2 = arith.constant 0 : index
    %c0_3 = arith.constant 0 : index
    %4 = vector.load %arg5[%c0_2, %c0_3] : memref<32x128xbf16, #tpu.memory_space<vmem>>, vector<32x128xbf16>
    %cst = arith.constant dense<0.000000e+00> : vector<8x128xf32>
    %5 = tpu.matmul %3, %4, %cst {dimension_numbers = #tpu.dot_dimension_numbers<[1], [0], [0], [1], [0, 0, 1, 1], [], []>} : vector<8x32xbf16>, vector<32x128xbf16>, vector<8x128xf32> -> vector<8x128xf32>
    %c0_4 = arith.constant 0 : index
    %c0_5 = arith.constant 0 : index
    %6 = vector.load %arg6[%c0_4, %c0_5] : memref<8x128xf32, #tpu.memory_space<vmem>>, vector<8x128xf32>
    tpu.vector_store %arg6[%c0_4, %c0_5], %5 {strides = array<i32>} : memref<8x128xf32, #tpu.memory_space<vmem>>, vector<8x128xf32>,
    return
  }
  func.func @transform_0(%arg0: i32, %arg1: i32) -> (i32, i32) {
    %c0_i32 = arith.constant 0 : i32
    %c0_i32_0 = arith.constant 0 : i32
    return %arg0, %c0_i32 : i32, i32
  }
  func.func @transform_1(%arg0: i32, %arg1: i32) -> (i32, i32) {
    %c0_i32 = arith.constant 0 : i32
    %c0_i32_0 = arith.constant 0 : i32
    %c0_i32_1 = arith.constant 0 : i32
    return %c0_i32, %c0_i32_0 : i32, i32
  }
  func.func @transform_2(%arg0: i32, %arg1: i32) -> (i32, i32) {
    %c0_i32 = arith.constant 0 : i32
    %c0_i32_0 = arith.constant 0 : i32
    %c0_i32_1 = arith.constant 0 : i32
    return %c0_i32, %c0_i32_0 : i32, i32
  }
  func.func @transform_3(%arg0: i32, %arg1: i32) -> (i32, i32) {
    %c0_i32 = arith.constant 0 : i32
    %c0_i32_0 = arith.constant 0 : i32
    return %c0_i32, %arg1 : i32, i32
  }
  func.func @transform_4(%arg0: i32, %arg1: i32) -> (i32, i32) {
    %c0_i32 = arith.constant 0 : i32
    return %arg0, %arg1 : i32, i32
  }
}

module attributes {stable_mosaic.version = 11 : i64} {
  func.func @_mlp_block_kernel(%arg0: i32, %arg1: i32, %arg2: memref<8x32xbf16, #tpu.memory_space<vmem>>, %arg3: memref<1x32xf32, #tpu.memory_space<vmem>>, %arg4: memref<1x32xf32, #tpu.memory_space<vmem>>, %arg5: memref<32x64xbf16, #tpu.memory_space<vmem>>, %arg6: memref<1x64xf32, #tpu.memory_space<vmem>>, %arg7: memref<64x32xbf16, #tpu.memory_space<vmem>>, %arg8: memref<1x32xf32, #tpu.memory_space<vmem>>, %arg9: memref<8x32xbf16, #tpu.memory_space<vmem>>, %arg10: memref<8x32xbf16, #tpu.memory_space<vmem>>, %arg11: memref<8x32xf32, #tpu.memory_space<vmem>>) attributes {dimension_semantics = [#tpu.dimension_semantics<parallel>, #tpu.dimension_semantics<arbitrary>], iteration_bounds = array<i64: 2, 1>, scalar_prefetch = 0 : i64, scratch_operands = 2 : i64, tpu.core_type = #tpu.core_type<tc>, window_params = [{transform_indices = @transform_0, window_bounds = array<i64: 8, 32>}, {pipeline_mode = #tpu.pipeline_mode<synchronous>, transform_indices = @transform_1, window_bounds = array<i64: 1, 32>}, {pipeline_mode = #tpu.pipeline_mode<synchronous>, transform_indices = @transform_2, window_bounds = array<i64: 1, 32>}, {transform_indices = @transform_3, window_bounds = array<i64: 32, 64>}, {transform_indices = @transform_4, window_bounds = array<i64: 1, 64>}, {transform_indices = @transform_5, window_bounds = array<i64: 64, 32>}, {pipeline_mode = #tpu.pipeline_mode<synchronous>, transform_indices = @transform_6, window_bounds = array<i64: 1, 32>}, {transform_indices = @transform_7, window_bounds = array<i64: 8, 32>}]} {
    %c0_i32 = arith.constant 0 : i32
    %0 = arith.cmpi eq, %arg1, %c0_i32 : i32
    %1 = arith.extui %0 : i1 to i32
    %c0_i32_0 = arith.constant 0 : i32
    %2 = arith.cmpi ne, %1, %c0_i32_0 : i32
    scf.if %2 {
      %c0_16 = arith.constant 0 : index
      %c0_17 = arith.constant 0 : index
      %20 = vector.load %arg2[%c0_16, %c0_17] : memref<8x32xbf16, #tpu.memory_space<vmem>>, vector<8x32xbf16>
      %21 = arith.extf %20 : vector<8x32xbf16> to vector<8x32xf32>
      %c0_18 = arith.constant 0 : index
      %c0_19 = arith.constant 0 : index
      %22 = vector.load %arg3[%c0_18, %c0_19] : memref<1x32xf32, #tpu.memory_space<vmem>>, vector<1x32xf32>
      %c0_20 = arith.constant 0 : index
      %c0_21 = arith.constant 0 : index
      %23 = vector.load %arg4[%c0_20, %c0_21] : memref<1x32xf32, #tpu.memory_space<vmem>>, vector<1x32xf32>
      %cst_22 = arith.constant dense<0.000000e+00> : vector<8xf32>
      %24 = vector.multi_reduction <add>, %21, %cst_22 [1] : vector<8x32xf32> to vector<8xf32>
      %25 = vector.shape_cast %24 : vector<8xf32> to vector<8x1xf32>
      %cst_23 = arith.constant 3.200000e+01 : f32
      %26 = vector.broadcast %cst_23 : f32 to vector<8x1xf32>
      %27 = arith.divf %25, %26 : vector<8x1xf32>
      %28 = vector.broadcast %27 : vector<8x1xf32> to vector<8x32xf32>
      %29 = arith.subf %21, %28 : vector<8x32xf32>
      %30 = arith.mulf %29, %29 : vector<8x32xf32>
      %cst_24 = arith.constant dense<0.000000e+00> : vector<8xf32>
      %31 = vector.multi_reduction <add>, %30, %cst_24 [1] : vector<8x32xf32> to vector<8xf32>
      %32 = vector.shape_cast %31 : vector<8xf32> to vector<8x1xf32>
      %cst_25 = arith.constant 3.200000e+01 : f32
      %33 = vector.broadcast %cst_25 : f32 to vector<8x1xf32>
      %34 = arith.divf %32, %33 : vector<8x1xf32>
      %35 = vector.broadcast %27 : vector<8x1xf32> to vector<8x32xf32>
      %36 = arith.subf %21, %35 : vector<8x32xf32>
      %cst_26 = arith.constant 9.99999974E-6 : f32
      %37 = vector.broadcast %cst_26 : f32 to vector<8x1xf32>
      %38 = arith.addf %34, %37 : vector<8x1xf32>
      %39 = math.rsqrt %38 : vector<8x1xf32>
      %40 = vector.broadcast %39 : vector<8x1xf32> to vector<8x32xf32>
      %41 = arith.mulf %36, %40 : vector<8x32xf32>
      %42 = vector.broadcast %22 : vector<1x32xf32> to vector<8x32xf32>
      %43 = arith.mulf %41, %42 : vector<8x32xf32>
      %44 = vector.broadcast %23 : vector<1x32xf32> to vector<8x32xf32>
      %45 = arith.addf %43, %44 : vector<8x32xf32>
      %46 = arith.truncf %45 : vector<8x32xf32> to vector<8x32xbf16>
      %c0_27 = arith.constant 0 : index
      %c0_28 = arith.constant 0 : index
      %47 = vector.load %arg10[%c0_27, %c0_28] : memref<8x32xbf16, #tpu.memory_space<vmem>>, vector<8x32xbf16>
      tpu.vector_store %arg10[%c0_27, %c0_28], %46 {strides = array<i32>} : memref<8x32xbf16, #tpu.memory_space<vmem>>, vector<8x32xbf16>,
      %cst_29 = arith.constant 0.000000e+00 : f32
      %48 = vector.broadcast %cst_29 : f32 to vector<8x32xf32>
      %c0_30 = arith.constant 0 : index
      %c0_31 = arith.constant 0 : index
      %49 = vector.load %arg11[%c0_30, %c0_31] : memref<8x32xf32, #tpu.memory_space<vmem>>, vector<8x32xf32>
      tpu.vector_store %arg11[%c0_30, %c0_31], %48 {strides = array<i32>} : memref<8x32xf32, #tpu.memory_space<vmem>>, vector<8x32xf32>,
    } else {
    }
    %c0 = arith.constant 0 : index
    %c0_1 = arith.constant 0 : index
    %3 = vector.load %arg10[%c0, %c0_1] : memref<8x32xbf16, #tpu.memory_space<vmem>>, vector<8x32xbf16>
    %c0_2 = arith.constant 0 : index
    %c0_3 = arith.constant 0 : index
    %4 = vector.load %arg5[%c0_2, %c0_3] : memref<32x64xbf16, #tpu.memory_space<vmem>>, vector<32x64xbf16>
    %cst = arith.constant dense<0.000000e+00> : vector<8x64xf32>
    %5 = tpu.matmul %3, %4, %cst {dimension_numbers = #tpu.dot_dimension_numbers<[1], [0], [0], [1], [0, 0, 1, 1], [], []>} : vector<8x32xbf16>, vector<32x64xbf16>, vector<8x64xf32> -> vector<8x64xf32>
    %c0_4 = arith.constant 0 : index
    %c0_5 = arith.constant 0 : index
    %6 = vector.load %arg6[%c0_4, %c0_5] : memref<1x64xf32, #tpu.memory_space<vmem>>, vector<1x64xf32>
    %7 = vector.broadcast %6 : vector<1x64xf32> to vector<8x64xf32>
    %8 = arith.addf %5, %7 : vector<8x64xf32>
    %cst_6 = arith.constant 0.000000e+00 : f32
    %9 = vector.broadcast %cst_6 : f32 to vector<8x64xf32>
    %10 = arith.maximumf %8, %9 : vector<8x64xf32>
    %c0_7 = arith.constant 0 : index
    %c0_8 = arith.constant 0 : index
    %11 = vector.load %arg11[%c0_7, %c0_8] : memref<8x32xf32, #tpu.memory_space<vmem>>, vector<8x32xf32>
    %12 = arith.truncf %10 : vector<8x64xf32> to vector<8x64xbf16>
    %c0_9 = arith.constant 0 : index
    %c0_10 = arith.constant 0 : index
    %13 = vector.load %arg7[%c0_9, %c0_10] : memref<64x32xbf16, #tpu.memory_space<vmem>>, vector<64x32xbf16>
    %cst_11 = arith.constant dense<0.000000e+00> : vector<8x32xf32>
    %14 = tpu.matmul %12, %13, %cst_11 {dimension_numbers = #tpu.dot_dimension_numbers<[1], [0], [0], [1], [0, 0, 1, 1], [], []>} : vector<8x64xbf16>, vector<64x32xbf16>, vector<8x32xf32> -> vector<8x32xf32>
    %15 = arith.addf %11, %14 : vector<8x32xf32>
    %c0_12 = arith.constant 0 : index
    %c0_13 = arith.constant 0 : index
    %16 = vector.load %arg11[%c0_12, %c0_13] : memref<8x32xf32, #tpu.memory_space<vmem>>, vector<8x32xf32>
    tpu.vector_store %arg11[%c0_12, %c0_13], %15 {strides = array<i32>} : memref<8x32xf32, #tpu.memory_space<vmem>>, vector<8x32xf32>,
    %c0_i32_14 = arith.constant 0 : i32
    %17 = arith.cmpi eq, %arg1, %c0_i32_14 : i32
    %18 = arith.extui %17 : i1 to i32
    %c0_i32_15 = arith.constant 0 : i32
    %19 = arith.cmpi ne, %18, %c0_i32_15 : i32
    scf.if %19 {
      %c0_16 = arith.constant 0 : index
      %c0_17 = arith.constant 0 : index
      %20 = vector.load %arg2[%c0_16, %c0_17] : memref<8x32xbf16, #tpu.memory_space<vmem>>, vector<8x32xbf16>
      %21 = arith.extf %20 : vector<8x32xbf16> to vector<8x32xf32>
      %c0_18 = arith.constant 0 : index
      %c0_19 = arith.constant 0 : index
      %22 = vector.load %arg11[%c0_18, %c0_19] : memref<8x32xf32, #tpu.memory_space<vmem>>, vector<8x32xf32>
      %23 = arith.addf %21, %22 : vector<8x32xf32>
      %c0_20 = arith.constant 0 : index
      %c0_21 = arith.constant 0 : index
      %24 = vector.load %arg8[%c0_20, %c0_21] : memref<1x32xf32, #tpu.memory_space<vmem>>, vector<1x32xf32>
      %25 = vector.broadcast %24 : vector<1x32xf32> to vector<8x32xf32>
      %26 = arith.addf %23, %25 : vector<8x32xf32>
      %27 = arith.truncf %26 : vector<8x32xf32> to vector<8x32xbf16>
      %c0_22 = arith.constant 0 : index
      %c0_23 = arith.constant 0 : index
      %28 = vector.load %arg9[%c0_22, %c0_23] : memref<8x32xbf16, #tpu.memory_space<vmem>>, vector<8x32xbf16>
      tpu.vector_store %arg9[%c0_22, %c0_23], %27 {strides = array<i32>} : memref<8x32xbf16, #tpu.memory_space<vmem>>, vector<8x32xbf16>,
    } else {
    }
    return
  }
  func.func @transform_0(%arg0: i32, %arg1: i32) -> (i32, i32) {
    %c0_i32 = arith.constant 0 : i32
    %c0_i32_0 = arith.constant 0 : i32
    return %arg0, %c0_i32 : i32, i32
  }
  func.func @transform_1(%arg0: i32, %arg1: i32) -> (i32, i32) {
    %c0_i32 = arith.constant 0 : i32
    %c0_i32_0 = arith.constant 0 : i32
    %c0_i32_1 = arith.constant 0 : i32
    return %c0_i32, %c0_i32_0 : i32, i32
  }
  func.func @transform_2(%arg0: i32, %arg1: i32) -> (i32, i32) {
    %c0_i32 = arith.constant 0 : i32
    %c0_i32_0 = arith.constant 0 : i32
    %c0_i32_1 = arith.constant 0 : i32
    return %c0_i32, %c0_i32_0 : i32, i32
  }
  func.func @transform_3(%arg0: i32, %arg1: i32) -> (i32, i32) {
    %c0_i32 = arith.constant 0 : i32
    %c0_i32_0 = arith.constant 0 : i32
    return %c0_i32, %arg1 : i32, i32
  }
  func.func @transform_4(%arg0: i32, %arg1: i32) -> (i32, i32) {
    %c0_i32 = arith.constant 0 : i32
    %c0_i32_0 = arith.constant 0 : i32
    return %c0_i32, %arg1 : i32, i32
  }
  func.func @transform_5(%arg0: i32, %arg1: i32) -> (i32, i32) {
    %c0_i32 = arith.constant 0 : i32
    %c0_i32_0 = arith.constant 0 : i32
    return %arg1, %c0_i32 : i32, i32
  }
  func.func @transform_6(%arg0: i32, %arg1: i32) -> (i32, i32) {
    %c0_i32 = arith.constant 0 : i32
    %c0_i32_0 = arith.constant 0 : i32
    %c0_i32_1 = arith.constant 0 : i32
    return %c0_i32, %c0_i32_0 : i32, i32
  }
  func.func @transform_7(%arg0: i32, %arg1: i32) -> (i32, i32) {
    %c0_i32 = arith.constant 0 : i32
    %c0_i32_0 = arith.constant 0 : i32
    return %arg0, %c0_i32 : i32, i32
  }
}

module attributes {stable_mosaic.version = 11 : i64} {
  func.func @_attn_block_kernel(%arg0: i32, %arg1: i32, %arg2: i32, %arg3: memref<1x8x32xbf16, #tpu.memory_space<vmem>>, %arg4: memref<1x8x32xbf16, #tpu.memory_space<vmem>>, %arg5: memref<1x32xf32, #tpu.memory_space<vmem>>, %arg6: memref<1x32xf32, #tpu.memory_space<vmem>>, %arg7: memref<32x32xbf16, #tpu.memory_space<vmem>>, %arg8: memref<1x32xf32, #tpu.memory_space<vmem>>, %arg9: memref<32x64xbf16, #tpu.memory_space<vmem>>, %arg10: memref<1x64xf32, #tpu.memory_space<vmem>>, %arg11: memref<32x32xbf16, #tpu.memory_space<vmem>>, %arg12: memref<1x32xf32, #tpu.memory_space<vmem>>, %arg13: memref<1x8x32xbf16, #tpu.memory_space<vmem>>, %arg14: memref<8x32xbf16, #tpu.memory_space<vmem>>, %arg15: memref<4x8x1xf32, #tpu.memory_space<vmem>>, %arg16: memref<4x8x1xf32, #tpu.memory_space<vmem>>, %arg17: memref<8x32xf32, #tpu.memory_space<vmem>>) attributes {dimension_semantics = [#tpu.dimension_semantics<parallel>, #tpu.dimension_semantics<parallel>, #tpu.dimension_semantics<arbitrary>], iteration_bounds = array<i64: 2, 1, 1>, scalar_prefetch = 0 : i64, scratch_operands = 4 : i64, tpu.core_type = #tpu.core_type<tc>, window_params = [{transform_indices = @transform_0, window_bounds = array<i64: 1, 8, 32>}, {transform_indices = @transform_1, window_bounds = array<i64: 1, 8, 32>}, {pipeline_mode = #tpu.pipeline_mode<synchronous>, transform_indices = @transform_2, window_bounds = array<i64: 1, 32>}, {pipeline_mode = #tpu.pipeline_mode<synchronous>, transform_indices = @transform_3, window_bounds = array<i64: 1, 32>}, {pipeline_mode = #tpu.pipeline_mode<synchronous>, transform_indices = @transform_4, window_bounds = array<i64: 32, 32>}, {pipeline_mode = #tpu.pipeline_mode<synchronous>, transform_indices = @transform_5, window_bounds = array<i64: 1, 32>}, {pipeline_mode = #tpu.pipeline_mode<synchronous>, transform_indices = @transform_6, window_bounds = array<i64: 32, 64>}, {pipeline_mode = #tpu.pipeline_mode<synchronous>, transform_indices = @transform_7, window_bounds = array<i64: 1, 64>}, {pipeline_mode = #tpu.pipeline_mode<synchronous>, transform_indices = @transform_8, window_bounds = array<i64: 32, 32>}, {pipeline_mode = #tpu.pipeline_mode<synchronous>, transform_indices = @transform_9, window_bounds = array<i64: 1, 32>}, {transform_indices = @transform_10, window_bounds = array<i64: 1, 8, 32>}]} {
    %c8_i32 = arith.constant 8 : i32
    %0 = arith.muli %arg1, %c8_i32 : i32
    %c8_i32_0 = arith.constant 8 : i32
    %1 = arith.muli %arg2, %c8_i32_0 : i32
    %c0_i32 = arith.constant 0 : i32
    %2 = arith.cmpi eq, %arg2, %c0_i32 : i32
    %3 = arith.extui %2 : i1 to i32
    %c0_i32_1 = arith.constant 0 : i32
    %4 = arith.cmpi ne, %3, %c0_i32_1 : i32
    scf.if %4 {
      %cst = arith.constant -1.000000e+30 : f32
      %12 = vector.broadcast %cst : f32 to vector<4x8x1xf32>
      %c0 = arith.constant 0 : index
      %c0_5 = arith.constant 0 : index
      %c0_6 = arith.constant 0 : index
      %13 = vector.load %arg15[%c0, %c0_5, %c0_6] : memref<4x8x1xf32, #tpu.memory_space<vmem>>, vector<4x8x1xf32>
      tpu.vector_store %arg15[%c0, %c0_5, %c0_6], %12 {strides = array<i32>} : memref<4x8x1xf32, #tpu.memory_space<vmem>>, vector<4x8x1xf32>,
      %cst_7 = arith.constant 0.000000e+00 : f32
      %14 = vector.broadcast %cst_7 : f32 to vector<4x8x1xf32>
      %c0_8 = arith.constant 0 : index
      %c0_9 = arith.constant 0 : index
      %c0_10 = arith.constant 0 : index
      %15 = vector.load %arg16[%c0_8, %c0_9, %c0_10] : memref<4x8x1xf32, #tpu.memory_space<vmem>>, vector<4x8x1xf32>
      tpu.vector_store %arg16[%c0_8, %c0_9, %c0_10], %14 {strides = array<i32>} : memref<4x8x1xf32, #tpu.memory_space<vmem>>, vector<4x8x1xf32>,
      %cst_11 = arith.constant 0.000000e+00 : f32
      %16 = vector.broadcast %cst_11 : f32 to vector<8x32xf32>
      %c0_12 = arith.constant 0 : index
      %c0_13 = arith.constant 0 : index
      %17 = vector.load %arg17[%c0_12, %c0_13] : memref<8x32xf32, #tpu.memory_space<vmem>>, vector<8x32xf32>
      tpu.vector_store %arg17[%c0_12, %c0_13], %16 {strides = array<i32>} : memref<8x32xf32, #tpu.memory_space<vmem>>, vector<8x32xf32>,
      %c0_14 = arith.constant 0 : index
      %c0_15 = arith.constant 0 : index
      %c0_16 = arith.constant 0 : index
      %18 = vector.load %arg3[%c0_14, %c0_15, %c0_16] : memref<1x8x32xbf16, #tpu.memory_space<vmem>>, vector<1x8x32xbf16>
      %19 = vector.shape_cast %18 : vector<1x8x32xbf16> to vector<8x32xbf16>
      %20 = arith.extf %19 : vector<8x32xbf16> to vector<8x32xf32>
      %c0_17 = arith.constant 0 : index
      %c0_18 = arith.constant 0 : index
      %21 = vector.load %arg5[%c0_17, %c0_18] : memref<1x32xf32, #tpu.memory_space<vmem>>, vector<1x32xf32>
      %c0_19 = arith.constant 0 : index
      %c0_20 = arith.constant 0 : index
      %22 = vector.load %arg6[%c0_19, %c0_20] : memref<1x32xf32, #tpu.memory_space<vmem>>, vector<1x32xf32>
      %cst_21 = arith.constant dense<0.000000e+00> : vector<8xf32>
      %23 = vector.multi_reduction <add>, %20, %cst_21 [1] : vector<8x32xf32> to vector<8xf32>
      %24 = vector.shape_cast %23 : vector<8xf32> to vector<8x1xf32>
      %cst_22 = arith.constant 3.200000e+01 : f32
      %25 = vector.broadcast %cst_22 : f32 to vector<8x1xf32>
      %26 = arith.divf %24, %25 : vector<8x1xf32>
      %27 = vector.broadcast %26 : vector<8x1xf32> to vector<8x32xf32>
      %28 = arith.subf %20, %27 : vector<8x32xf32>
      %29 = arith.mulf %28, %28 : vector<8x32xf32>
      %cst_23 = arith.constant dense<0.000000e+00> : vector<8xf32>
      %30 = vector.multi_reduction <add>, %29, %cst_23 [1] : vector<8x32xf32> to vector<8xf32>
      %31 = vector.shape_cast %30 : vector<8xf32> to vector<8x1xf32>
      %cst_24 = arith.constant 3.200000e+01 : f32
      %32 = vector.broadcast %cst_24 : f32 to vector<8x1xf32>
      %33 = arith.divf %31, %32 : vector<8x1xf32>
      %34 = vector.broadcast %26 : vector<8x1xf32> to vector<8x32xf32>
      %35 = arith.subf %20, %34 : vector<8x32xf32>
      %cst_25 = arith.constant 9.99999974E-6 : f32
      %36 = vector.broadcast %cst_25 : f32 to vector<8x1xf32>
      %37 = arith.addf %33, %36 : vector<8x1xf32>
      %38 = math.rsqrt %37 : vector<8x1xf32>
      %39 = vector.broadcast %38 : vector<8x1xf32> to vector<8x32xf32>
      %40 = arith.mulf %35, %39 : vector<8x32xf32>
      %41 = vector.broadcast %21 : vector<1x32xf32> to vector<8x32xf32>
      %42 = arith.mulf %40, %41 : vector<8x32xf32>
      %43 = vector.broadcast %22 : vector<1x32xf32> to vector<8x32xf32>
      %44 = arith.addf %42, %43 : vector<8x32xf32>
      %45 = arith.truncf %44 : vector<8x32xf32> to vector<8x32xbf16>
      %c0_26 = arith.constant 0 : index
      %c0_27 = arith.constant 0 : index
      %46 = vector.load %arg7[%c0_26, %c0_27] : memref<32x32xbf16, #tpu.memory_space<vmem>>, vector<32x32xbf16>
      %cst_28 = arith.constant dense<0.000000e+00> : vector<8x32xf32>
      %47 = tpu.matmul %45, %46, %cst_28 {dimension_numbers = #tpu.dot_dimension_numbers<[1], [0], [0], [1], [0, 0, 1, 1], [], []>} : vector<8x32xbf16>, vector<32x32xbf16>, vector<8x32xf32> -> vector<8x32xf32>
      %c0_29 = arith.constant 0 : index
      %c0_30 = arith.constant 0 : index
      %48 = vector.load %arg8[%c0_29, %c0_30] : memref<1x32xf32, #tpu.memory_space<vmem>>, vector<1x32xf32>
      %49 = vector.broadcast %48 : vector<1x32xf32> to vector<8x32xf32>
      %50 = arith.addf %47, %49 : vector<8x32xf32>
      %cst_31 = arith.constant 0.353553385 : f32
      %51 = vector.broadcast %cst_31 : f32 to vector<8x32xf32>
      %52 = arith.mulf %50, %51 : vector<8x32xf32>
      %53 = arith.truncf %52 : vector<8x32xf32> to vector<8x32xbf16>
      %c0_32 = arith.constant 0 : index
      %c0_33 = arith.constant 0 : index
      %54 = vector.load %arg14[%c0_32, %c0_33] : memref<8x32xbf16, #tpu.memory_space<vmem>>, vector<8x32xbf16>
      tpu.vector_store %arg14[%c0_32, %c0_33], %53 {strides = array<i32>} : memref<8x32xbf16, #tpu.memory_space<vmem>>, vector<8x32xbf16>,
    } else {
    }
    %c7_i32 = arith.constant 7 : i32
    %5 = arith.addi %0, %c7_i32 : i32
    %6 = arith.cmpi sle, %1, %5 : i32
    %7 = arith.extui %6 : i1 to i32
    %c0_i32_2 = arith.constant 0 : i32
    %8 = arith.cmpi ne, %7, %c0_i32_2 : i32
    scf.if %8 {
      %c0 = arith.constant 0 : index
      %c0_5 = arith.constant 0 : index
      %c0_6 = arith.constant 0 : index
      %12 = vector.load %arg4[%c0, %c0_5, %c0_6] : memref<1x8x32xbf16, #tpu.memory_space<vmem>>, vector<1x8x32xbf16>
      %13 = vector.shape_cast %12 : vector<1x8x32xbf16> to vector<8x32xbf16>
      %14 = arith.extf %13 : vector<8x32xbf16> to vector<8x32xf32>
      %c0_7 = arith.constant 0 : index
      %c0_8 = arith.constant 0 : index
      %15 = vector.load %arg5[%c0_7, %c0_8] : memref<1x32xf32, #tpu.memory_space<vmem>>, vector<1x32xf32>
      %c0_9 = arith.constant 0 : index
      %c0_10 = arith.constant 0 : index
      %16 = vector.load %arg6[%c0_9, %c0_10] : memref<1x32xf32, #tpu.memory_space<vmem>>, vector<1x32xf32>
      %cst = arith.constant dense<0.000000e+00> : vector<8xf32>
      %17 = vector.multi_reduction <add>, %14, %cst [1] : vector<8x32xf32> to vector<8xf32>
      %18 = vector.shape_cast %17 : vector<8xf32> to vector<8x1xf32>
      %cst_11 = arith.constant 3.200000e+01 : f32
      %19 = vector.broadcast %cst_11 : f32 to vector<8x1xf32>
      %20 = arith.divf %18, %19 : vector<8x1xf32>
      %21 = vector.broadcast %20 : vector<8x1xf32> to vector<8x32xf32>
      %22 = arith.subf %14, %21 : vector<8x32xf32>
      %23 = arith.mulf %22, %22 : vector<8x32xf32>
      %cst_12 = arith.constant dense<0.000000e+00> : vector<8xf32>
      %24 = vector.multi_reduction <add>, %23, %cst_12 [1] : vector<8x32xf32> to vector<8xf32>
      %25 = vector.shape_cast %24 : vector<8xf32> to vector<8x1xf32>
      %cst_13 = arith.constant 3.200000e+01 : f32
      %26 = vector.broadcast %cst_13 : f32 to vector<8x1xf32>
      %27 = arith.divf %25, %26 : vector<8x1xf32>
      %28 = vector.broadcast %20 : vector<8x1xf32> to vector<8x32xf32>
      %29 = arith.subf %14, %28 : vector<8x32xf32>
      %cst_14 = arith.constant 9.99999974E-6 : f32
      %30 = vector.broadcast %cst_14 : f32 to vector<8x1xf32>
      %31 = arith.addf %27, %30 : vector<8x1xf32>
      %32 = math.rsqrt %31 : vector<8x1xf32>
      %33 = vector.broadcast %32 : vector<8x1xf32> to vector<8x32xf32>
      %34 = arith.mulf %29, %33 : vector<8x32xf32>
      %35 = vector.broadcast %15 : vector<1x32xf32> to vector<8x32xf32>
      %36 = arith.mulf %34, %35 : vector<8x32xf32>
      %37 = vector.broadcast %16 : vector<1x32xf32> to vector<8x32xf32>
      %38 = arith.addf %36, %37 : vector<8x32xf32>
      %39 = arith.truncf %38 : vector<8x32xf32> to vector<8x32xbf16>
      %c0_15 = arith.constant 0 : index
      %c0_16 = arith.constant 0 : index
      %40 = vector.load %arg9[%c0_15, %c0_16] : memref<32x64xbf16, #tpu.memory_space<vmem>>, vector<32x64xbf16>
      %cst_17 = arith.constant dense<0.000000e+00> : vector<8x64xf32>
      %41 = tpu.matmul %39, %40, %cst_17 {dimension_numbers = #tpu.dot_dimension_numbers<[1], [0], [0], [1], [0, 0, 1, 1], [], []>} : vector<8x32xbf16>, vector<32x64xbf16>, vector<8x64xf32> -> vector<8x64xf32>
      %c0_18 = arith.constant 0 : index
      %c0_19 = arith.constant 0 : index
      %42 = vector.load %arg10[%c0_18, %c0_19] : memref<1x64xf32, #tpu.memory_space<vmem>>, vector<1x64xf32>
      %43 = vector.broadcast %42 : vector<1x64xf32> to vector<8x64xf32>
      %44 = arith.addf %41, %43 : vector<8x64xf32>
      %45 = vector.extract_strided_slice %44 {offsets = [0, 0], sizes = [8, 32], strides = [1, 1]} : vector<8x64xf32> to vector<8x32xf32>
      %46 = arith.truncf %45 : vector<8x32xf32> to vector<8x32xbf16>
      %47 = vector.extract_strided_slice %44 {offsets = [0, 32], sizes = [8, 32], strides = [1, 1]} : vector<8x64xf32> to vector<8x32xf32>
      %48 = arith.truncf %47 : vector<8x32xf32> to vector<8x32xbf16>
      %49 = tpu.iota {dimensions = array<i32: 0>} : vector<8x8xi32>
      %50 = vector.broadcast %0 : i32 to vector<8x8xi32>
      %51 = arith.addi %50, %49 : vector<8x8xi32>
      %52 = tpu.iota {dimensions = array<i32: 1>} : vector<8x8xi32>
      %53 = vector.broadcast %1 : i32 to vector<8x8xi32>
      %54 = arith.addi %53, %52 : vector<8x8xi32>
      %55 = arith.cmpi sle, %54, %51 : vector<8x8xi32>
      %c0_20 = arith.constant 0 : index
      %c0_21 = arith.constant 0 : index
      %56 = vector.load %arg14[%c0_20, %c0_21] : memref<8x32xbf16, #tpu.memory_space<vmem>>, vector<8x8xbf16>
      %57 = vector.extract_strided_slice %46 {offsets = [0, 0], sizes = [8, 8], strides = [1, 1]} : vector<8x32xbf16> to vector<8x8xbf16>
      %cst_22 = arith.constant dense<0.000000e+00> : vector<8x8xf32>
      %58 = tpu.matmul %56, %57, %cst_22 {dimension_numbers = #tpu.dot_dimension_numbers<[1], [1], [0], [0], [0, 0, 1, 0], [], []>} : vector<8x8xbf16>, vector<8x8xbf16>, vector<8x8xf32> -> vector<8x8xf32>
      %cst_23 = arith.constant -1.000000e+30 : f32
      %59 = vector.broadcast %cst_23 : f32 to vector<8x8xf32>
      %60 = arith.select %55, %58, %59 : vector<8x8xi1>, vector<8x8xf32>
      %c0_24 = arith.constant 0 : index
      %c0_25 = arith.constant 0 : index
      %c0_26 = arith.constant 0 : index
      %61 = vector.load %arg15[%c0_24, %c0_25, %c0_26] : memref<4x8x1xf32, #tpu.memory_space<vmem>>, vector<1x8x1xf32>
      %62 = vector.shape_cast %61 : vector<1x8x1xf32> to vector<8x1xf32>
      %cst_27 = arith.constant dense<0xFF800000> : vector<8xf32>
      %63 = vector.multi_reduction <maximumf>, %60, %cst_27 [1] : vector<8x8xf32> to vector<8xf32>
      %64 = vector.shape_cast %63 : vector<8xf32> to vector<8x1xf32>
      %65 = arith.maximumf %62, %64 : vector<8x1xf32>
      %66 = arith.subf %62, %65 : vector<8x1xf32>
      %67 = math.exp %66 : vector<8x1xf32>
      %68 = vector.broadcast %65 : vector<8x1xf32> to vector<8x8xf32>
      %69 = arith.subf %60, %68 : vector<8x8xf32>
      %70 = math.exp %69 : vector<8x8xf32>
      %c0_28 = arith.constant 0 : index
      %c0_29 = arith.constant 0 : index
      %c0_30 = arith.constant 0 : index
      %71 = vector.load %arg16[%c0_28, %c0_29, %c0_30] : memref<4x8x1xf32, #tpu.memory_space<vmem>>, vector<1x8x1xf32>
      %72 = vector.shape_cast %71 : vector<1x8x1xf32> to vector<8x1xf32>
      %73 = arith.mulf %67, %72 : vector<8x1xf32>
      %cst_31 = arith.constant dense<0.000000e+00> : vector<8xf32>
      %74 = vector.multi_reduction <add>, %70, %cst_31 [1] : vector<8x8xf32> to vector<8xf32>
      %75 = vector.shape_cast %74 : vector<8xf32> to vector<8x1xf32>
      %76 = arith.addf %73, %75 : vector<8x1xf32>
      %c0_32 = arith.constant 0 : index
      %c0_33 = arith.constant 0 : index
      %c0_34 = arith.constant 0 : index
      %77 = vector.load %arg16[%c0_32, %c0_33, %c0_34] : memref<4x8x1xf32, #tpu.memory_space<vmem>>, vector<1x8x1xf32>
      %78 = vector.shape_cast %77 : vector<1x8x1xf32> to vector<8x1xf32>
      %79 = vector.shape_cast %76 : vector<8x1xf32> to vector<1x8x1xf32>
      tpu.vector_store %arg16[%c0_32, %c0_33, %c0_34], %79 {strides = array<i32>} : memref<4x8x1xf32, #tpu.memory_space<vmem>>, vector<1x8x1xf32>,
      %c0_35 = arith.constant 0 : index
      %c0_36 = arith.constant 0 : index
      %80 = vector.load %arg17[%c0_35, %c0_36] : memref<8x32xf32, #tpu.memory_space<vmem>>, vector<8x8xf32>
      %81 = vector.broadcast %67 : vector<8x1xf32> to vector<8x8xf32>
      %82 = arith.mulf %81, %80 : vector<8x8xf32>
      %83 = arith.truncf %70 : vector<8x8xf32> to vector<8x8xbf16>
      %84 = vector.extract_strided_slice %48 {offsets = [0, 0], sizes = [8, 8], strides = [1, 1]} : vector<8x32xbf16> to vector<8x8xbf16>
      %cst_37 = arith.constant dense<0.000000e+00> : vector<8x8xf32>
      %85 = tpu.matmul %83, %84, %cst_37 {dimension_numbers = #tpu.dot_dimension_numbers<[1], [0], [0], [1], [0, 0, 1, 1], [], []>} : vector<8x8xbf16>, vector<8x8xbf16>, vector<8x8xf32> -> vector<8x8xf32>
      %86 = arith.addf %82, %85 : vector<8x8xf32>
      %c0_38 = arith.constant 0 : index
      %c0_39 = arith.constant 0 : index
      %87 = vector.load %arg17[%c0_38, %c0_39] : memref<8x32xf32, #tpu.memory_space<vmem>>, vector<8x8xf32>
      tpu.vector_store %arg17[%c0_38, %c0_39], %86 {strides = array<i32>} : memref<8x32xf32, #tpu.memory_space<vmem>>, vector<8x8xf32>,
      %c0_40 = arith.constant 0 : index
      %c0_41 = arith.constant 0 : index
      %c0_42 = arith.constant 0 : index
      %88 = vector.load %arg15[%c0_40, %c0_41, %c0_42] : memref<4x8x1xf32, #tpu.memory_space<vmem>>, vector<1x8x1xf32>
      %89 = vector.shape_cast %88 : vector<1x8x1xf32> to vector<8x1xf32>
      %90 = vector.shape_cast %65 : vector<8x1xf32> to vector<1x8x1xf32>
      tpu.vector_store %arg15[%c0_40, %c0_41, %c0_42], %90 {strides = array<i32>} : memref<4x8x1xf32, #tpu.memory_space<vmem>>, vector<1x8x1xf32>,
      %c0_43 = arith.constant 0 : index
      %c8 = arith.constant 8 : index
      %91 = vector.load %arg14[%c0_43, %c8] : memref<8x32xbf16, #tpu.memory_space<vmem>>, vector<8x8xbf16>
      %92 = vector.extract_strided_slice %46 {offsets = [0, 8], sizes = [8, 8], strides = [1, 1]} : vector<8x32xbf16> to vector<8x8xbf16>
      %cst_44 = arith.constant dense<0.000000e+00> : vector<8x8xf32>
      %93 = tpu.matmul %91, %92, %cst_44 {dimension_numbers = #tpu.dot_dimension_numbers<[1], [1], [0], [0], [0, 0, 1, 0], [], []>} : vector<8x8xbf16>, vector<8x8xbf16>, vector<8x8xf32> -> vector<8x8xf32>
      %cst_45 = arith.constant -1.000000e+30 : f32
      %94 = vector.broadcast %cst_45 : f32 to vector<8x8xf32>
      %95 = arith.select %55, %93, %94 : vector<8x8xi1>, vector<8x8xf32>
      %c1 = arith.constant 1 : index
      %c0_46 = arith.constant 0 : index
      %c0_47 = arith.constant 0 : index
      %96 = vector.load %arg15[%c1, %c0_46, %c0_47] : memref<4x8x1xf32, #tpu.memory_space<vmem>>, vector<1x8x1xf32>
      %97 = vector.shape_cast %96 : vector<1x8x1xf32> to vector<8x1xf32>
      %cst_48 = arith.constant dense<0xFF800000> : vector<8xf32>
      %98 = vector.multi_reduction <maximumf>, %95, %cst_48 [1] : vector<8x8xf32> to vector<8xf32>
      %99 = vector.shape_cast %98 : vector<8xf32> to vector<8x1xf32>
      %100 = arith.maximumf %97, %99 : vector<8x1xf32>
      %101 = arith.subf %97, %100 : vector<8x1xf32>
      %102 = math.exp %101 : vector<8x1xf32>
      %103 = vector.broadcast %100 : vector<8x1xf32> to vector<8x8xf32>
      %104 = arith.subf %95, %103 : vector<8x8xf32>
      %105 = math.exp %104 : vector<8x8xf32>
      %c1_49 = arith.constant 1 : index
      %c0_50 = arith.constant 0 : index
      %c0_51 = arith.constant 0 : index
      %106 = vector.load %arg16[%c1_49, %c0_50, %c0_51] : memref<4x8x1xf32, #tpu.memory_space<vmem>>, vector<1x8x1xf32>
      %107 = vector.shape_cast %106 : vector<1x8x1xf32> to vector<8x1xf32>
      %108 = arith.mulf %102, %107 : vector<8x1xf32>
      %cst_52 = arith.constant dense<0.000000e+00> : vector<8xf32>
      %109 = vector.multi_reduction <add>, %105, %cst_52 [1] : vector<8x8xf32> to vector<8xf32>
      %110 = vector.shape_cast %109 : vector<8xf32> to vector<8x1xf32>
      %111 = arith.addf %108, %110 : vector<8x1xf32>
      %c1_53 = arith.constant 1 : index
      %c0_54 = arith.constant 0 : index
      %c0_55 = arith.constant 0 : index
      %112 = vector.load %arg16[%c1_53, %c0_54, %c0_55] : memref<4x8x1xf32, #tpu.memory_space<vmem>>, vector<1x8x1xf32>
      %113 = vector.shape_cast %112 : vector<1x8x1xf32> to vector<8x1xf32>
      %114 = vector.shape_cast %111 : vector<8x1xf32> to vector<1x8x1xf32>
      tpu.vector_store %arg16[%c1_53, %c0_54, %c0_55], %114 {strides = array<i32>} : memref<4x8x1xf32, #tpu.memory_space<vmem>>, vector<1x8x1xf32>,
      %c0_56 = arith.constant 0 : index
      %c8_57 = arith.constant 8 : index
      %115 = vector.load %arg17[%c0_56, %c8_57] : memref<8x32xf32, #tpu.memory_space<vmem>>, vector<8x8xf32>
      %116 = vector.broadcast %102 : vector<8x1xf32> to vector<8x8xf32>
      %117 = arith.mulf %116, %115 : vector<8x8xf32>
      %118 = arith.truncf %105 : vector<8x8xf32> to vector<8x8xbf16>
      %119 = vector.extract_strided_slice %48 {offsets = [0, 8], sizes = [8, 8], strides = [1, 1]} : vector<8x32xbf16> to vector<8x8xbf16>
      %cst_58 = arith.constant dense<0.000000e+00> : vector<8x8xf32>
      %120 = tpu.matmul %118, %119, %cst_58 {dimension_numbers = #tpu.dot_dimension_numbers<[1], [0], [0], [1], [0, 0, 1, 1], [], []>} : vector<8x8xbf16>, vector<8x8xbf16>, vector<8x8xf32> -> vector<8x8xf32>
      %121 = arith.addf %117, %120 : vector<8x8xf32>
      %c0_59 = arith.constant 0 : index
      %c8_60 = arith.constant 8 : index
      %122 = vector.load %arg17[%c0_59, %c8_60] : memref<8x32xf32, #tpu.memory_space<vmem>>, vector<8x8xf32>
      tpu.vector_store %arg17[%c0_59, %c8_60], %121 {strides = array<i32>} : memref<8x32xf32, #tpu.memory_space<vmem>>, vector<8x8xf32>,
      %c1_61 = arith.constant 1 : index
      %c0_62 = arith.constant 0 : index
      %c0_63 = arith.constant 0 : index
      %123 = vector.load %arg15[%c1_61, %c0_62, %c0_63] : memref<4x8x1xf32, #tpu.memory_space<vmem>>, vector<1x8x1xf32>
      %124 = vector.shape_cast %123 : vector<1x8x1xf32> to vector<8x1xf32>
      %125 = vector.shape_cast %100 : vector<8x1xf32> to vector<1x8x1xf32>
      tpu.vector_store %arg15[%c1_61, %c0_62, %c0_63], %125 {strides = array<i32>} : memref<4x8x1xf32, #tpu.memory_space<vmem>>, vector<1x8x1xf32>,
      %c0_64 = arith.constant 0 : index
      %c16 = arith.constant 16 : index
      %126 = vector.load %arg14[%c0_64, %c16] : memref<8x32xbf16, #tpu.memory_space<vmem>>, vector<8x8xbf16>
      %127 = vector.extract_strided_slice %46 {offsets = [0, 16], sizes = [8, 8], strides = [1, 1]} : vector<8x32xbf16> to vector<8x8xbf16>
      %cst_65 = arith.constant dense<0.000000e+00> : vector<8x8xf32>
      %128 = tpu.matmul %126, %127, %cst_65 {dimension_numbers = #tpu.dot_dimension_numbers<[1], [1], [0], [0], [0, 0, 1, 0], [], []>} : vector<8x8xbf16>, vector<8x8xbf16>, vector<8x8xf32> -> vector<8x8xf32>
      %cst_66 = arith.constant -1.000000e+30 : f32
      %129 = vector.broadcast %cst_66 : f32 to vector<8x8xf32>
      %130 = arith.select %55, %128, %129 : vector<8x8xi1>, vector<8x8xf32>
      %c2 = arith.constant 2 : index
      %c0_67 = arith.constant 0 : index
      %c0_68 = arith.constant 0 : index
      %131 = vector.load %arg15[%c2, %c0_67, %c0_68] : memref<4x8x1xf32, #tpu.memory_space<vmem>>, vector<1x8x1xf32>
      %132 = vector.shape_cast %131 : vector<1x8x1xf32> to vector<8x1xf32>
      %cst_69 = arith.constant dense<0xFF800000> : vector<8xf32>
      %133 = vector.multi_reduction <maximumf>, %130, %cst_69 [1] : vector<8x8xf32> to vector<8xf32>
      %134 = vector.shape_cast %133 : vector<8xf32> to vector<8x1xf32>
      %135 = arith.maximumf %132, %134 : vector<8x1xf32>
      %136 = arith.subf %132, %135 : vector<8x1xf32>
      %137 = math.exp %136 : vector<8x1xf32>
      %138 = vector.broadcast %135 : vector<8x1xf32> to vector<8x8xf32>
      %139 = arith.subf %130, %138 : vector<8x8xf32>
      %140 = math.exp %139 : vector<8x8xf32>
      %c2_70 = arith.constant 2 : index
      %c0_71 = arith.constant 0 : index
      %c0_72 = arith.constant 0 : index
      %141 = vector.load %arg16[%c2_70, %c0_71, %c0_72] : memref<4x8x1xf32, #tpu.memory_space<vmem>>, vector<1x8x1xf32>
      %142 = vector.shape_cast %141 : vector<1x8x1xf32> to vector<8x1xf32>
      %143 = arith.mulf %137, %142 : vector<8x1xf32>
      %cst_73 = arith.constant dense<0.000000e+00> : vector<8xf32>
      %144 = vector.multi_reduction <add>, %140, %cst_73 [1] : vector<8x8xf32> to vector<8xf32>
      %145 = vector.shape_cast %144 : vector<8xf32> to vector<8x1xf32>
      %146 = arith.addf %143, %145 : vector<8x1xf32>
      %c2_74 = arith.constant 2 : index
      %c0_75 = arith.constant 0 : index
      %c0_76 = arith.constant 0 : index
      %147 = vector.load %arg16[%c2_74, %c0_75, %c0_76] : memref<4x8x1xf32, #tpu.memory_space<vmem>>, vector<1x8x1xf32>
      %148 = vector.shape_cast %147 : vector<1x8x1xf32> to vector<8x1xf32>
      %149 = vector.shape_cast %146 : vector<8x1xf32> to vector<1x8x1xf32>
      tpu.vector_store %arg16[%c2_74, %c0_75, %c0_76], %149 {strides = array<i32>} : memref<4x8x1xf32, #tpu.memory_space<vmem>>, vector<1x8x1xf32>,
      %c0_77 = arith.constant 0 : index
      %c16_78 = arith.constant 16 : index
      %150 = vector.load %arg17[%c0_77, %c16_78] : memref<8x32xf32, #tpu.memory_space<vmem>>, vector<8x8xf32>
      %151 = vector.broadcast %137 : vector<8x1xf32> to vector<8x8xf32>
      %152 = arith.mulf %151, %150 : vector<8x8xf32>
      %153 = arith.truncf %140 : vector<8x8xf32> to vector<8x8xbf16>
      %154 = vector.extract_strided_slice %48 {offsets = [0, 16], sizes = [8, 8], strides = [1, 1]} : vector<8x32xbf16> to vector<8x8xbf16>
      %cst_79 = arith.constant dense<0.000000e+00> : vector<8x8xf32>
      %155 = tpu.matmul %153, %154, %cst_79 {dimension_numbers = #tpu.dot_dimension_numbers<[1], [0], [0], [1], [0, 0, 1, 1], [], []>} : vector<8x8xbf16>, vector<8x8xbf16>, vector<8x8xf32> -> vector<8x8xf32>
      %156 = arith.addf %152, %155 : vector<8x8xf32>
      %c0_80 = arith.constant 0 : index
      %c16_81 = arith.constant 16 : index
      %157 = vector.load %arg17[%c0_80, %c16_81] : memref<8x32xf32, #tpu.memory_space<vmem>>, vector<8x8xf32>
      tpu.vector_store %arg17[%c0_80, %c16_81], %156 {strides = array<i32>} : memref<8x32xf32, #tpu.memory_space<vmem>>, vector<8x8xf32>,
      %c2_82 = arith.constant 2 : index
      %c0_83 = arith.constant 0 : index
      %c0_84 = arith.constant 0 : index
      %158 = vector.load %arg15[%c2_82, %c0_83, %c0_84] : memref<4x8x1xf32, #tpu.memory_space<vmem>>, vector<1x8x1xf32>
      %159 = vector.shape_cast %158 : vector<1x8x1xf32> to vector<8x1xf32>
      %160 = vector.shape_cast %135 : vector<8x1xf32> to vector<1x8x1xf32>
      tpu.vector_store %arg15[%c2_82, %c0_83, %c0_84], %160 {strides = array<i32>} : memref<4x8x1xf32, #tpu.memory_space<vmem>>, vector<1x8x1xf32>,
      %c0_85 = arith.constant 0 : index
      %c24 = arith.constant 24 : index
      %161 = vector.load %arg14[%c0_85, %c24] : memref<8x32xbf16, #tpu.memory_space<vmem>>, vector<8x8xbf16>
      %162 = vector.extract_strided_slice %46 {offsets = [0, 24], sizes = [8, 8], strides = [1, 1]} : vector<8x32xbf16> to vector<8x8xbf16>
      %cst_86 = arith.constant dense<0.000000e+00> : vector<8x8xf32>
      %163 = tpu.matmul %161, %162, %cst_86 {dimension_numbers = #tpu.dot_dimension_numbers<[1], [1], [0], [0], [0, 0, 1, 0], [], []>} : vector<8x8xbf16>, vector<8x8xbf16>, vector<8x8xf32> -> vector<8x8xf32>
      %cst_87 = arith.constant -1.000000e+30 : f32
      %164 = vector.broadcast %cst_87 : f32 to vector<8x8xf32>
      %165 = arith.select %55, %163, %164 : vector<8x8xi1>, vector<8x8xf32>
      %c3 = arith.constant 3 : index
      %c0_88 = arith.constant 0 : index
      %c0_89 = arith.constant 0 : index
      %166 = vector.load %arg15[%c3, %c0_88, %c0_89] : memref<4x8x1xf32, #tpu.memory_space<vmem>>, vector<1x8x1xf32>
      %167 = vector.shape_cast %166 : vector<1x8x1xf32> to vector<8x1xf32>
      %cst_90 = arith.constant dense<0xFF800000> : vector<8xf32>
      %168 = vector.multi_reduction <maximumf>, %165, %cst_90 [1] : vector<8x8xf32> to vector<8xf32>
      %169 = vector.shape_cast %168 : vector<8xf32> to vector<8x1xf32>
      %170 = arith.maximumf %167, %169 : vector<8x1xf32>
      %171 = arith.subf %167, %170 : vector<8x1xf32>
      %172 = math.exp %171 : vector<8x1xf32>
      %173 = vector.broadcast %170 : vector<8x1xf32> to vector<8x8xf32>
      %174 = arith.subf %165, %173 : vector<8x8xf32>
      %175 = math.exp %174 : vector<8x8xf32>
      %c3_91 = arith.constant 3 : index
      %c0_92 = arith.constant 0 : index
      %c0_93 = arith.constant 0 : index
      %176 = vector.load %arg16[%c3_91, %c0_92, %c0_93] : memref<4x8x1xf32, #tpu.memory_space<vmem>>, vector<1x8x1xf32>
      %177 = vector.shape_cast %176 : vector<1x8x1xf32> to vector<8x1xf32>
      %178 = arith.mulf %172, %177 : vector<8x1xf32>
      %cst_94 = arith.constant dense<0.000000e+00> : vector<8xf32>
      %179 = vector.multi_reduction <add>, %175, %cst_94 [1] : vector<8x8xf32> to vector<8xf32>
      %180 = vector.shape_cast %179 : vector<8xf32> to vector<8x1xf32>
      %181 = arith.addf %178, %180 : vector<8x1xf32>
      %c3_95 = arith.constant 3 : index
      %c0_96 = arith.constant 0 : index
      %c0_97 = arith.constant 0 : index
      %182 = vector.load %arg16[%c3_95, %c0_96, %c0_97] : memref<4x8x1xf32, #tpu.memory_space<vmem>>, vector<1x8x1xf32>
      %183 = vector.shape_cast %182 : vector<1x8x1xf32> to vector<8x1xf32>
      %184 = vector.shape_cast %181 : vector<8x1xf32> to vector<1x8x1xf32>
      tpu.vector_store %arg16[%c3_95, %c0_96, %c0_97], %184 {strides = array<i32>} : memref<4x8x1xf32, #tpu.memory_space<vmem>>, vector<1x8x1xf32>,
      %c0_98 = arith.constant 0 : index
      %c24_99 = arith.constant 24 : index
      %185 = vector.load %arg17[%c0_98, %c24_99] : memref<8x32xf32, #tpu.memory_space<vmem>>, vector<8x8xf32>
      %186 = vector.broadcast %172 : vector<8x1xf32> to vector<8x8xf32>
      %187 = arith.mulf %186, %185 : vector<8x8xf32>
      %188 = arith.truncf %175 : vector<8x8xf32> to vector<8x8xbf16>
      %189 = vector.extract_strided_slice %48 {offsets = [0, 24], sizes = [8, 8], strides = [1, 1]} : vector<8x32xbf16> to vector<8x8xbf16>
      %cst_100 = arith.constant dense<0.000000e+00> : vector<8x8xf32>
      %190 = tpu.matmul %188, %189, %cst_100 {dimension_numbers = #tpu.dot_dimension_numbers<[1], [0], [0], [1], [0, 0, 1, 1], [], []>} : vector<8x8xbf16>, vector<8x8xbf16>, vector<8x8xf32> -> vector<8x8xf32>
      %191 = arith.addf %187, %190 : vector<8x8xf32>
      %c0_101 = arith.constant 0 : index
      %c24_102 = arith.constant 24 : index
      %192 = vector.load %arg17[%c0_101, %c24_102] : memref<8x32xf32, #tpu.memory_space<vmem>>, vector<8x8xf32>
      tpu.vector_store %arg17[%c0_101, %c24_102], %191 {strides = array<i32>} : memref<8x32xf32, #tpu.memory_space<vmem>>, vector<8x8xf32>,
      %c3_103 = arith.constant 3 : index
      %c0_104 = arith.constant 0 : index
      %c0_105 = arith.constant 0 : index
      %193 = vector.load %arg15[%c3_103, %c0_104, %c0_105] : memref<4x8x1xf32, #tpu.memory_space<vmem>>, vector<1x8x1xf32>
      %194 = vector.shape_cast %193 : vector<1x8x1xf32> to vector<8x1xf32>
      %195 = vector.shape_cast %170 : vector<8x1xf32> to vector<1x8x1xf32>
      tpu.vector_store %arg15[%c3_103, %c0_104, %c0_105], %195 {strides = array<i32>} : memref<4x8x1xf32, #tpu.memory_space<vmem>>, vector<1x8x1xf32>,
    } else {
    }
    %c0_i32_3 = arith.constant 0 : i32
    %9 = arith.cmpi eq, %arg2, %c0_i32_3 : i32
    %10 = arith.extui %9 : i1 to i32
    %c0_i32_4 = arith.constant 0 : i32
    %11 = arith.cmpi ne, %10, %c0_i32_4 : i32
    scf.if %11 {
      %c0 = arith.constant 0 : index
      %c0_5 = arith.constant 0 : index
      %12 = vector.load %arg17[%c0, %c0_5] : memref<8x32xf32, #tpu.memory_space<vmem>>, vector<8x8xf32>
      %c0_6 = arith.constant 0 : index
      %c0_7 = arith.constant 0 : index
      %c0_8 = arith.constant 0 : index
      %13 = vector.load %arg16[%c0_6, %c0_7, %c0_8] : memref<4x8x1xf32, #tpu.memory_space<vmem>>, vector<1x8x1xf32>
      %14 = vector.shape_cast %13 : vector<1x8x1xf32> to vector<8x1xf32>
      %15 = tpu.reciprocal %14 {approx = true} : vector<8x1xf32> -> vector<8x1xf32>
      %16 = vector.broadcast %15 : vector<8x1xf32> to vector<8x8xf32>
      %17 = arith.mulf %12, %16 : vector<8x8xf32>
      %c0_9 = arith.constant 0 : index
      %c0_10 = arith.constant 0 : index
      %18 = vector.load %arg17[%c0_9, %c0_10] : memref<8x32xf32, #tpu.memory_space<vmem>>, vector<8x8xf32>
      tpu.vector_store %arg17[%c0_9, %c0_10], %17 {strides = array<i32>} : memref<8x32xf32, #tpu.memory_space<vmem>>, vector<8x8xf32>,
      %c0_11 = arith.constant 0 : index
      %c8 = arith.constant 8 : index
      %19 = vector.load %arg17[%c0_11, %c8] : memref<8x32xf32, #tpu.memory_space<vmem>>, vector<8x8xf32>
      %c1 = arith.constant 1 : index
      %c0_12 = arith.constant 0 : index
      %c0_13 = arith.constant 0 : index
      %20 = vector.load %arg16[%c1, %c0_12, %c0_13] : memref<4x8x1xf32, #tpu.memory_space<vmem>>, vector<1x8x1xf32>
      %21 = vector.shape_cast %20 : vector<1x8x1xf32> to vector<8x1xf32>
      %22 = tpu.reciprocal %21 {approx = true} : vector<8x1xf32> -> vector<8x1xf32>
      %23 = vector.broadcast %22 : vector<8x1xf32> to vector<8x8xf32>
      %24 = arith.mulf %19, %23 : vector<8x8xf32>
      %c0_14 = arith.constant 0 : index
      %c8_15 = arith.constant 8 : index
      %25 = vector.load %arg17[%c0_14, %c8_15] : memref<8x32xf32, #tpu.memory_space<vmem>>, vector<8x8xf32>
      tpu.vector_store %arg17[%c0_14, %c8_15], %24 {strides = array<i32>} : memref<8x32xf32, #tpu.memory_space<vmem>>, vector<8x8xf32>,
      %c0_16 = arith.constant 0 : index
      %c16 = arith.constant 16 : index
      %26 = vector.load %arg17[%c0_16, %c16] : memref<8x32xf32, #tpu.memory_space<vmem>>, vector<8x8xf32>
      %c2 = arith.constant 2 : index
      %c0_17 = arith.constant 0 : index
      %c0_18 = arith.constant 0 : index
      %27 = vector.load %arg16[%c2, %c0_17, %c0_18] : memref<4x8x1xf32, #tpu.memory_space<vmem>>, vector<1x8x1xf32>
      %28 = vector.shape_cast %27 : vector<1x8x1xf32> to vector<8x1xf32>
      %29 = tpu.reciprocal %28 {approx = true} : vector<8x1xf32> -> vector<8x1xf32>
      %30 = vector.broadcast %29 : vector<8x1xf32> to vector<8x8xf32>
      %31 = arith.mulf %26, %30 : vector<8x8xf32>
      %c0_19 = arith.constant 0 : index
      %c16_20 = arith.constant 16 : index
      %32 = vector.load %arg17[%c0_19, %c16_20] : memref<8x32xf32, #tpu.memory_space<vmem>>, vector<8x8xf32>
      tpu.vector_store %arg17[%c0_19, %c16_20], %31 {strides = array<i32>} : memref<8x32xf32, #tpu.memory_space<vmem>>, vector<8x8xf32>,
      %c0_21 = arith.constant 0 : index
      %c24 = arith.constant 24 : index
      %33 = vector.load %arg17[%c0_21, %c24] : memref<8x32xf32, #tpu.memory_space<vmem>>, vector<8x8xf32>
      %c3 = arith.constant 3 : index
      %c0_22 = arith.constant 0 : index
      %c0_23 = arith.constant 0 : index
      %34 = vector.load %arg16[%c3, %c0_22, %c0_23] : memref<4x8x1xf32, #tpu.memory_space<vmem>>, vector<1x8x1xf32>
      %35 = vector.shape_cast %34 : vector<1x8x1xf32> to vector<8x1xf32>
      %36 = tpu.reciprocal %35 {approx = true} : vector<8x1xf32> -> vector<8x1xf32>
      %37 = vector.broadcast %36 : vector<8x1xf32> to vector<8x8xf32>
      %38 = arith.mulf %33, %37 : vector<8x8xf32>
      %c0_24 = arith.constant 0 : index
      %c24_25 = arith.constant 24 : index
      %39 = vector.load %arg17[%c0_24, %c24_25] : memref<8x32xf32, #tpu.memory_space<vmem>>, vector<8x8xf32>
      tpu.vector_store %arg17[%c0_24, %c24_25], %38 {strides = array<i32>} : memref<8x32xf32, #tpu.memory_space<vmem>>, vector<8x8xf32>,
      %c0_26 = arith.constant 0 : index
      %c0_27 = arith.constant 0 : index
      %40 = vector.load %arg17[%c0_26, %c0_27] : memref<8x32xf32, #tpu.memory_space<vmem>>, vector<8x32xf32>
      %41 = arith.truncf %40 : vector<8x32xf32> to vector<8x32xbf16>
      %c0_28 = arith.constant 0 : index
      %c0_29 = arith.constant 0 : index
      %42 = vector.load %arg11[%c0_28, %c0_29] : memref<32x32xbf16, #tpu.memory_space<vmem>>, vector<32x32xbf16>
      %cst = arith.constant dense<0.000000e+00> : vector<8x32xf32>
      %43 = tpu.matmul %41, %42, %cst {dimension_numbers = #tpu.dot_dimension_numbers<[1], [0], [0], [1], [0, 0, 1, 1], [], []>} : vector<8x32xbf16>, vector<32x32xbf16>, vector<8x32xf32> -> vector<8x32xf32>
      %c0_30 = arith.constant 0 : index
      %c0_31 = arith.constant 0 : index
      %44 = vector.load %arg12[%c0_30, %c0_31] : memref<1x32xf32, #tpu.memory_space<vmem>>, vector<1x32xf32>
      %45 = vector.broadcast %44 : vector<1x32xf32> to vector<8x32xf32>
      %46 = arith.addf %43, %45 : vector<8x32xf32>
      %c0_32 = arith.constant 0 : index
      %c0_33 = arith.constant 0 : index
      %c0_34 = arith.constant 0 : index
      %47 = vector.load %arg3[%c0_32, %c0_33, %c0_34] : memref<1x8x32xbf16, #tpu.memory_space<vmem>>, vector<1x8x32xbf16>
      %48 = vector.shape_cast %47 : vector<1x8x32xbf16> to vector<8x32xbf16>
      %49 = arith.extf %48 : vector<8x32xbf16> to vector<8x32xf32>
      %50 = arith.addf %49, %46 : vector<8x32xf32>
      %51 = arith.truncf %50 : vector<8x32xf32> to vector<8x32xbf16>
      %c0_35 = arith.constant 0 : index
      %c0_36 = arith.constant 0 : index
      %c0_37 = arith.constant 0 : index
      %52 = vector.load %arg13[%c0_35, %c0_36, %c0_37] : memref<1x8x32xbf16, #tpu.memory_space<vmem>>, vector<1x8x32xbf16>
      %53 = vector.shape_cast %52 : vector<1x8x32xbf16> to vector<8x32xbf16>
      %54 = vector.shape_cast %51 : vector<8x32xbf16> to vector<1x8x32xbf16>
      tpu.vector_store %arg13[%c0_35, %c0_36, %c0_37], %54 {strides = array<i32>} : memref<1x8x32xbf16, #tpu.memory_space<vmem>>, vector<1x8x32xbf16>,
    } else {
    }
    return
  }
  func.func @transform_0(%arg0: i32, %arg1: i32, %arg2: i32) -> (i32, i32, i32) {
    %c0_i32 = arith.constant 0 : i32
    %c0_i32_0 = arith.constant 0 : i32
    return %arg0, %arg1, %c0_i32 : i32, i32, i32
  }
  func.func @transform_1(%arg0: i32, %arg1: i32, %arg2: i32) -> (i32, i32, i32) {
    %c0_i32 = arith.constant 0 : i32
    %c0_i32_0 = arith.constant 0 : i32
    return %arg0, %arg2, %c0_i32 : i32, i32, i32
  }
  func.func @transform_2(%arg0: i32, %arg1: i32, %arg2: i32) -> (i32, i32) {
    %c0_i32 = arith.constant 0 : i32
    %c0_i32_0 = arith.constant 0 : i32
    %c0_i32_1 = arith.constant 0 : i32
    return %c0_i32, %c0_i32_0 : i32, i32
  }
  func.func @transform_3(%arg0: i32, %arg1: i32, %arg2: i32) -> (i32, i32) {
    %c0_i32 = arith.constant 0 : i32
    %c0_i32_0 = arith.constant 0 : i32
    %c0_i32_1 = arith.constant 0 : i32
    return %c0_i32, %c0_i32_0 : i32, i32
  }
  func.func @transform_4(%arg0: i32, %arg1: i32, %arg2: i32) -> (i32, i32) {
    %c0_i32 = arith.constant 0 : i32
    %c0_i32_0 = arith.constant 0 : i32
    %c0_i32_1 = arith.constant 0 : i32
    return %c0_i32, %c0_i32_0 : i32, i32
  }
  func.func @transform_5(%arg0: i32, %arg1: i32, %arg2: i32) -> (i32, i32) {
    %c0_i32 = arith.constant 0 : i32
    %c0_i32_0 = arith.constant 0 : i32
    %c0_i32_1 = arith.constant 0 : i32
    return %c0_i32, %c0_i32_0 : i32, i32
  }
  func.func @transform_6(%arg0: i32, %arg1: i32, %arg2: i32) -> (i32, i32) {
    %c0_i32 = arith.constant 0 : i32
    %c0_i32_0 = arith.constant 0 : i32
    %c0_i32_1 = arith.constant 0 : i32
    return %c0_i32, %c0_i32_0 : i32, i32
  }
  func.func @transform_7(%arg0: i32, %arg1: i32, %arg2: i32) -> (i32, i32) {
    %c0_i32 = arith.constant 0 : i32
    %c0_i32_0 = arith.constant 0 : i32
    %c0_i32_1 = arith.constant 0 : i32
    return %c0_i32, %c0_i32_0 : i32, i32
  }
  func.func @transform_8(%arg0: i32, %arg1: i32, %arg2: i32) -> (i32, i32) {
    %c0_i32 = arith.constant 0 : i32
    %c0_i32_0 = arith.constant 0 : i32
    %c0_i32_1 = arith.constant 0 : i32
    return %c0_i32, %c0_i32_0 : i32, i32
  }
  func.func @transform_9(%arg0: i32, %arg1: i32, %arg2: i32) -> (i32, i32) {
    %c0_i32 = arith.constant 0 : i32
    %c0_i32_0 = arith.constant 0 : i32
    %c0_i32_1 = arith.constant 0 : i32
    return %c0_i32, %c0_i32_0 : i32, i32
  }
  func.func @transform_10(%arg0: i32, %arg1: i32, %arg2: i32) -> (i32, i32, i32) {
    %c0_i32 = arith.constant 0 : i32
    %c0_i32_0 = arith.constant 0 : i32
    return %arg0, %arg1, %c0_i32 : i32, i32, i32
  }
}

</mosaic_0001>

<llo_original>
// kernel: opt_forward.9
$region0: #{opt_forward.9}
  #allocation0 [shape = 'u32[]', space=smem, size = 0x4, offset = 0x4, fixed_abs, tag = 'smem constant byte address 0x4 - core index']
  #allocation1 [shape = 'u32[144,128]{1,0:T(1,128)}', space=vmem, size = 0x12000, scoped, tag = 'internal scratch']
  #allocation2 [shape = 'bf16[8,32]{1,0:T(8,128)(2,1)}', space=vmem, size = 0x800, scoped, tag = 'scratch operand']
  %s0 = inlined_call_operand.vmem [shape: bf16[16,32], index: 0, kind: input, shape index: {}]
  %s1 = inlined_call_operand.vmem [shape: f32[1,32], index: 1, kind: input, shape index: {}]
  %s2 = inlined_call_operand.vmem [shape: f32[1,32], index: 2, kind: input, shape index: {}]
  %s3 = inlined_call_operand.vmem [shape: bf16[32,128], index: 3, kind: input, shape index: {}]
  %s4 = inlined_call_operand.hbm [shape: f32[16,128], index: 4, kind: output, shape index: {}]
  %s5 = sld [smem:[#allocation0]]
  $region53: #{opt_forward.9} parent=0
    _
  %s7 = ssub.s32 1, %s5
  %s8 = scalar_select 0, %s7, %s5
  $region1: #{opt_forward.9} parent=0
    #allocation3 [shape = 'u8[8192]{0}', space=vmem, size = 0x2000, scoped, tag = 'output window, operand 0']
    #allocation4 [shape = 's32[2]{0}', space=sflag, size = 0x8, scoped, tag = 'scoped memory for opt_forward.9']
    %9 = vsyncpa [#allocation4], 0
    %s10 = scalar_lea.sflag [#allocation4], 1
    %11 = vsyncpa %s10, 0
    loop: start=0, step=1, limit=4
    $region2: #{opt_forward.9} parent=1 // loop_pre_header
      _
    $region3: #{opt_forward.9} parent=1 // loop_header
      %s13 = sphi 0, %s17
      %p14 = scmp.ge.s32.totalorder %s13, 4
      %s20 = sphi 0, %s32
      %s21 = sphi 0, %s28
      %s22 = sphi 0, %s20
      %s23 = sphi 0, %s21
      %s24 = sphi 0, %s22
      %s25 = sphi 0, %s23
      %s35 = sphi 0, %s37
      %s38 = sphi 0, %s35
      %s39 = sphi 0, %s38
      %s55 = sphi 0, %s39
      %s59 = sphi 0, %s59
      %s61 = sphi 0, %s59
      %s62 = sphi 0, %s61
      %s76 = sphi 0, %s62
      %s80 = sphi 0, %s80
      %s82 = sphi 0, %s80
      %s83 = sphi 0, %s82
      %s97 = sphi 0, %s83
      %s103 = sphi 0, %s105
      %s106 = sphi 0, %s103
      %s107 = sphi 0, %s106
      %s123 = sphi 0, %s107
      %s131 = sphi 0, %s133
      %s134 = sphi 0, %s131
      %s135 = sphi 0, %s134
      %s151 = sphi 0, %s135
    $region4: #{opt_forward.9} parent=1 // loop_header_branch
      %16 = sbr.rel (%p14) target = $region8
    $region5: #{opt_forward.9} parent=1 // loop_body
      %s18 = ssub.s32 %s13, 1
      %s19 = ssub.s32 %s13, 2
      %s26 = sadd.s32 1, %s21
      %p27 = scmp.ge.s32.totalorder %s26, 1
      %s28 = scalar_select %p27, 0, %s26
      %s29 = sadd.s32 1, %s20
      %s30 = scalar_select %p27, %s29, %s20
      %p31 = scmp.ge.s32.totalorder %s30, 2
      %s32 = scalar_select %p31, 0, %s30
      %s33 = ssub.s32 %s20, %s32
      %p34 = scmp.eq.s32.totalorder %s33, 0
      %s36 = sadd.s32 %s35, 1
      %s37 = scalar_select %p34, %s35, %s36
      %p40 = pneg %p34
      %p41 = scmp.eq.s32.totalorder %s13, 1
      %p42 = por %p40, %p41
      %p43 = scmp.ne.s32.totalorder %s35, %s38
      %p44 = scmp.eq.s32.totalorder %s13, 0
      %p45 = por %p43, %p44
      %p46 = scmp.ne.s32.totalorder %s35, %s38
      %p47 = scmp.eq.s32.totalorder %s18, 1
      %p48 = por %p46, %p47
      %p49 = scmp.ne.s32.totalorder %s38, %s39
      %p50 = scmp.eq.s32.totalorder %s18, 0
      %p51 = por %p49, %p50
      %p52 = scmp.ne.s32.totalorder %s38, %s39
      %p53 = scmp.eq.s32.totalorder %s19, 1
      %p54 = por %p52, %p53
      %p56 = scmp.ne.s32.totalorder %s39, %s55
      %p57 = scmp.eq.s32.totalorder %s19, 0
      %p58 = por %p56, %p57
      %s60 = sadd.s32 %s59, 1
      %p63 = scmp.eq.s32.totalorder %s13, 1
      %p64 = scmp.ne.s32.totalorder %s59, %s61
      %p65 = scmp.eq.s32.totalorder %s13, 0
      %p66 = por %p64, %p65
      %p67 = scmp.ne.s32.totalorder %s59, %s61
      %p68 = scmp.eq.s32.totalorder %s18, 1
      %p69 = por %p67, %p68
      %p70 = scmp.ne.s32.totalorder %s61, %s62
      %p71 = scmp.eq.s32.totalorder %s18, 0
      %p72 = por %p70, %p71
      %p73 = scmp.ne.s32.totalorder %s61, %s62
      %p74 = scmp.eq.s32.totalorder %s19, 1
      %p75 = por %p73, %p74
      %p77 = scmp.ne.s32.totalorder %s62, %s76
      %p78 = scmp.eq.s32.totalorder %s19, 0
      %p79 = por %p77, %p78
      %s81 = sadd.s32 %s80, 1
      %p84 = scmp.eq.s32.totalorder %s13, 1
      %p85 = scmp.ne.s32.totalorder %s80, %s82
      %p86 = scmp.eq.s32.totalorder %s13, 0
      %p87 = por %p85, %p86
      %p88 = scmp.ne.s32.totalorder %s80, %s82
      %p89 = scmp.eq.s32.totalorder %s18, 1
      %p90 = por %p88, %p89
      %p91 = scmp.ne.s32.totalorder %s82, %s83
      %p92 = scmp.eq.s32.totalorder %s18, 0
      %p93 = por %p91, %p92
      %p94 = scmp.ne.s32.totalorder %s82, %s83
      %p95 = scmp.eq.s32.totalorder %s19, 1
      %p96 = por %p94, %p95
      %p98 = scmp.ne.s32.totalorder %s83, %s97
      %p99 = scmp.eq.s32.totalorder %s19, 0
      %p100 = por %p98, %p99
      %s101 = ssub.s32 %s21, %s28
      %p102 = scmp.eq.s32.totalorder %s101, 0
      %s104 = sadd.s32 %s103, 1
      %s105 = scalar_select %p102, %s103, %s104
      %p108 = pneg %p102
      %p109 = scmp.eq.s32.totalorder %s13, 1
      %p110 = por %p108, %p109
      %p111 = scmp.ne.s32.totalorder %s103, %s106
      %p112 = scmp.eq.s32.totalorder %s13, 0
      %p113 = por %p111, %p112
      %p114 = scmp.ne.s32.totalorder %s103, %s106
      %p115 = scmp.eq.s32.totalorder %s18, 1
      %p116 = por %p114, %p115
      %p117 = scmp.ne.s32.totalorder %s106, %s107
      %p118 = scmp.eq.s32.totalorder %s18, 0
      %p119 = por %p117, %p118
      %p120 = scmp.ne.s32.totalorder %s106, %s107
      %p121 = scmp.eq.s32.totalorder %s19, 1
      %p122 = por %p120, %p121
      %p124 = scmp.ne.s32.totalorder %s107, %s123
      %p125 = scmp.eq.s32.totalorder %s19, 0
      %p126 = por %p124, %p125
      %s127 = ssub.s32 %s20, %s32
      %s128 = ssub.s32 %s21, %s28
      %s129 = sor.u32 %s127, %s128
      %p130 = scmp.eq.s32.totalorder %s129, 0
      %s132 = sadd.s32 %s131, 1
      %s133 = scalar_select %p130, %s131, %s132
      %p136 = pneg %p130
      %p137 = scmp.eq.s32.totalorder %s13, 1
      %p138 = por %p136, %p137
      %p139 = scmp.ne.s32.totalorder %s131, %s134
      %p140 = scmp.eq.s32.totalorder %s13, 0
      %p141 = por %p139, %p140
      %p142 = scmp.ne.s32.totalorder %s131, %s134
      %p143 = scmp.eq.s32.totalorder %s18, 1
      %p144 = por %p142, %p143
      %p145 = scmp.ne.s32.totalorder %s134, %s135
      %p146 = scmp.eq.s32.totalorder %s18, 0
      %p147 = por %p145, %p146
      %p148 = scmp.ne.s32.totalorder %s134, %s135
      %p149 = scmp.eq.s32.totalorder %s19, 1
      %p150 = por %p148, %p149
      %p152 = scmp.ne.s32.totalorder %s135, %s151
      %p153 = scmp.eq.s32.totalorder %s19, 0
      %p154 = por %p152, %p153
      %p155 = scmp.le.s32.totalorder 1, %s13
      %p156 = scmp.lt.s32.totalorder %s13, 3
      %p157 = pnand %p155, %p156
      %p158 = pneg %p157
      // Predicated region
      $region9: #{opt_forward.9} parent=5 // pred_check
        _
      $region10: #{opt_forward.9} parent=5 // pred_check_branch
        %160 = sbr.rel (%p157) target = $region12
      $region11: #{opt_forward.9} parent=5 // pred_region
        %s161 = ssub.s32 %s13, 1
        // Predicated region
        $region13: #{opt_forward.9} parent=11 // pred_check
          %p162 = pneg %p72
        $region14: #{opt_forward.9} parent=11 // pred_check_branch
          %164 = sbr.rel (%p162) target = $region16
        $region15: #{opt_forward.9} parent=11 // pred_region
          _
        $region16: #{opt_forward.9} parent=11 // pred_fallthru
          _
        // Predicated region
        $region17: #{opt_forward.9} parent=11 // pred_check
          %p165 = pneg %p93
        $region18: #{opt_forward.9} parent=11 // pred_check_branch
          %167 = sbr.rel (%p165) target = $region20
        $region19: #{opt_forward.9} parent=11 // pred_region
          _
        $region20: #{opt_forward.9} parent=11 // pred_fallthru
          _
        // Predicated region
        $region21: #{opt_forward.9} parent=11 // pred_check
          %p168 = pneg %p119
        $region22: #{opt_forward.9} parent=11 // pred_check_branch
          %170 = sbr.rel (%p168) target = $region24
        $region23: #{opt_forward.9} parent=11 // pred_region
          %p171 = scmp.lt.s32.totalorder %s23, 0
          %s172 = scalar_select %p171, %s23, 0
          %s173 = smul.addr %s172, 4
          %s174 = scalar_lea.vmem %s3, %s173
        $region24: #{opt_forward.9} parent=11 // pred_fallthru
          _
      $region12: #{opt_forward.9} parent=5 // pred_fallthru
        _
      %p175 = scmp.lt.s32.totalorder %s13, 2
      // Predicated region
      $region25: #{opt_forward.9} parent=5 // pred_check
        %p176 = pneg %p175
      $region26: #{opt_forward.9} parent=5 // pred_check_branch
        %178 = sbr.rel (%p176) target = $region28
      $region27: #{opt_forward.9} parent=5 // pred_region
        // Predicated region
        $region29: #{opt_forward.9} parent=27 // pred_check
          %p179 = pneg %p45
        $region30: #{opt_forward.9} parent=27 // pred_check_branch
          %181 = sbr.rel (%p179) target = $region32
        $region31: #{opt_forward.9} parent=27 // pred_region
          %p182 = scmp.lt.s32.totalorder %s20, 1
          %s183 = scalar_select %p182, %s20, 1
          %s184 = smul.addr %s183, 4
          %s185 = scalar_lea.vmem %s0, %s184
        $region32: #{opt_forward.9} parent=27 // pred_fallthru
          _
      $region28: #{opt_forward.9} parent=5 // pred_fallthru
        _
      %p186 = scmp.le.s32.totalorder 1, %s13
      %p187 = scmp.lt.s32.totalorder %s13, 3
      %p188 = pnand %p186, %p187
      %p189 = pneg %p188
      // Predicated region
      $region33: #{opt_forward.9} parent=5 // pred_check
        _
      $region34: #{opt_forward.9} parent=5 // pred_check_branch
        %191 = sbr.rel (%p188) target = $region36
      $region35: #{opt_forward.9} parent=5 // pred_region
        %s192 = ssub.s32 %s13, 1
        %p193 = scmp.lt.s32.totalorder %s22, 1
        %s194 = scalar_select %p193, %s22, 1
        %s195 = smul.addr %s194, 4
        %s196 = scalar_lea.vmem %s0, %s195
        %p197 = pneg %p51
        %p198 = pneg %p48
        %p199 = pneg %p72
        %p200 = pneg %p69
        %p201 = pneg %p93
        %p202 = pneg %p90
        %p203 = scmp.lt.s32.totalorder %s23, 0
        %s204 = scalar_select %p203, %s23, 0
        %s205 = smul.addr %s204, 4
        %s206 = scalar_lea.vmem %s3, %s205
        %p207 = pneg %p119
        %p208 = pneg %p116
        %p209 = pneg %p147
        %p210 = pneg %p144
        %s211 = sand.u32 %s134, 1
        %s212 = scalar_lea.sflag [#allocation4], %s211
        %s213 = sand.u32 %s134, 1
        %s214 = smul.addr %s213, 8
        %s215 = scalar_lea.vmem [#allocation3], %s214
        %p216 = scmp.lt.s32.totalorder %s22, 1
        %s217 = scalar_select %p216, %s22, 1
        %s218 = smul.addr %s217, 4
        %s219 = scalar_lea.vmem %s0, %s218
        %p220 = scmp.lt.s32.totalorder %s23, 0
        %s221 = scalar_select %p220, %s23, 0
        %s222 = smul.addr %s221, 4
        %s223 = scalar_lea.vmem %s3, %s222
        %p225 = scmp.eq.s32.totalorder %s23, 0
        // Predicated region
        $region37: #{opt_forward.9} parent=35 // pred_check
          %p226 = pneg %p225
        $region38: #{opt_forward.9} parent=35 // pred_check_branch
          %228 = sbr.rel (%p226) target = $region40
        $region39: #{opt_forward.9} parent=35 // pred_region
          %v229 = vld [vmem:[%s219] sm:$0xf]
          %v230 = vunpack.c.l.bf16 %v229
          %v231 = vld [vmem:[%s1] sm:$0x1]
          %v232 = vld [vmem:[%s2] sm:$0x1]
          %vm233 = vcmask 261120
          %v234 = vsel %vm233, %v230, 0.0
          %235 = vadd.xlane.f32.xlu0 %v234
          %v236 = vpop.xlane.xlu0 %235
          %v237 = vrcp.pop 32.0
          %v238 = vmul.f32 %v236, %v237
          %v239 = vsub.f32 %v230, %v238
          %v240 = vmul.f32 %v239, %v239
          %v241 = vsel %vm233, %v240, 0.0
          %242 = vadd.xlane.f32.xlu0 %v241
          %v243 = vpop.xlane.xlu0 %242
          %v244 = vmul.f32 %v243, %v237
          %v245 = vadd.f32 %v244, 1e-05
          %v246 = vrsqrt.pop %v245
          %v247 = vmul.f32 %v239, %v246
          %v249 = vlaneseq
          %v250 = vshrl.u32 %v249, 7
          %v251 = vsub.s32 0, %v250
          %v252 = vrot.slane %v231, %v251
          %v254 = vmul.f32 %v247, %v252
          %v256 = vlaneseq
          %v257 = vshrl.u32 %v256, 7
          %v258 = vsub.s32 0, %v257
          %v259 = vrot.slane %v232, %v258
          %v261 = vadd.f32 %v254, %v259
          %v262 = vpack.c.bf16 %v261, %v261
          %vm263 = vcmask 257024
          %264 = vst.msk [vmem:[#allocation2] sm:$0xf] %vm263, %v262
        $region40: #{opt_forward.9} parent=35 // pred_fallthru
          _
        %v265 = vld [vmem:[#allocation2] sm:$0xf]
        %v266 = vld [vmem:[%s223] sm:$0xf]
        %v267 = vld [vmem:[%s223 + $0x4] sm:$0xf]
        %v268 = vld [vmem:[%s223 + $0x8] sm:$0xf]
        %v269 = vld [vmem:[%s223 + $0xc] sm:$0xf]
        %v274 = vunpack.c.l.b16 %v266
        %v275 = vunpack.c.l.b16 %v267
        %v276 = vunpack.c.l.b16 %v268
        %v277 = vunpack.c.l.b16 %v269
        %v278 = vpack.c.b16 %v275, %v274
        %v279 = vpack.c.b16 %v277, %v276
        %vm282 = vcmask 261120
        %v284 = vsel %vm282, %v265, 0
        %286 = vmatprep.subr.bf16.mxu0 0
        %287 = vmatpush1.bf16.msra.mxu0 0
        %288 = vmatprep.subr.bf16.mxu0 0
        %289 = vmatpush1.bf16.msra.mxu0 0
        %290 = vmatprep.subr.bf16.mxu0 0
        %291 = vmatpush1.bf16.msra.mxu0 0
        %292 = vmatprep.subr.bf16.mxu0 0
        %293 = vmatpush1.bf16.msra.mxu0 0
        %294 = vmatprep.subr.bf16.mxu0 0
        %295 = vmatpush1.bf16.msra.mxu0 0
        %296 = vmatprep.subr.bf16.mxu0 0
        %297 = vmatpush1.bf16.msra.mxu0 0
        %298 = vmatprep.subr.bf16.mxu0 0
        %299 = vmatpush1.bf16.msra.mxu0 %v279
        %300 = vmatprep.subr.bf16.mxu0 0
        %301 = vmatpush1.bf16.msra.mxu0 %v278
        %302 = vmatprep.subr.bf16.mxu0 0
        %303 = vmatpush2.bf16.msra.mxu0 0
        %304 = vmatprep.subr.bf16.mxu0 0
        %305 = vmatpush2.bf16.msra.mxu0 0
        %306 = vmatprep.subr.bf16.mxu0 0
        %307 = vmatpush2.bf16.msra.mxu0 0
        %308 = vmatprep.subr.bf16.mxu0 0
        %309 = vmatpush2.bf16.msra.mxu0 0
        %310 = vmatprep.subr.bf16.mxu0 0
        %311 = vmatpush2.bf16.msra.mxu0 0
        %312 = vmatprep.subr.bf16.mxu0 0
        %313 = vmatpush2.bf16.msra.mxu0 0
        %314 = vmatprep.subr.bf16.mxu0 0
        %315 = vmatpush2.bf16.msra.mxu0 0
        %316 = vmatprep.subr.bf16.mxu0 0
        %317 = vmatpush2.bf16.msra.mxu0 0
        %318 = vmatprep.mubr.bf16.mxu0 0
        %319 = vmatmul.mubr.bf16.gmra.mxu0 %v284
        %v320 = vpop.f32.mrf.mxu0
        %v321 = vadd.f32 0.0, %v320
        %v322 = vpop.f32.mrf.mxu0
        %v323 = vpop.f32.mrf.mxu0
        %v324 = vpop.f32.mrf.mxu0
        %325 = vdwg.mxu0
        %326 = vst [vmem:[%s215] sm:$0xff] %v321
        %s327 = sand.u32 %s134, 1
        %s328 = scalar_lea.sflag [#allocation4], %s327
        %s329 = sand.u32 %s134, 1
        %s330 = smul.addr %s329, 8
        %s331 = scalar_lea.vmem [#allocation3], %s330
        // Predicated region
        $region41: #{opt_forward.9} parent=35 // pred_check
          %p332 = pneg %p144
        $region42: #{opt_forward.9} parent=35 // pred_check_branch
          %334 = sbr.rel (%p332) target = $region44
        $region43: #{opt_forward.9} parent=35 // pred_region
          %s336 = ssub.s32 128, 128
          %337 = vsyncadd %s328, %s336
          %s338 = sadd.s32 %s23, %s22
          %s339 = smul.addr %s338, 128
          %s340 = scalar_lea.hbm %s4, %s339
          %s342 = sshll.u32 %s331, 4
          %s343 = int_to_ptr.vmem [resolvable:$true] %s342
          %345 = dma.vmem_to_hbm [thread:$0]  %s343, 128, %s340, %s328
        $region44: #{opt_forward.9} parent=35 // pred_fallthru
          _
      $region36: #{opt_forward.9} parent=5 // pred_fallthru
        _
      %p346 = scmp.le.s32.totalorder 2, %s13
      // Predicated region
      $region45: #{opt_forward.9} parent=5 // pred_check
        %p347 = pneg %p346
      $region46: #{opt_forward.9} parent=5 // pred_check_branch
        %349 = sbr.rel (%p347) target = $region48
      $region47: #{opt_forward.9} parent=5 // pred_region
        %s350 = ssub.s32 %s13, 2
        // Predicated region
        $region49: #{opt_forward.9} parent=47 // pred_check
          %p351 = pneg %p150
        $region50: #{opt_forward.9} parent=47 // pred_check_branch
          %353 = sbr.rel (%p351) target = $region52
        $region51: #{opt_forward.9} parent=47 // pred_region
          %s354 = sand.u32 %s135, 1
          %s355 = scalar_lea.sflag [#allocation4], %s354
          %s356 = sand.u32 %s135, 1
          %s357 = smul.addr %s356, 8
          %s358 = scalar_lea.vmem [#allocation3], %s357
          %359 = dma.done %s355, 128
        $region52: #{opt_forward.9} parent=47 // pred_fallthru
          _
      $region48: #{opt_forward.9} parent=5 // pred_fallthru
        _
    $region6: #{opt_forward.9} parent=1 // loop_footer
      %s17 = sadd.s32 1, %s13
    $region7: #{opt_forward.9} parent=1 // loop_footer_branch
      %12 = sbr.rel target = $region3
    $region8: #{opt_forward.9} parent=1 // loop_exit
      _
    %360 = vsyncpa [#allocation4], 1
    %s361 = scalar_lea.sflag [#allocation4], 1
    %362 = vsyncpa %s361, 1

// kernel: opt_forward.6
$region0: #{opt_forward.6}
  #allocation0 [shape = 'u32[]', space=smem, size = 0x4, offset = 0x4, fixed_abs, tag = 'smem constant byte address 0x4 - core index']
  #allocation1 [shape = 'u32[144,128]{1,0:T(1,128)}', space=vmem, size = 0x12000, scoped, tag = 'internal scratch']
  #allocation2 [shape = 'bf16[8,32]{1,0:T(8,128)(2,1)}', space=vmem, size = 0x800, scoped, tag = 'scratch operand']
  #allocation3 [shape = 'f32[8,32]{1,0:T(8,128)}', space=vmem, size = 0x1000, scoped, tag = 'scratch operand']
  %s0 = inlined_call_operand.vmem [shape: bf16[16,32], index: 0, kind: input, shape index: {}]
  %s1 = inlined_call_operand.vmem [shape: f32[1,32], index: 1, kind: input, shape index: {}]
  %s2 = inlined_call_operand.vmem [shape: f32[1,32], index: 2, kind: input, shape index: {}]
  %s3 = inlined_call_operand.vmem [shape: bf16[32,64], index: 3, kind: input, shape index: {}]
  %s4 = inlined_call_operand.vmem [shape: f32[1,64], index: 4, kind: input, shape index: {}]
  %s5 = inlined_call_operand.vmem [shape: bf16[64,32], index: 5, kind: input, shape index: {}]
  %s6 = inlined_call_operand.vmem [shape: f32[1,32], index: 6, kind: input, shape index: {}]
  %s7 = inlined_call_operand.vmem [shape: bf16[16,32], index: 7, kind: output, shape index: {}]
  %s8 = sld [smem:[#allocation0]]
  $region69: #{opt_forward.6} parent=0
    _
  %s10 = ssub.s32 1, %s8
  %s11 = scalar_select 0, %s10, %s8
  loop: start=0, step=1, limit=4
  $region2: #{opt_forward.6} parent=0 // loop_pre_header
    _
  $region3: #{opt_forward.6} parent=0 // loop_header
    %s13 = sphi 0, %s17
    %p14 = scmp.ge.s32.totalorder %s13, 4
    %s20 = sphi 0, %s32
    %s21 = sphi 0, %s28
    %s22 = sphi 0, %s20
    %s23 = sphi 0, %s21
    %s24 = sphi 0, %s22
    %s25 = sphi 0, %s23
    %s35 = sphi 0, %s37
    %s38 = sphi 0, %s35
    %s39 = sphi 0, %s38
    %s55 = sphi 0, %s39
    %s59 = sphi 0, %s59
    %s61 = sphi 0, %s59
    %s62 = sphi 0, %s61
    %s76 = sphi 0, %s62
    %s80 = sphi 0, %s80
    %s82 = sphi 0, %s80
    %s83 = sphi 0, %s82
    %s97 = sphi 0, %s83
    %s103 = sphi 0, %s105
    %s106 = sphi 0, %s103
    %s107 = sphi 0, %s106
    %s123 = sphi 0, %s107
    %s129 = sphi 0, %s131
    %s132 = sphi 0, %s129
    %s133 = sphi 0, %s132
    %s149 = sphi 0, %s133
    %s155 = sphi 0, %s157
    %s158 = sphi 0, %s155
    %s159 = sphi 0, %s158
    %s175 = sphi 0, %s159
    %s179 = sphi 0, %s179
    %s181 = sphi 0, %s179
    %s182 = sphi 0, %s181
    %s196 = sphi 0, %s182
    %s202 = sphi 0, %s204
    %s205 = sphi 0, %s202
    %s206 = sphi 0, %s205
    %s222 = sphi 0, %s206
  $region4: #{opt_forward.6} parent=0 // loop_header_branch
    %16 = sbr.rel (%p14) target = $region8
  $region5: #{opt_forward.6} parent=0 // loop_body
    %s18 = ssub.s32 %s13, 1
    %s19 = ssub.s32 %s13, 2
    %s26 = sadd.s32 1, %s21
    %p27 = scmp.ge.s32.totalorder %s26, 1
    %s28 = scalar_select %p27, 0, %s26
    %s29 = sadd.s32 1, %s20
    %s30 = scalar_select %p27, %s29, %s20
    %p31 = scmp.ge.s32.totalorder %s30, 2
    %s32 = scalar_select %p31, 0, %s30
    %s33 = ssub.s32 %s20, %s32
    %p34 = scmp.eq.s32.totalorder %s33, 0
    %s36 = sadd.s32 %s35, 1
    %s37 = scalar_select %p34, %s35, %s36
    %p40 = pneg %p34
    %p41 = scmp.eq.s32.totalorder %s13, 1
    %p42 = por %p40, %p41
    %p43 = scmp.ne.s32.totalorder %s35, %s38
    %p44 = scmp.eq.s32.totalorder %s13, 0
    %p45 = por %p43, %p44
    %p46 = scmp.ne.s32.totalorder %s35, %s38
    %p47 = scmp.eq.s32.totalorder %s18, 1
    %p48 = por %p46, %p47
    %p49 = scmp.ne.s32.totalorder %s38, %s39
    %p50 = scmp.eq.s32.totalorder %s18, 0
    %p51 = por %p49, %p50
    %p52 = scmp.ne.s32.totalorder %s38, %s39
    %p53 = scmp.eq.s32.totalorder %s19, 1
    %p54 = por %p52, %p53
    %p56 = scmp.ne.s32.totalorder %s39, %s55
    %p57 = scmp.eq.s32.totalorder %s19, 0
    %p58 = por %p56, %p57
    %s60 = sadd.s32 %s59, 1
    %p63 = scmp.eq.s32.totalorder %s13, 1
    %p64 = scmp.ne.s32.totalorder %s59, %s61
    %p65 = scmp.eq.s32.totalorder %s13, 0
    %p66 = por %p64, %p65
    %p67 = scmp.ne.s32.totalorder %s59, %s61
    %p68 = scmp.eq.s32.totalorder %s18, 1
    %p69 = por %p67, %p68
    %p70 = scmp.ne.s32.totalorder %s61, %s62
    %p71 = scmp.eq.s32.totalorder %s18, 0
    %p72 = por %p70, %p71
    %p73 = scmp.ne.s32.totalorder %s61, %s62
    %p74 = scmp.eq.s32.totalorder %s19, 1
    %p75 = por %p73, %p74
    %p77 = scmp.ne.s32.totalorder %s62, %s76
    %p78 = scmp.eq.s32.totalorder %s19, 0
    %p79 = por %p77, %p78
    %s81 = sadd.s32 %s80, 1
    %p84 = scmp.eq.s32.totalorder %s13, 1
    %p85 = scmp.ne.s32.totalorder %s80, %s82
    %p86 = scmp.eq.s32.totalorder %s13, 0
    %p87 = por %p85, %p86
    %p88 = scmp.ne.s32.totalorder %s80, %s82
    %p89 = scmp.eq.s32.totalorder %s18, 1
    %p90 = por %p88, %p89
    %p91 = scmp.ne.s32.totalorder %s82, %s83
    %p92 = scmp.eq.s32.totalorder %s18, 0
    %p93 = por %p91, %p92
    %p94 = scmp.ne.s32.totalorder %s82, %s83
    %p95 = scmp.eq.s32.totalorder %s19, 1
    %p96 = por %p94, %p95
    %p98 = scmp.ne.s32.totalorder %s83, %s97
    %p99 = scmp.eq.s32.totalorder %s19, 0
    %p100 = por %p98, %p99
    %s101 = ssub.s32 %s21, %s28
    %p102 = scmp.eq.s32.totalorder %s101, 0
    %s104 = sadd.s32 %s103, 1
    %s105 = scalar_select %p102, %s103, %s104
    %p108 = pneg %p102
    %p109 = scmp.eq.s32.totalorder %s13, 1
    %p110 = por %p108, %p109
    %p111 = scmp.ne.s32.totalorder %s103, %s106
    %p112 = scmp.eq.s32.totalorder %s13, 0
    %p113 = por %p111, %p112
    %p114 = scmp.ne.s32.totalorder %s103, %s106
    %p115 = scmp.eq.s32.totalorder %s18, 1
    %p116 = por %p114, %p115
    %p117 = scmp.ne.s32.totalorder %s106, %s107
    %p118 = scmp.eq.s32.totalorder %s18, 0
    %p119 = por %p117, %p118
    %p120 = scmp.ne.s32.totalorder %s106, %s107
    %p121 = scmp.eq.s32.totalorder %s19, 1
    %p122 = por %p120, %p121
    %p124 = scmp.ne.s32.totalorder %s107, %s123
    %p125 = scmp.eq.s32.totalorder %s19, 0
    %p126 = por %p124, %p125
    %s127 = ssub.s32 %s21, %s28
    %p128 = scmp.eq.s32.totalorder %s127, 0
    %s130 = sadd.s32 %s129, 1
    %s131 = scalar_select %p128, %s129, %s130
    %p134 = pneg %p128
    %p135 = scmp.eq.s32.totalorder %s13, 1
    %p136 = por %p134, %p135
    %p137 = scmp.ne.s32.totalorder %s129, %s132
    %p138 = scmp.eq.s32.totalorder %s13, 0
    %p139 = por %p137, %p138
    %p140 = scmp.ne.s32.totalorder %s129, %s132
    %p141 = scmp.eq.s32.totalorder %s18, 1
    %p142 = por %p140, %p141
    %p143 = scmp.ne.s32.totalorder %s132, %s133
    %p144 = scmp.eq.s32.totalorder %s18, 0
    %p145 = por %p143, %p144
    %p146 = scmp.ne.s32.totalorder %s132, %s133
    %p147 = scmp.eq.s32.totalorder %s19, 1
    %p148 = por %p146, %p147
    %p150 = scmp.ne.s32.totalorder %s133, %s149
    %p151 = scmp.eq.s32.totalorder %s19, 0
    %p152 = por %p150, %p151
    %s153 = ssub.s32 %s21, %s28
    %p154 = scmp.eq.s32.totalorder %s153, 0
    %s156 = sadd.s32 %s155, 1
    %s157 = scalar_select %p154, %s155, %s156
    %p160 = pneg %p154
    %p161 = scmp.eq.s32.totalorder %s13, 1
    %p162 = por %p160, %p161
    %p163 = scmp.ne.s32.totalorder %s155, %s158
    %p164 = scmp.eq.s32.totalorder %s13, 0
    %p165 = por %p163, %p164
    %p166 = scmp.ne.s32.totalorder %s155, %s158
    %p167 = scmp.eq.s32.totalorder %s18, 1
    %p168 = por %p166, %p167
    %p169 = scmp.ne.s32.totalorder %s158, %s159
    %p170 = scmp.eq.s32.totalorder %s18, 0
    %p171 = por %p169, %p170
    %p172 = scmp.ne.s32.totalorder %s158, %s159
    %p173 = scmp.eq.s32.totalorder %s19, 1
    %p174 = por %p172, %p173
    %p176 = scmp.ne.s32.totalorder %s159, %s175
    %p177 = scmp.eq.s32.totalorder %s19, 0
    %p178 = por %p176, %p177
    %s180 = sadd.s32 %s179, 1
    %p183 = scmp.eq.s32.totalorder %s13, 1
    %p184 = scmp.ne.s32.totalorder %s179, %s181
    %p185 = scmp.eq.s32.totalorder %s13, 0
    %p186 = por %p184, %p185
    %p187 = scmp.ne.s32.totalorder %s179, %s181
    %p188 = scmp.eq.s32.totalorder %s18, 1
    %p189 = por %p187, %p188
    %p190 = scmp.ne.s32.totalorder %s181, %s182
    %p191 = scmp.eq.s32.totalorder %s18, 0
    %p192 = por %p190, %p191
    %p193 = scmp.ne.s32.totalorder %s181, %s182
    %p194 = scmp.eq.s32.totalorder %s19, 1
    %p195 = por %p193, %p194
    %p197 = scmp.ne.s32.totalorder %s182, %s196
    %p198 = scmp.eq.s32.totalorder %s19, 0
    %p199 = por %p197, %p198
    %s200 = ssub.s32 %s20, %s32
    %p201 = scmp.eq.s32.totalorder %s200, 0
    %s203 = sadd.s32 %s202, 1
    %s204 = scalar_select %p201, %s202, %s203
    %p207 = pneg %p201
    %p208 = scmp.eq.s32.totalorder %s13, 1
    %p209 = por %p207, %p208
    %p210 = scmp.ne.s32.totalorder %s202, %s205
    %p211 = scmp.eq.s32.totalorder %s13, 0
    %p212 = por %p210, %p211
    %p213 = scmp.ne.s32.totalorder %s202, %s205
    %p214 = scmp.eq.s32.totalorder %s18, 1
    %p215 = por %p213, %p214
    %p216 = scmp.ne.s32.totalorder %s205, %s206
    %p217 = scmp.eq.s32.totalorder %s18, 0
    %p218 = por %p216, %p217
    %p219 = scmp.ne.s32.totalorder %s205, %s206
    %p220 = scmp.eq.s32.totalorder %s19, 1
    %p221 = por %p219, %p220
    %p223 = scmp.ne.s32.totalorder %s206, %s222
    %p224 = scmp.eq.s32.totalorder %s19, 0
    %p225 = por %p223, %p224
    %p226 = scmp.le.s32.totalorder 1, %s13
    %p227 = scmp.lt.s32.totalorder %s13, 3
    %p228 = pnand %p226, %p227
    %p229 = pneg %p228
    // Predicated region
    $region9: #{opt_forward.6} parent=5 // pred_check
      _
    $region10: #{opt_forward.6} parent=5 // pred_check_branch
      %231 = sbr.rel (%p228) target = $region12
    $region11: #{opt_forward.6} parent=5 // pred_region
      %s232 = ssub.s32 %s13, 1
      // Predicated region
      $region13: #{opt_forward.6} parent=11 // pred_check
        %p233 = pneg %p72
      $region14: #{opt_forward.6} parent=11 // pred_check_branch
        %235 = sbr.rel (%p233) target = $region16
      $region15: #{opt_forward.6} parent=11 // pred_region
        _
      $region16: #{opt_forward.6} parent=11 // pred_fallthru
        _
      // Predicated region
      $region17: #{opt_forward.6} parent=11 // pred_check
        %p236 = pneg %p93
      $region18: #{opt_forward.6} parent=11 // pred_check_branch
        %238 = sbr.rel (%p236) target = $region20
      $region19: #{opt_forward.6} parent=11 // pred_region
        _
      $region20: #{opt_forward.6} parent=11 // pred_fallthru
        _
      // Predicated region
      $region21: #{opt_forward.6} parent=11 // pred_check
        %p239 = pneg %p119
      $region22: #{opt_forward.6} parent=11 // pred_check_branch
        %241 = sbr.rel (%p239) target = $region24
      $region23: #{opt_forward.6} parent=11 // pred_region
        %p242 = scmp.lt.s32.totalorder %s23, 0
        %s243 = scalar_select %p242, %s23, 0
        %s244 = smul.addr %s243, 4
        %s245 = scalar_lea.vmem %s3, %s244
      $region24: #{opt_forward.6} parent=11 // pred_fallthru
        _
      // Predicated region
      $region25: #{opt_forward.6} parent=11 // pred_check
        %p246 = pneg %p145
      $region26: #{opt_forward.6} parent=11 // pred_check_branch
        %248 = sbr.rel (%p246) target = $region28
      $region27: #{opt_forward.6} parent=11 // pred_region
        %p249 = scmp.lt.s32.totalorder %s23, 0
        %s250 = scalar_select %p249, %s23, 0
        %s251 = scalar_lea.vmem %s4, %s250
      $region28: #{opt_forward.6} parent=11 // pred_fallthru
        _
      // Predicated region
      $region29: #{opt_forward.6} parent=11 // pred_check
        %p252 = pneg %p171
      $region30: #{opt_forward.6} parent=11 // pred_check_branch
        %254 = sbr.rel (%p252) target = $region32
      $region31: #{opt_forward.6} parent=11 // pred_region
        %s255 = smul.u32 8, %s23
        %p256 = scmp.lt.s32.totalorder %s255, 7
        %s257 = scalar_select %p256, %s255, 7
        %s258 = smul.addr %s257, 4
        %s259 = scalar_lea.vmem %s5, %s258
        %s260 = smul.u32 8, %s23
      $region32: #{opt_forward.6} parent=11 // pred_fallthru
        _
      // Predicated region
      $region33: #{opt_forward.6} parent=11 // pred_check
        %p261 = pneg %p192
      $region34: #{opt_forward.6} parent=11 // pred_check_branch
        %263 = sbr.rel (%p261) target = $region36
      $region35: #{opt_forward.6} parent=11 // pred_region
        _
      $region36: #{opt_forward.6} parent=11 // pred_fallthru
        _
    $region12: #{opt_forward.6} parent=5 // pred_fallthru
      _
    %p264 = scmp.lt.s32.totalorder %s13, 2
    // Predicated region
    $region37: #{opt_forward.6} parent=5 // pred_check
      %p265 = pneg %p264
    $region38: #{opt_forward.6} parent=5 // pred_check_branch
      %267 = sbr.rel (%p265) target = $region40
    $region39: #{opt_forward.6} parent=5 // pred_region
      // Predicated region
      $region41: #{opt_forward.6} parent=39 // pred_check
        %p268 = pneg %p45
      $region42: #{opt_forward.6} parent=39 // pred_check_branch
        %270 = sbr.rel (%p268) target = $region44
      $region43: #{opt_forward.6} parent=39 // pred_region
        %p271 = scmp.lt.s32.totalorder %s20, 1
        %s272 = scalar_select %p271, %s20, 1
        %s273 = smul.addr %s272, 4
        %s274 = scalar_lea.vmem %s0, %s273
      $region44: #{opt_forward.6} parent=39 // pred_fallthru
        _
    $region40: #{opt_forward.6} parent=5 // pred_fallthru
      _
    %p275 = scmp.le.s32.totalorder 1, %s13
    %p276 = scmp.lt.s32.totalorder %s13, 3
    %p277 = pnand %p275, %p276
    %p278 = pneg %p277
    // Predicated region
    $region45: #{opt_forward.6} parent=5 // pred_check
      _
    $region46: #{opt_forward.6} parent=5 // pred_check_branch
      %280 = sbr.rel (%p277) target = $region48
    $region47: #{opt_forward.6} parent=5 // pred_region
      %s281 = ssub.s32 %s13, 1
      %p282 = scmp.lt.s32.totalorder %s22, 1
      %s283 = scalar_select %p282, %s22, 1
      %s284 = smul.addr %s283, 4
      %s285 = scalar_lea.vmem %s0, %s284
      %p286 = pneg %p51
      %p287 = pneg %p48
      %p288 = pneg %p72
      %p289 = pneg %p69
      %p290 = pneg %p93
      %p291 = pneg %p90
      %p292 = scmp.lt.s32.totalorder %s23, 0
      %s293 = scalar_select %p292, %s23, 0
      %s294 = smul.addr %s293, 4
      %s295 = scalar_lea.vmem %s3, %s294
      %p296 = pneg %p119
      %p297 = pneg %p116
      %p298 = scmp.lt.s32.totalorder %s23, 0
      %s299 = scalar_select %p298, %s23, 0
      %s300 = scalar_lea.vmem %s4, %s299
      %p301 = pneg %p145
      %p302 = pneg %p142
      %s303 = smul.u32 8, %s23
      %p304 = scmp.lt.s32.totalorder %s303, 7
      %s305 = scalar_select %p304, %s303, 7
      %s306 = smul.addr %s305, 4
      %s307 = scalar_lea.vmem %s5, %s306
      %p308 = pneg %p171
      %p309 = pneg %p168
      %p310 = pneg %p192
      %p311 = pneg %p189
      %p312 = pneg %p218
      %p313 = pneg %p215
      %p314 = scmp.lt.s32.totalorder %s22, 1
      %s315 = scalar_select %p314, %s22, 1
      %s316 = smul.addr %s315, 4
      %s317 = scalar_lea.vmem %s7, %s316
      %p318 = scmp.lt.s32.totalorder %s22, 1
      %s319 = scalar_select %p318, %s22, 1
      %s320 = smul.addr %s319, 4
      %s321 = scalar_lea.vmem %s0, %s320
      %p322 = scmp.lt.s32.totalorder %s23, 0
      %s323 = scalar_select %p322, %s23, 0
      %s324 = smul.addr %s323, 4
      %s325 = scalar_lea.vmem %s3, %s324
      %p326 = scmp.lt.s32.totalorder %s23, 0
      %s327 = scalar_select %p326, %s23, 0
      %s328 = scalar_lea.vmem %s4, %s327
      %s329 = smul.u32 8, %s23
      %p330 = scmp.lt.s32.totalorder %s329, 7
      %s331 = scalar_select %p330, %s329, 7
      %s332 = smul.addr %s331, 4
      %s333 = scalar_lea.vmem %s5, %s332
      %s334 = smul.u32 8, %s23
      %p335 = scmp.lt.s32.totalorder %s22, 1
      %s336 = scalar_select %p335, %s22, 1
      %s337 = smul.addr %s336, 4
      %s338 = scalar_lea.vmem %s7, %s337
      %p340 = scmp.eq.s32.totalorder %s23, 0
      // Predicated region
      $region49: #{opt_forward.6} parent=47 // pred_check
        %p341 = pneg %p340
      $region50: #{opt_forward.6} parent=47 // pred_check_branch
        %343 = sbr.rel (%p341) target = $region52
      $region51: #{opt_forward.6} parent=47 // pred_region
        %v344 = vld [vmem:[%s321] sm:$0xf]
        %v345 = vunpack.c.l.bf16 %v344
        %v346 = vld [vmem:[%s1] sm:$0x1]
        %v347 = vld [vmem:[%s2] sm:$0x1]
        %vm348 = vcmask 261120
        %v349 = vsel %vm348, %v345, 0.0
        %350 = vadd.xlane.f32.xlu0 %v349
        %v351 = vpop.xlane.xlu0 %350
        %v352 = vrcp.pop 32.0
        %v353 = vmul.f32 %v351, %v352
        %v354 = vsub.f32 %v345, %v353
        %v355 = vmul.f32 %v354, %v354
        %v356 = vsel %vm348, %v355, 0.0
        %357 = vadd.xlane.f32.xlu0 %v356
        %v358 = vpop.xlane.xlu0 %357
        %v359 = vmul.f32 %v358, %v352
        %v360 = vadd.f32 %v359, 1e-05
        %v361 = vrsqrt.pop %v360
        %v362 = vmul.f32 %v354, %v361
        %v364 = vlaneseq
        %v365 = vshrl.u32 %v364, 7
        %v366 = vsub.s32 0, %v365
        %v367 = vrot.slane %v346, %v366
        %v369 = vmul.f32 %v362, %v367
        %v371 = vlaneseq
        %v372 = vshrl.u32 %v371, 7
        %v373 = vsub.s32 0, %v372
        %v374 = vrot.slane %v347, %v373
        %v376 = vadd.f32 %v369, %v374
        %v377 = vpack.c.bf16 %v376, %v376
        %vm378 = vcmask 257024
        %379 = vst.msk [vmem:[#allocation2] sm:$0xf] %vm378, %v377
        %380 = vst.msk [vmem:[#allocation3] sm:$0xff] %vm348, 0.0
      $region52: #{opt_forward.6} parent=47 // pred_fallthru
        _
      %v381 = vld [vmem:[#allocation2] sm:$0xf]
      %v382 = vld [vmem:[%s325] sm:$0xf]
      %v383 = vld [vmem:[%s325 + $0x4] sm:$0xf]
      %v384 = vld [vmem:[%s325 + $0x8] sm:$0xf]
      %v385 = vld [vmem:[%s325 + $0xc] sm:$0xf]
      %v386 = vld [vmem:[%s328] sm:$0x1]
      %v388 = vlaneseq
      %v389 = vshrl.u32 %v388, 7
      %v390 = vsub.s32 0, %v389
      %v391 = vrot.slane %v386, %v390
      %v397 = vunpack.c.l.b16 %v382
      %v398 = vunpack.c.l.b16 %v383
      %v399 = vunpack.c.l.b16 %v384
      %v400 = vunpack.c.l.b16 %v385
      %v401 = vpack.c.b16 %v398, %v397
      %v402 = vpack.c.b16 %v400, %v399
      %vm405 = vcmask 261120
      %v407 = vsel %vm405, %v381, 0
      %409 = vmatprep.subr.bf16.mxu0 0
      %410 = vmatpush1.bf16.msra.mxu0 0
      %411 = vmatprep.subr.bf16.mxu0 0
      %412 = vmatpush1.bf16.msra.mxu0 0
      %413 = vmatprep.subr.bf16.mxu0 0
      %414 = vmatpush1.bf16.msra.mxu0 0
      %415 = vmatprep.subr.bf16.mxu0 0
      %416 = vmatpush1.bf16.msra.mxu0 0
      %417 = vmatprep.subr.bf16.mxu0 0
      %418 = vmatpush1.bf16.msra.mxu0 0
      %419 = vmatprep.subr.bf16.mxu0 0
      %420 = vmatpush1.bf16.msra.mxu0 0
      %421 = vmatprep.subr.bf16.mxu0 0
      %422 = vmatpush1.bf16.msra.mxu0 %v402
      %423 = vmatprep.subr.bf16.mxu0 0
      %424 = vmatpush1.bf16.msra.mxu0 %v401
      %425 = vmatprep.subr.bf16.mxu0 0
      %426 = vmatpush2.bf16.msra.mxu0 0
      %427 = vmatprep.subr.bf16.mxu0 0
      %428 = vmatpush2.bf16.msra.mxu0 0
      %429 = vmatprep.subr.bf16.mxu0 0
      %430 = vmatpush2.bf16.msra.mxu0 0
      %431 = vmatprep.subr.bf16.mxu0 0
      %432 = vmatpush2.bf16.msra.mxu0 0
      %433 = vmatprep.subr.bf16.mxu0 0
      %434 = vmatpush2.bf16.msra.mxu0 0
      %435 = vmatprep.subr.bf16.mxu0 0
      %436 = vmatpush2.bf16.msra.mxu0 0
      %437 = vmatprep.subr.bf16.mxu0 0
      %438 = vmatpush2.bf16.msra.mxu0 0
      %439 = vmatprep.subr.bf16.mxu0 0
      %440 = vmatpush2.bf16.msra.mxu0 0
      %441 = vmatprep.mubr.bf16.mxu0 0
      %442 = vmatmul.mubr.bf16.gmra.mxu0 %v407
      %v443 = vpop.f32.mrf.mxu0
      %v444 = vadd.f32 %v391, %v443
      %v445 = vpop.f32.mrf.mxu0
      %v446 = vpop.f32.mrf.mxu0
      %v447 = vpop.f32.mrf.mxu0
      %448 = vdwg.mxu0
      %v449 = vmax.f32 %v444, 0.0
      %v450 = vld [vmem:[#allocation3] sm:$0xff]
      %v451 = vpack.c.bf16 %v449, %v449
      %v452 = vld [vmem:[%s333] sm:$0xf]
      %v453 = vld [vmem:[%s333 + $0x4] sm:$0xf]
      %v454 = vld [vmem:[%s333 + $0x8] sm:$0xf]
      %v455 = vld [vmem:[%s333 + $0xc] sm:$0xf]
      %v456 = vld [vmem:[%s333 + $0x10] sm:$0xf]
      %v457 = vld [vmem:[%s333 + $0x14] sm:$0xf]
      %v458 = vld [vmem:[%s333 + $0x18] sm:$0xf]
      %v459 = vld [vmem:[%s333 + $0x1c] sm:$0xf]
      %v468 = vunpack.c.l.b16 %v452
      %v469 = vunpack.c.l.b16 %v453
      %v470 = vunpack.c.l.b16 %v454
      %v471 = vunpack.c.l.b16 %v455
      %v472 = vunpack.c.l.b16 %v456
      %v473 = vunpack.c.l.b16 %v457
      %v474 = vunpack.c.l.b16 %v458
      %v475 = vunpack.c.l.b16 %v459
      %v476 = vpack.c.b16 %v469, %v468
      %v477 = vpack.c.b16 %v471, %v470
      %v478 = vpack.c.b16 %v473, %v472
      %v479 = vpack.c.b16 %v475, %v474
      %vm484 = vcmask 523264
      %v486 = vsel %vm484, %v451, 0
      %488 = vmatprep.subr.bf16.mxu0 0
      %489 = vmatpush1.bf16.msra.mxu0 0
      %490 = vmatprep.subr.bf16.mxu0 0
      %491 = vmatpush1.bf16.msra.mxu0 0
      %492 = vmatprep.subr.bf16.mxu0 0
      %493 = vmatpush1.bf16.msra.mxu0 0
      %494 = vmatprep.subr.bf16.mxu0 0
      %495 = vmatpush1.bf16.msra.mxu0 0
      %496 = vmatprep.subr.bf16.mxu0 0
      %497 = vmatpush1.bf16.msra.mxu0 %v479
      %498 = vmatprep.subr.bf16.mxu0 0
      %499 = vmatpush1.bf16.msra.mxu0 %v478
      %500 = vmatprep.subr.bf16.mxu0 0
      %501 = vmatpush1.bf16.msra.mxu0 %v477
      %502 = vmatprep.subr.bf16.mxu0 0
      %503 = vmatpush1.bf16.msra.mxu0 %v476
      %504 = vmatprep.subr.bf16.mxu0 0
      %505 = vmatpush2.bf16.msra.mxu0 0
      %506 = vmatprep.subr.bf16.mxu0 0
      %507 = vmatpush2.bf16.msra.mxu0 0
      %508 = vmatprep.subr.bf16.mxu0 0
      %509 = vmatpush2.bf16.msra.mxu0 0
      %510 = vmatprep.subr.bf16.mxu0 0
      %511 = vmatpush2.bf16.msra.mxu0 0
      %512 = vmatprep.subr.bf16.mxu0 0
      %513 = vmatpush2.bf16.msra.mxu0 0
      %514 = vmatprep.subr.bf16.mxu0 0
      %515 = vmatpush2.bf16.msra.mxu0 0
      %516 = vmatprep.subr.bf16.mxu0 0
      %517 = vmatpush2.bf16.msra.mxu0 0
      %518 = vmatprep.subr.bf16.mxu0 0
      %519 = vmatpush2.bf16.msra.mxu0 0
      %520 = vmatprep.mubr.bf16.mxu0 0
      %521 = vmatmul.mubr.bf16.gmra.mxu0 %v486
      %v522 = vpop.f32.mrf.mxu0
      %v523 = vadd.f32 0.0, %v522
      %v524 = vpop.f32.mrf.mxu0
      %v525 = vpop.f32.mrf.mxu0
      %v526 = vpop.f32.mrf.mxu0
      %527 = vdwg.mxu0
      %v528 = vadd.f32 %v450, %v523
      %529 = vst.msk [vmem:[#allocation3] sm:$0xff] %vm405, %v528
      // Predicated region
      $region53: #{opt_forward.6} parent=47 // pred_check
        %p530 = pneg %p340
      $region54: #{opt_forward.6} parent=47 // pred_check_branch
        %532 = sbr.rel (%p530) target = $region56
      $region55: #{opt_forward.6} parent=47 // pred_region
        %v533 = vld [vmem:[%s321] sm:$0xf]
        %v534 = vunpack.c.l.bf16 %v533
        %v535 = vld [vmem:[#allocation3] sm:$0xff]
        %v536 = vadd.f32 %v534, %v535
        %v537 = vld [vmem:[%s6] sm:$0x1]
        %v539 = vlaneseq
        %v540 = vshrl.u32 %v539, 7
        %v541 = vsub.s32 0, %v540
        %v542 = vrot.slane %v537, %v541
        %v544 = vadd.f32 %v536, %v542
        %v545 = vpack.c.bf16 %v544, %v544
        %vm546 = vcmask 257024
        %547 = vst.msk [vmem:[%s338] sm:$0xf] %vm546, %v545
      $region56: #{opt_forward.6} parent=47 // pred_fallthru
        _
      %p548 = scmp.lt.s32.totalorder %s22, 1
      %s549 = scalar_select %p548, %s22, 1
      %s550 = smul.addr %s549, 4
      %s551 = scalar_lea.vmem %s7, %s550
      // Predicated region
      $region57: #{opt_forward.6} parent=47 // pred_check
        %p552 = pneg %p215
      $region58: #{opt_forward.6} parent=47 // pred_check_branch
        %554 = sbr.rel (%p552) target = $region60
      $region59: #{opt_forward.6} parent=47 // pred_region
        _
      $region60: #{opt_forward.6} parent=47 // pred_fallthru
        _
    $region48: #{opt_forward.6} parent=5 // pred_fallthru
      _
    %p555 = scmp.le.s32.totalorder 2, %s13
    // Predicated region
    $region61: #{opt_forward.6} parent=5 // pred_check
      %p556 = pneg %p555
    $region62: #{opt_forward.6} parent=5 // pred_check_branch
      %558 = sbr.rel (%p556) target = $region64
    $region63: #{opt_forward.6} parent=5 // pred_region
      %s559 = ssub.s32 %s13, 2
      // Predicated region
      $region65: #{opt_forward.6} parent=63 // pred_check
        %p560 = pneg %p221
      $region66: #{opt_forward.6} parent=63 // pred_check_branch
        %562 = sbr.rel (%p560) target = $region68
      $region67: #{opt_forward.6} parent=63 // pred_region
        %p563 = scmp.lt.s32.totalorder %s24, 1
        %s564 = scalar_select %p563, %s24, 1
        %s565 = smul.addr %s564, 4
        %s566 = scalar_lea.vmem %s7, %s565
      $region68: #{opt_forward.6} parent=63 // pred_fallthru
        _
    $region64: #{opt_forward.6} parent=5 // pred_fallthru
      _
  $region6: #{opt_forward.6} parent=0 // loop_footer
    %s17 = sadd.s32 1, %s13
  $region7: #{opt_forward.6} parent=0 // loop_footer_branch
    %12 = sbr.rel target = $region3
  $region8: #{opt_forward.6} parent=0 // loop_exit
    _

// kernel: opt_forward.5
$region0: #{opt_forward.5}
  #allocation0 [shape = 'u32[]', space=smem, size = 0x4, offset = 0x4, fixed_abs, tag = 'smem constant byte address 0x4 - core index']
  #allocation1 [shape = 'u32[144,128]{1,0:T(1,128)}', space=vmem, size = 0x12000, scoped, tag = 'internal scratch']
  #allocation2 [shape = 'bf16[8,32]{1,0:T(8,128)(2,1)}', space=vmem, size = 0x800, scoped, tag = 'scratch operand']
  #allocation3 [shape = 'f32[4,8,1]{2,1,0:T(8,128)}', space=vmem, size = 0x4000, scoped, tag = 'scratch operand']
  #allocation4 [shape = 'f32[4,8,1]{2,1,0:T(8,128)}', space=vmem, size = 0x4000, scoped, tag = 'scratch operand']
  #allocation5 [shape = 'f32[8,32]{1,0:T(8,128)}', space=vmem, size = 0x1000, scoped, tag = 'scratch operand']
  %s0 = inlined_call_operand.vmem [shape: bf16[2,8,32], index: 0, kind: input, shape index: {}, may-alias: {0,1}]
  %s1 = inlined_call_operand.vmem [shape: bf16[2,8,32], index: 1, kind: input, shape index: {}, may-alias: {0,1}]
  %s2 = inlined_call_operand.vmem [shape: f32[1,32], index: 2, kind: input, shape index: {}]
  %s3 = inlined_call_operand.vmem [shape: f32[1,32], index: 3, kind: input, shape index: {}]
  %s4 = inlined_call_operand.vmem [shape: bf16[32,32], index: 4, kind: input, shape index: {}]
  %s5 = inlined_call_operand.vmem [shape: f32[1,32], index: 5, kind: input, shape index: {}]
  %s6 = inlined_call_operand.vmem [shape: bf16[32,64], index: 6, kind: input, shape index: {}]
  %s7 = inlined_call_operand.vmem [shape: f32[1,64], index: 7, kind: input, shape index: {}]
  %s8 = inlined_call_operand.vmem [shape: bf16[32,32], index: 8, kind: input, shape index: {}]
  %s9 = inlined_call_operand.vmem [shape: f32[1,32], index: 9, kind: input, shape index: {}]
  %s10 = inlined_call_operand.vmem [shape: bf16[2,8,32], index: 10, kind: output, shape index: {}]
  %s11 = sld [smem:[#allocation0]]
  $region85: #{opt_forward.5} parent=0
    _
  %s13 = ssub.s32 1, %s11
  %s14 = scalar_select 0, %s13, %s11
  loop: start=0, step=1, limit=4
  $region2: #{opt_forward.5} parent=0 // loop_pre_header
    _
  $region3: #{opt_forward.5} parent=0 // loop_header
    %s16 = sphi 0, %s20
    %p17 = scmp.ge.s32.totalorder %s16, 4
    %s23 = sphi 0, %s42
    %s24 = sphi 0, %s38
    %s25 = sphi 0, %s34
    %s26 = sphi 0, %s23
    %s27 = sphi 0, %s24
    %s28 = sphi 0, %s25
    %s29 = sphi 0, %s26
    %s30 = sphi 0, %s27
    %s31 = sphi 0, %s28
    %s47 = sphi 0, %s49
    %s50 = sphi 0, %s47
    %s51 = sphi 0, %s50
    %s67 = sphi 0, %s51
    %s75 = sphi 0, %s77
    %s78 = sphi 0, %s75
    %s79 = sphi 0, %s78
    %s95 = sphi 0, %s79
    %s99 = sphi 0, %s99
    %s101 = sphi 0, %s99
    %s102 = sphi 0, %s101
    %s116 = sphi 0, %s102
    %s120 = sphi 0, %s120
    %s122 = sphi 0, %s120
    %s123 = sphi 0, %s122
    %s137 = sphi 0, %s123
    %s141 = sphi 0, %s141
    %s143 = sphi 0, %s141
    %s144 = sphi 0, %s143
    %s158 = sphi 0, %s144
    %s162 = sphi 0, %s162
    %s164 = sphi 0, %s162
    %s165 = sphi 0, %s164
    %s179 = sphi 0, %s165
    %s183 = sphi 0, %s183
    %s185 = sphi 0, %s183
    %s186 = sphi 0, %s185
    %s200 = sphi 0, %s186
    %s204 = sphi 0, %s204
    %s206 = sphi 0, %s204
    %s207 = sphi 0, %s206
    %s221 = sphi 0, %s207
    %s225 = sphi 0, %s225
    %s227 = sphi 0, %s225
    %s228 = sphi 0, %s227
    %s242 = sphi 0, %s228
    %s246 = sphi 0, %s246
    %s248 = sphi 0, %s246
    %s249 = sphi 0, %s248
    %s263 = sphi 0, %s249
    %s271 = sphi 0, %s273
    %s274 = sphi 0, %s271
    %s275 = sphi 0, %s274
    %s291 = sphi 0, %s275
  $region4: #{opt_forward.5} parent=0 // loop_header_branch
    %19 = sbr.rel (%p17) target = $region8
  $region5: #{opt_forward.5} parent=0 // loop_body
    %s21 = ssub.s32 %s16, 1
    %s22 = ssub.s32 %s16, 2
    %s32 = sadd.s32 1, %s25
    %p33 = scmp.ge.s32.totalorder %s32, 1
    %s34 = scalar_select %p33, 0, %s32
    %s35 = sadd.s32 1, %s24
    %s36 = scalar_select %p33, %s35, %s24
    %p37 = scmp.ge.s32.totalorder %s36, 1
    %s38 = scalar_select %p37, 0, %s36
    %s39 = sadd.s32 1, %s23
    %s40 = scalar_select %p37, %s39, %s23
    %p41 = scmp.ge.s32.totalorder %s40, 2
    %s42 = scalar_select %p41, 0, %s40
    %s43 = ssub.s32 %s23, %s42
    %s44 = ssub.s32 %s24, %s38
    %s45 = sor.u32 %s43, %s44
    %p46 = scmp.eq.s32.totalorder %s45, 0
    %s48 = sadd.s32 %s47, 1
    %s49 = scalar_select %p46, %s47, %s48
    %p52 = pneg %p46
    %p53 = scmp.eq.s32.totalorder %s16, 1
    %p54 = por %p52, %p53
    %p55 = scmp.ne.s32.totalorder %s47, %s50
    %p56 = scmp.eq.s32.totalorder %s16, 0
    %p57 = por %p55, %p56
    %p58 = scmp.ne.s32.totalorder %s47, %s50
    %p59 = scmp.eq.s32.totalorder %s21, 1
    %p60 = por %p58, %p59
    %p61 = scmp.ne.s32.totalorder %s50, %s51
    %p62 = scmp.eq.s32.totalorder %s21, 0
    %p63 = por %p61, %p62
    %p64 = scmp.ne.s32.totalorder %s50, %s51
    %p65 = scmp.eq.s32.totalorder %s22, 1
    %p66 = por %p64, %p65
    %p68 = scmp.ne.s32.totalorder %s51, %s67
    %p69 = scmp.eq.s32.totalorder %s22, 0
    %p70 = por %p68, %p69
    %s71 = ssub.s32 %s23, %s42
    %s72 = ssub.s32 %s25, %s34
    %s73 = sor.u32 %s71, %s72
    %p74 = scmp.eq.s32.totalorder %s73, 0
    %s76 = sadd.s32 %s75, 1
    %s77 = scalar_select %p74, %s75, %s76
    %p80 = pneg %p74
    %p81 = scmp.eq.s32.totalorder %s16, 1
    %p82 = por %p80, %p81
    %p83 = scmp.ne.s32.totalorder %s75, %s78
    %p84 = scmp.eq.s32.totalorder %s16, 0
    %p85 = por %p83, %p84
    %p86 = scmp.ne.s32.totalorder %s75, %s78
    %p87 = scmp.eq.s32.totalorder %s21, 1
    %p88 = por %p86, %p87
    %p89 = scmp.ne.s32.totalorder %s78, %s79
    %p90 = scmp.eq.s32.totalorder %s21, 0
    %p91 = por %p89, %p90
    %p92 = scmp.ne.s32.totalorder %s78, %s79
    %p93 = scmp.eq.s32.totalorder %s22, 1
    %p94 = por %p92, %p93
    %p96 = scmp.ne.s32.totalorder %s79, %s95
    %p97 = scmp.eq.s32.totalorder %s22, 0
    %p98 = por %p96, %p97
    %s100 = sadd.s32 %s99, 1
    %p103 = scmp.eq.s32.totalorder %s16, 1
    %p104 = scmp.ne.s32.totalorder %s99, %s101
    %p105 = scmp.eq.s32.totalorder %s16, 0
    %p106 = por %p104, %p105
    %p107 = scmp.ne.s32.totalorder %s99, %s101
    %p108 = scmp.eq.s32.totalorder %s21, 1
    %p109 = por %p107, %p108
    %p110 = scmp.ne.s32.totalorder %s101, %s102
    %p111 = scmp.eq.s32.totalorder %s21, 0
    %p112 = por %p110, %p111
    %p113 = scmp.ne.s32.totalorder %s101, %s102
    %p114 = scmp.eq.s32.totalorder %s22, 1
    %p115 = por %p113, %p114
    %p117 = scmp.ne.s32.totalorder %s102, %s116
    %p118 = scmp.eq.s32.totalorder %s22, 0
    %p119 = por %p117, %p118
    %s121 = sadd.s32 %s120, 1
    %p124 = scmp.eq.s32.totalorder %s16, 1
    %p125 = scmp.ne.s32.totalorder %s120, %s122
    %p126 = scmp.eq.s32.totalorder %s16, 0
    %p127 = por %p125, %p126
    %p128 = scmp.ne.s32.totalorder %s120, %s122
    %p129 = scmp.eq.s32.totalorder %s21, 1
    %p130 = por %p128, %p129
    %p131 = scmp.ne.s32.totalorder %s122, %s123
    %p132 = scmp.eq.s32.totalorder %s21, 0
    %p133 = por %p131, %p132
    %p134 = scmp.ne.s32.totalorder %s122, %s123
    %p135 = scmp.eq.s32.totalorder %s22, 1
    %p136 = por %p134, %p135
    %p138 = scmp.ne.s32.totalorder %s123, %s137
    %p139 = scmp.eq.s32.totalorder %s22, 0
    %p140 = por %p138, %p139
    %s142 = sadd.s32 %s141, 1
    %p145 = scmp.eq.s32.totalorder %s16, 1
    %p146 = scmp.ne.s32.totalorder %s141, %s143
    %p147 = scmp.eq.s32.totalorder %s16, 0
    %p148 = por %p146, %p147
    %p149 = scmp.ne.s32.totalorder %s141, %s143
    %p150 = scmp.eq.s32.totalorder %s21, 1
    %p151 = por %p149, %p150
    %p152 = scmp.ne.s32.totalorder %s143, %s144
    %p153 = scmp.eq.s32.totalorder %s21, 0
    %p154 = por %p152, %p153
    %p155 = scmp.ne.s32.totalorder %s143, %s144
    %p156 = scmp.eq.s32.totalorder %s22, 1
    %p157 = por %p155, %p156
    %p159 = scmp.ne.s32.totalorder %s144, %s158
    %p160 = scmp.eq.s32.totalorder %s22, 0
    %p161 = por %p159, %p160
    %s163 = sadd.s32 %s162, 1
    %p166 = scmp.eq.s32.totalorder %s16, 1
    %p167 = scmp.ne.s32.totalorder %s162, %s164
    %p168 = scmp.eq.s32.totalorder %s16, 0
    %p169 = por %p167, %p168
    %p170 = scmp.ne.s32.totalorder %s162, %s164
    %p171 = scmp.eq.s32.totalorder %s21, 1
    %p172 = por %p170, %p171
    %p173 = scmp.ne.s32.totalorder %s164, %s165
    %p174 = scmp.eq.s32.totalorder %s21, 0
    %p175 = por %p173, %p174
    %p176 = scmp.ne.s32.totalorder %s164, %s165
    %p177 = scmp.eq.s32.totalorder %s22, 1
    %p178 = por %p176, %p177
    %p180 = scmp.ne.s32.totalorder %s165, %s179
    %p181 = scmp.eq.s32.totalorder %s22, 0
    %p182 = por %p180, %p181
    %s184 = sadd.s32 %s183, 1
    %p187 = scmp.eq.s32.totalorder %s16, 1
    %p188 = scmp.ne.s32.totalorder %s183, %s185
    %p189 = scmp.eq.s32.totalorder %s16, 0
    %p190 = por %p188, %p189
    %p191 = scmp.ne.s32.totalorder %s183, %s185
    %p192 = scmp.eq.s32.totalorder %s21, 1
    %p193 = por %p191, %p192
    %p194 = scmp.ne.s32.totalorder %s185, %s186
    %p195 = scmp.eq.s32.totalorder %s21, 0
    %p196 = por %p194, %p195
    %p197 = scmp.ne.s32.totalorder %s185, %s186
    %p198 = scmp.eq.s32.totalorder %s22, 1
    %p199 = por %p197, %p198
    %p201 = scmp.ne.s32.totalorder %s186, %s200
    %p202 = scmp.eq.s32.totalorder %s22, 0
    %p203 = por %p201, %p202
    %s205 = sadd.s32 %s204, 1
    %p208 = scmp.eq.s32.totalorder %s16, 1
    %p209 = scmp.ne.s32.totalorder %s204, %s206
    %p210 = scmp.eq.s32.totalorder %s16, 0
    %p211 = por %p209, %p210
    %p212 = scmp.ne.s32.totalorder %s204, %s206
    %p213 = scmp.eq.s32.totalorder %s21, 1
    %p214 = por %p212, %p213
    %p215 = scmp.ne.s32.totalorder %s206, %s207
    %p216 = scmp.eq.s32.totalorder %s21, 0
    %p217 = por %p215, %p216
    %p218 = scmp.ne.s32.totalorder %s206, %s207
    %p219 = scmp.eq.s32.totalorder %s22, 1
    %p220 = por %p218, %p219
    %p222 = scmp.ne.s32.totalorder %s207, %s221
    %p223 = scmp.eq.s32.totalorder %s22, 0
    %p224 = por %p222, %p223
    %s226 = sadd.s32 %s225, 1
    %p229 = scmp.eq.s32.totalorder %s16, 1
    %p230 = scmp.ne.s32.totalorder %s225, %s227
    %p231 = scmp.eq.s32.totalorder %s16, 0
    %p232 = por %p230, %p231
    %p233 = scmp.ne.s32.totalorder %s225, %s227
    %p234 = scmp.eq.s32.totalorder %s21, 1
    %p235 = por %p233, %p234
    %p236 = scmp.ne.s32.totalorder %s227, %s228
    %p237 = scmp.eq.s32.totalorder %s21, 0
    %p238 = por %p236, %p237
    %p239 = scmp.ne.s32.totalorder %s227, %s228
    %p240 = scmp.eq.s32.totalorder %s22, 1
    %p241 = por %p239, %p240
    %p243 = scmp.ne.s32.totalorder %s228, %s242
    %p244 = scmp.eq.s32.totalorder %s22, 0
    %p245 = por %p243, %p244
    %s247 = sadd.s32 %s246, 1
    %p250 = scmp.eq.s32.totalorder %s16, 1
    %p251 = scmp.ne.s32.totalorder %s246, %s248
    %p252 = scmp.eq.s32.totalorder %s16, 0
    %p253 = por %p251, %p252
    %p254 = scmp.ne.s32.totalorder %s246, %s248
    %p255 = scmp.eq.s32.totalorder %s21, 1
    %p256 = por %p254, %p255
    %p257 = scmp.ne.s32.totalorder %s248, %s249
    %p258 = scmp.eq.s32.totalorder %s21, 0
    %p259 = por %p257, %p258
    %p260 = scmp.ne.s32.totalorder %s248, %s249
    %p261 = scmp.eq.s32.totalorder %s22, 1
    %p262 = por %p260, %p261
    %p264 = scmp.ne.s32.totalorder %s249, %s263
    %p265 = scmp.eq.s32.totalorder %s22, 0
    %p266 = por %p264, %p265
    %s267 = ssub.s32 %s23, %s42
    %s268 = ssub.s32 %s24, %s38
    %s269 = sor.u32 %s267, %s268
    %p270 = scmp.eq.s32.totalorder %s269, 0
    %s272 = sadd.s32 %s271, 1
    %s273 = scalar_select %p270, %s271, %s272
    %p276 = pneg %p270
    %p277 = scmp.eq.s32.totalorder %s16, 1
    %p278 = por %p276, %p277
    %p279 = scmp.ne.s32.totalorder %s271, %s274
    %p280 = scmp.eq.s32.totalorder %s16, 0
    %p281 = por %p279, %p280
    %p282 = scmp.ne.s32.totalorder %s271, %s274
    %p283 = scmp.eq.s32.totalorder %s21, 1
    %p284 = por %p282, %p283
    %p285 = scmp.ne.s32.totalorder %s274, %s275
    %p286 = scmp.eq.s32.totalorder %s21, 0
    %p287 = por %p285, %p286
    %p288 = scmp.ne.s32.totalorder %s274, %s275
    %p289 = scmp.eq.s32.totalorder %s22, 1
    %p290 = por %p288, %p289
    %p292 = scmp.ne.s32.totalorder %s275, %s291
    %p293 = scmp.eq.s32.totalorder %s22, 0
    %p294 = por %p292, %p293
    %p295 = scmp.le.s32.totalorder 1, %s16
    %p296 = scmp.lt.s32.totalorder %s16, 3
    %p297 = pnand %p295, %p296
    %p298 = pneg %p297
    // Predicated region
    $region9: #{opt_forward.5} parent=5 // pred_check
      _
    $region10: #{opt_forward.5} parent=5 // pred_check_branch
      %300 = sbr.rel (%p297) target = $region12
    $region11: #{opt_forward.5} parent=5 // pred_region
      %s301 = ssub.s32 %s16, 1
      // Predicated region
      $region13: #{opt_forward.5} parent=11 // pred_check
        %p302 = pneg %p112
      $region14: #{opt_forward.5} parent=11 // pred_check_branch
        %304 = sbr.rel (%p302) target = $region16
      $region15: #{opt_forward.5} parent=11 // pred_region
        _
      $region16: #{opt_forward.5} parent=11 // pred_fallthru
        _
      // Predicated region
      $region17: #{opt_forward.5} parent=11 // pred_check
        %p305 = pneg %p133
      $region18: #{opt_forward.5} parent=11 // pred_check_branch
        %307 = sbr.rel (%p305) target = $region20
      $region19: #{opt_forward.5} parent=11 // pred_region
        _
      $region20: #{opt_forward.5} parent=11 // pred_fallthru
        _
      // Predicated region
      $region21: #{opt_forward.5} parent=11 // pred_check
        %p308 = pneg %p154
      $region22: #{opt_forward.5} parent=11 // pred_check_branch
        %310 = sbr.rel (%p308) target = $region24
      $region23: #{opt_forward.5} parent=11 // pred_region
        _
      $region24: #{opt_forward.5} parent=11 // pred_fallthru
        _
      // Predicated region
      $region25: #{opt_forward.5} parent=11 // pred_check
        %p311 = pneg %p175
      $region26: #{opt_forward.5} parent=11 // pred_check_branch
        %313 = sbr.rel (%p311) target = $region28
      $region27: #{opt_forward.5} parent=11 // pred_region
        _
      $region28: #{opt_forward.5} parent=11 // pred_fallthru
        _
      // Predicated region
      $region29: #{opt_forward.5} parent=11 // pred_check
        %p314 = pneg %p196
      $region30: #{opt_forward.5} parent=11 // pred_check_branch
        %316 = sbr.rel (%p314) target = $region32
      $region31: #{opt_forward.5} parent=11 // pred_region
        _
      $region32: #{opt_forward.5} parent=11 // pred_fallthru
        _
      // Predicated region
      $region33: #{opt_forward.5} parent=11 // pred_check
        %p317 = pneg %p217
      $region34: #{opt_forward.5} parent=11 // pred_check_branch
        %319 = sbr.rel (%p317) target = $region36
      $region35: #{opt_forward.5} parent=11 // pred_region
        _
      $region36: #{opt_forward.5} parent=11 // pred_fallthru
        _
      // Predicated region
      $region37: #{opt_forward.5} parent=11 // pred_check
        %p320 = pneg %p238
      $region38: #{opt_forward.5} parent=11 // pred_check_branch
        %322 = sbr.rel (%p320) target = $region40
      $region39: #{opt_forward.5} parent=11 // pred_region
        _
      $region40: #{opt_forward.5} parent=11 // pred_fallthru
        _
      // Predicated region
      $region41: #{opt_forward.5} parent=11 // pred_check
        %p323 = pneg %p259
      $region42: #{opt_forward.5} parent=11 // pred_check_branch
        %325 = sbr.rel (%p323) target = $region44
      $region43: #{opt_forward.5} parent=11 // pred_region
        _
      $region44: #{opt_forward.5} parent=11 // pred_fallthru
        _
    $region12: #{opt_forward.5} parent=5 // pred_fallthru
      _
    %p326 = scmp.lt.s32.totalorder %s16, 2
    // Predicated region
    $region45: #{opt_forward.5} parent=5 // pred_check
      %p327 = pneg %p326
    $region46: #{opt_forward.5} parent=5 // pred_check_branch
      %329 = sbr.rel (%p327) target = $region48
    $region47: #{opt_forward.5} parent=5 // pred_region
      // Predicated region
      $region49: #{opt_forward.5} parent=47 // pred_check
        %p330 = pneg %p57
      $region50: #{opt_forward.5} parent=47 // pred_check_branch
        %332 = sbr.rel (%p330) target = $region52
      $region51: #{opt_forward.5} parent=47 // pred_region
        %p333 = scmp.lt.s32.totalorder %s23, 1
        %s334 = scalar_select %p333, %s23, 1
        %p335 = scmp.lt.s32.totalorder %s24, 0
        %s336 = scalar_select %p335, %s24, 0
        %s337 = sadd.s32 %s336, %s334
        %s338 = smul.addr %s337, 4
        %s339 = scalar_lea.vmem %s0, %s338
      $region52: #{opt_forward.5} parent=47 // pred_fallthru
        _
      // Predicated region
      $region53: #{opt_forward.5} parent=47 // pred_check
        %p340 = pneg %p85
      $region54: #{opt_forward.5} parent=47 // pred_check_branch
        %342 = sbr.rel (%p340) target = $region56
      $region55: #{opt_forward.5} parent=47 // pred_region
        %p343 = scmp.lt.s32.totalorder %s23, 1
        %s344 = scalar_select %p343, %s23, 1
        %p345 = scmp.lt.s32.totalorder %s25, 0
        %s346 = scalar_select %p345, %s25, 0
        %s347 = sadd.s32 %s346, %s344
        %s348 = smul.addr %s347, 4
        %s349 = scalar_lea.vmem %s1, %s348
      $region56: #{opt_forward.5} parent=47 // pred_fallthru
        _
    $region48: #{opt_forward.5} parent=5 // pred_fallthru
      _
    %p350 = scmp.le.s32.totalorder 1, %s16
    %p351 = scmp.lt.s32.totalorder %s16, 3
    %p352 = pnand %p350, %p351
    %p353 = pneg %p352
    // Predicated region
    $region57: #{opt_forward.5} parent=5 // pred_check
      _
    $region58: #{opt_forward.5} parent=5 // pred_check_branch
      %355 = sbr.rel (%p352) target = $region60
    $region59: #{opt_forward.5} parent=5 // pred_region
      %s356 = ssub.s32 %s16, 1
      %p357 = scmp.lt.s32.totalorder %s26, 1
      %s358 = scalar_select %p357, %s26, 1
      %p359 = scmp.lt.s32.totalorder %s27, 0
      %s360 = scalar_select %p359, %s27, 0
      %s361 = sadd.s32 %s360, %s358
      %s362 = smul.addr %s361, 4
      %s363 = scalar_lea.vmem %s0, %s362
      %p364 = pneg %p63
      %p365 = pneg %p60
      %p366 = scmp.lt.s32.totalorder %s26, 1
      %s367 = scalar_select %p366, %s26, 1
      %p368 = scmp.lt.s32.totalorder %s28, 0
      %s369 = scalar_select %p368, %s28, 0
      %s370 = sadd.s32 %s369, %s367
      %s371 = smul.addr %s370, 4
      %s372 = scalar_lea.vmem %s1, %s371
      %p373 = pneg %p91
      %p374 = pneg %p88
      %p375 = pneg %p112
      %p376 = pneg %p109
      %p377 = pneg %p133
      %p378 = pneg %p130
      %p379 = pneg %p154
      %p380 = pneg %p151
      %p381 = pneg %p175
      %p382 = pneg %p172
      %p383 = pneg %p196
      %p384 = pneg %p193
      %p385 = pneg %p217
      %p386 = pneg %p214
      %p387 = pneg %p238
      %p388 = pneg %p235
      %p389 = pneg %p259
      %p390 = pneg %p256
      %p391 = pneg %p287
      %p392 = pneg %p284
      %p393 = scmp.lt.s32.totalorder %s26, 1
      %s394 = scalar_select %p393, %s26, 1
      %p395 = scmp.lt.s32.totalorder %s27, 0
      %s396 = scalar_select %p395, %s27, 0
      %s397 = sadd.s32 %s396, %s394
      %s398 = smul.addr %s397, 4
      %s399 = scalar_lea.vmem %s10, %s398
      %p400 = scmp.lt.s32.totalorder %s26, 1
      %s401 = scalar_select %p400, %s26, 1
      %p402 = scmp.lt.s32.totalorder %s27, 0
      %s403 = scalar_select %p402, %s27, 0
      %s404 = sadd.s32 %s403, %s401
      %s405 = smul.addr %s404, 4
      %s406 = scalar_lea.vmem %s0, %s405
      %p407 = scmp.lt.s32.totalorder %s26, 1
      %s408 = scalar_select %p407, %s26, 1
      %p409 = scmp.lt.s32.totalorder %s28, 0
      %s410 = scalar_select %p409, %s28, 0
      %s411 = sadd.s32 %s410, %s408
      %s412 = smul.addr %s411, 4
      %s413 = scalar_lea.vmem %s1, %s412
      %p414 = scmp.lt.s32.totalorder %s26, 1
      %s415 = scalar_select %p414, %s26, 1
      %p416 = scmp.lt.s32.totalorder %s27, 0
      %s417 = scalar_select %p416, %s27, 0
      %s418 = sadd.s32 %s417, %s415
      %s419 = smul.addr %s418, 4
      %s420 = scalar_lea.vmem %s10, %s419
      %s422 = smul.u32 %s27, 8
      %s423 = smul.u32 %s28, 8
      %p424 = scmp.eq.s32.totalorder %s28, 0
      // Predicated region
      $region61: #{opt_forward.5} parent=59 // pred_check
        %p425 = pneg %p424
      $region62: #{opt_forward.5} parent=59 // pred_check_branch
        %427 = sbr.rel (%p425) target = $region64
      $region63: #{opt_forward.5} parent=59 // pred_region
        %vm428 = vcmask 7168
        %429 = vst.msk [vmem:[#allocation3] sm:$0xff] %vm428, -1e+30
        %430 = vst.msk [vmem:[#allocation3 + $0x8] sm:$0xff] %vm428, -1e+30
        %431 = vst.msk [vmem:[#allocation3 + $0x10] sm:$0xff] %vm428, -1e+30
        %432 = vst.msk [vmem:[#allocation3 + $0x18] sm:$0xff] %vm428, -1e+30
        %433 = vst.msk [vmem:[#allocation4] sm:$0xff] %vm428, 0.0
        %434 = vst.msk [vmem:[#allocation4 + $0x8] sm:$0xff] %vm428, 0.0
        %435 = vst.msk [vmem:[#allocation4 + $0x10] sm:$0xff] %vm428, 0.0
        %436 = vst.msk [vmem:[#allocation4 + $0x18] sm:$0xff] %vm428, 0.0
        %vm437 = vcmask 261120
        %438 = vst.msk [vmem:[#allocation5] sm:$0xff] %vm437, 0.0
        %v439 = vld [vmem:[%s406] sm:$0xf]
        %v440 = vunpack.c.l.bf16 %v439
        %v441 = vld [vmem:[%s2] sm:$0x1]
        %v442 = vld [vmem:[%s3] sm:$0x1]
        %v443 = vsel %vm437, %v440, 0.0
        %444 = vadd.xlane.f32.xlu0 %v443
        %v445 = vpop.xlane.xlu0 %444
        %v446 = vrcp.pop 32.0
        %v447 = vmul.f32 %v445, %v446
        %v448 = vsub.f32 %v440, %v447
        %v449 = vmul.f32 %v448, %v448
        %v450 = vsel %vm437, %v449, 0.0
        %451 = vadd.xlane.f32.xlu0 %v450
        %v452 = vpop.xlane.xlu0 %451
        %v453 = vmul.f32 %v452, %v446
        %v454 = vadd.f32 %v453, 1e-05
        %v455 = vrsqrt.pop %v454
        %v456 = vmul.f32 %v448, %v455
        %v458 = vlaneseq
        %v459 = vshrl.u32 %v458, 7
        %v460 = vsub.s32 0, %v459
        %v461 = vrot.slane %v441, %v460
        %v463 = vmul.f32 %v456, %v461
        %v465 = vlaneseq
        %v466 = vshrl.u32 %v465, 7
        %v467 = vsub.s32 0, %v466
        %v468 = vrot.slane %v442, %v467
        %v470 = vadd.f32 %v463, %v468
        %v471 = vpack.c.bf16 %v470, %v470
        %v472 = vld [vmem:[%s4] sm:$0xf]
        %v473 = vld [vmem:[%s4 + $0x4] sm:$0xf]
        %v474 = vld [vmem:[%s4 + $0x8] sm:$0xf]
        %v475 = vld [vmem:[%s4 + $0xc] sm:$0xf]
        %v476 = vld [vmem:[%s5] sm:$0x1]
        %v478 = vlaneseq
        %v479 = vshrl.u32 %v478, 7
        %v480 = vsub.s32 0, %v479
        %v481 = vrot.slane %v476, %v480
        %v487 = vunpack.c.l.b16 %v472
        %v488 = vunpack.c.l.b16 %v473
        %v489 = vunpack.c.l.b16 %v474
        %v490 = vunpack.c.l.b16 %v475
        %v491 = vpack.c.b16 %v488, %v487
        %v492 = vpack.c.b16 %v490, %v489
        %v496 = vsel %vm437, %v471, 0
        %498 = vmatprep.subr.bf16.mxu0 0
        %499 = vmatpush1.bf16.msra.mxu0 0
        %500 = vmatprep.subr.bf16.mxu0 0
        %501 = vmatpush1.bf16.msra.mxu0 0
        %502 = vmatprep.subr.bf16.mxu0 0
        %503 = vmatpush1.bf16.msra.mxu0 0
        %504 = vmatprep.subr.bf16.mxu0 0
        %505 = vmatpush1.bf16.msra.mxu0 0
        %506 = vmatprep.subr.bf16.mxu0 0
        %507 = vmatpush1.bf16.msra.mxu0 0
        %508 = vmatprep.subr.bf16.mxu0 0
        %509 = vmatpush1.bf16.msra.mxu0 0
        %510 = vmatprep.subr.bf16.mxu0 0
        %511 = vmatpush1.bf16.msra.mxu0 %v492
        %512 = vmatprep.subr.bf16.mxu0 0
        %513 = vmatpush1.bf16.msra.mxu0 %v491
        %514 = vmatprep.subr.bf16.mxu0 0
        %515 = vmatpush2.bf16.msra.mxu0 0
        %516 = vmatprep.subr.bf16.mxu0 0
        %517 = vmatpush2.bf16.msra.mxu0 0
        %518 = vmatprep.subr.bf16.mxu0 0
        %519 = vmatpush2.bf16.msra.mxu0 0
        %520 = vmatprep.subr.bf16.mxu0 0
        %521 = vmatpush2.bf16.msra.mxu0 0
        %522 = vmatprep.subr.bf16.mxu0 0
        %523 = vmatpush2.bf16.msra.mxu0 0
        %524 = vmatprep.subr.bf16.mxu0 0
        %525 = vmatpush2.bf16.msra.mxu0 0
        %526 = vmatprep.subr.bf16.mxu0 0
        %527 = vmatpush2.bf16.msra.mxu0 0
        %528 = vmatprep.subr.bf16.mxu0 0
        %529 = vmatpush2.bf16.msra.mxu0 0
        %530 = vmatprep.mubr.bf16.mxu0 0
        %531 = vmatmul.mubr.bf16.gmra.mxu0 %v496
        %v532 = vpop.f32.mrf.mxu0
        %v533 = vadd.f32 %v481, %v532
        %v534 = vpop.f32.mrf.mxu0
        %v535 = vpop.f32.mrf.mxu0
        %v536 = vpop.f32.mrf.mxu0
        %537 = vdwg.mxu0
        %v538 = vmul.f32 %v533, 0.35355338
        %v539 = vpack.c.bf16 %v538, %v538
        %vm540 = vcmask 257024
        %541 = vst.msk [vmem:[#allocation2] sm:$0xf] %vm540, %v539
      $region64: #{opt_forward.5} parent=59 // pred_fallthru
        _
      %s542 = sadd.s32 %s422, 7
      %p543 = scmp.le.s32.totalorder %s423, %s542
      // Predicated region
      $region65: #{opt_forward.5} parent=59 // pred_check
        %p544 = pneg %p543
      $region66: #{opt_forward.5} parent=59 // pred_check_branch
        %546 = sbr.rel (%p544) target = $region68
      $region67: #{opt_forward.5} parent=59 // pred_region
        %v547 = vld [vmem:[%s413] sm:$0xf]
        %v548 = vunpack.c.l.bf16 %v547
        %v549 = vld [vmem:[%s2] sm:$0x1]
        %v550 = vld [vmem:[%s3] sm:$0x1]
        %vm551 = vcmask 261120
        %v552 = vsel %vm551, %v548, 0.0
        %553 = vadd.xlane.f32.xlu0 %v552
        %v554 = vpop.xlane.xlu0 %553
        %v555 = vrcp.pop 32.0
        %v556 = vmul.f32 %v554, %v555
        %v557 = vsub.f32 %v548, %v556
        %v558 = vmul.f32 %v557, %v557
        %v559 = vsel %vm551, %v558, 0.0
        %560 = vadd.xlane.f32.xlu0 %v559
        %v561 = vpop.xlane.xlu0 %560
        %v562 = vmul.f32 %v561, %v555
        %v563 = vadd.f32 %v562, 1e-05
        %v564 = vrsqrt.pop %v563
        %v565 = vmul.f32 %v557, %v564
        %v567 = vlaneseq
        %v568 = vshrl.u32 %v567, 7
        %v569 = vsub.s32 0, %v568
        %v570 = vrot.slane %v549, %v569
        %v572 = vmul.f32 %v565, %v570
        %v574 = vlaneseq
        %v575 = vshrl.u32 %v574, 7
        %v576 = vsub.s32 0, %v575
        %v577 = vrot.slane %v550, %v576
        %v579 = vadd.f32 %v572, %v577
        %v580 = vpack.c.bf16 %v579, %v579
        %v581 = vld [vmem:[%s6] sm:$0xf]
        %v582 = vld [vmem:[%s6 + $0x4] sm:$0xf]
        %v583 = vld [vmem:[%s6 + $0x8] sm:$0xf]
        %v584 = vld [vmem:[%s6 + $0xc] sm:$0xf]
        %v585 = vld [vmem:[%s7] sm:$0x1]
        %v587 = vlaneseq
        %v588 = vshrl.u32 %v587, 7
        %v589 = vsub.s32 0, %v588
        %v590 = vrot.slane %v585, %v589
        %v596 = vunpack.c.l.b16 %v581
        %v597 = vunpack.c.l.b16 %v582
        %v598 = vunpack.c.l.b16 %v583
        %v599 = vunpack.c.l.b16 %v584
        %v600 = vpack.c.b16 %v597, %v596
        %v601 = vpack.c.b16 %v599, %v598
        %v605 = vsel %vm551, %v580, 0
        %607 = vmatprep.subr.bf16.mxu0 0
        %608 = vmatpush1.bf16.msra.mxu0 0
        %609 = vmatprep.subr.bf16.mxu0 0
        %610 = vmatpush1.bf16.msra.mxu0 0
        %611 = vmatprep.subr.bf16.mxu0 0
        %612 = vmatpush1.bf16.msra.mxu0 0
        %613 = vmatprep.subr.bf16.mxu0 0
        %614 = vmatpush1.bf16.msra.mxu0 0
        %615 = vmatprep.subr.bf16.mxu0 0
        %616 = vmatpush1.bf16.msra.mxu0 0
        %617 = vmatprep.subr.bf16.mxu0 0
        %618 = vmatpush1.bf16.msra.mxu0 0
        %619 = vmatprep.subr.bf16.mxu0 0
        %620 = vmatpush1.bf16.msra.mxu0 %v601
        %621 = vmatprep.subr.bf16.mxu0 0
        %622 = vmatpush1.bf16.msra.mxu0 %v600
        %623 = vmatprep.subr.bf16.mxu0 0
        %624 = vmatpush2.bf16.msra.mxu0 0
        %625 = vmatprep.subr.bf16.mxu0 0
        %626 = vmatpush2.bf16.msra.mxu0 0
        %627 = vmatprep.subr.bf16.mxu0 0
        %628 = vmatpush2.bf16.msra.mxu0 0
        %629 = vmatprep.subr.bf16.mxu0 0
        %630 = vmatpush2.bf16.msra.mxu0 0
        %631 = vmatprep.subr.bf16.mxu0 0
        %632 = vmatpush2.bf16.msra.mxu0 0
        %633 = vmatprep.subr.bf16.mxu0 0
        %634 = vmatpush2.bf16.msra.mxu0 0
        %635 = vmatprep.subr.bf16.mxu0 0
        %636 = vmatpush2.bf16.msra.mxu0 0
        %637 = vmatprep.subr.bf16.mxu0 0
        %638 = vmatpush2.bf16.msra.mxu0 0
        %639 = vmatprep.mubr.bf16.mxu0 0
        %640 = vmatmul.mubr.bf16.gmra.mxu0 %v605
        %v641 = vpop.f32.mrf.mxu0
        %v642 = vadd.f32 %v590, %v641
        %v643 = vpop.f32.mrf.mxu0
        %v644 = vpop.f32.mrf.mxu0
        %v645 = vpop.f32.mrf.mxu0
        %646 = vdwg.mxu0
        %v647 = vpack.c.bf16 %v642, %v642
        %v648 = vlaneseq
        %v649 = vshrl.u32 %v648, 7
        %v650 = vstv %s422
        %v651 = vadd.s32 %v650, %v649
        %v652 = vlaneseq
        %v653 = vand.u32 %v652, 127
        %v654 = vstv %s423
        %v655 = vadd.s32 %v654, %v653
        %vm656 = vcmp.le.s32.totalorder %v655, %v651
        %v657 = vld [vmem:[#allocation2] sm:$0xf]
        %vm658 = vcmask 64512
        %v660 = vsel %vm658, %v657, 0
        %v663 = vsel %vm658, %v647, 0
        %665 = vmatprep.subr.bf16.mxu0 0
        %666 = vmatpush1.bf16.xpose.msra.mxu0 0
        %667 = vmatprep.subr.bf16.mxu0 0
        %668 = vmatpush1.bf16.xpose.msra.mxu0 0
        %669 = vmatprep.subr.bf16.mxu0 0
        %670 = vmatpush1.bf16.xpose.msra.mxu0 0
        %671 = vmatprep.subr.bf16.mxu0 0
        %672 = vmatpush1.bf16.xpose.msra.mxu0 0
        %673 = vmatprep.subr.bf16.mxu0 0
        %674 = vmatpush1.bf16.xpose.msra.mxu0 0
        %675 = vmatprep.subr.bf16.mxu0 0
        %676 = vmatpush1.bf16.xpose.msra.mxu0 0
        %677 = vmatprep.subr.bf16.mxu0 0
        %678 = vmatpush1.bf16.xpose.msra.mxu0 0
        %679 = vmatprep.subr.bf16.mxu0 0
        %680 = vmatpush1.bf16.xpose.msra.mxu0 %v663
        %681 = vmatprep.subr.bf16.mxu0 0
        %682 = vmatpush2.bf16.xpose.msra.mxu0 0
        %683 = vmatprep.subr.bf16.mxu0 0
        %684 = vmatpush2.bf16.xpose.msra.mxu0 0
        %685 = vmatprep.subr.bf16.mxu0 0
        %686 = vmatpush2.bf16.xpose.msra.mxu0 0
        %687 = vmatprep.subr.bf16.mxu0 0
        %688 = vmatpush2.bf16.xpose.msra.mxu0 0
        %689 = vmatprep.subr.bf16.mxu0 0
        %690 = vmatpush2.bf16.xpose.msra.mxu0 0
        %691 = vmatprep.subr.bf16.mxu0 0
        %692 = vmatpush2.bf16.xpose.msra.mxu0 0
        %693 = vmatprep.subr.bf16.mxu0 0
        %694 = vmatpush2.bf16.xpose.msra.mxu0 0
        %695 = vmatprep.subr.bf16.mxu0 0
        %696 = vmatpush2.bf16.xpose.msra.mxu0 0
        %697 = vmatprep.mubr.bf16.mxu0 0
        %698 = vmatmul.mubr.bf16.gmra.mxu0 %v660
        %v699 = vpop.f32.mrf.mxu0
        %v700 = vadd.f32 0.0, %v699
        %v701 = vpop.f32.mrf.mxu0
        %v702 = vpop.f32.mrf.mxu0
        %v703 = vpop.f32.mrf.mxu0
        %704 = vdwg.mxu0
        %v705 = vsel %vm656, %v700, -1e+30
        %v706 = vld [vmem:[#allocation3] sm:$0xff]
        %v707 = vsel %vm658, %v705, -inf
        %708 = vmax.xlane.f32.xlu0 %v707
        %v709 = vpop.xlane.xlu0 %708
        %v710 = vmax.f32 %v706, %v709
        %v711 = vsub.f32 %v706, %v710
        %v712 = vmul.f32 %v711, 1.442695
        %v713 = vpow.pop %v712
        %715 = vset.pattern.permute.xlu0 0
        %716 = vperm.xlu0 %715, %v710
        %v717 = vpop.permute.xlu0 %716
        %v719 = vsub.f32 %v705, %v717
        %v720 = vmul.f32 %v719, 1.442695
        %v721 = vpow.pop %v720
        %v722 = vld [vmem:[#allocation4] sm:$0xff]
        %v723 = vmul.f32 %v713, %v722
        %v724 = vsel %vm658, %v721, 0.0
        %725 = vadd.xlane.f32.xlu0 %v724
        %v726 = vpop.xlane.xlu0 %725
        %v727 = vadd.f32 %v723, %v726
        %vm728 = vcmask 7168
        %729 = vst.msk [vmem:[#allocation4] sm:$0xff] %vm728, %v727
        %v730 = vld [vmem:[#allocation5] sm:$0xff]
        %732 = vset.pattern.permute.xlu0 0
        %733 = vperm.xlu0 %732, %v713
        %v734 = vpop.permute.xlu0 %733
        %v736 = vmul.f32 %v734, %v730
        %v737 = vpack.c.bf16 %v721, %v721
        %739 = vrot.lane.b32.xlu0 %v647, 96
        %v740 = vpop.permute.xlu0 %739
        %v742 = vsel %vm658, %v737, 0
        %vm744 = vcmask 1043456
        %v746 = vsel %vm744, %v740, 0
        %748 = vmatprep.subr.bf16.mxu0 0
        %749 = vmatpush1.bf16.msra.mxu0 0
        %750 = vmatprep.subr.bf16.mxu0 0
        %751 = vmatpush1.bf16.msra.mxu0 0
        %752 = vmatprep.subr.bf16.mxu0 0
        %753 = vmatpush1.bf16.msra.mxu0 0
        %754 = vmatprep.subr.bf16.mxu0 0
        %755 = vmatpush1.bf16.msra.mxu0 0
        %756 = vmatprep.subr.bf16.mxu0 0
        %757 = vmatpush1.bf16.msra.mxu0 0
        %758 = vmatprep.subr.bf16.mxu0 0
        %759 = vmatpush1.bf16.msra.mxu0 0
        %760 = vmatprep.subr.bf16.mxu0 0
        %761 = vmatpush1.bf16.msra.mxu0 0
        %762 = vmatprep.subr.bf16.mxu0 0
        %763 = vmatpush1.bf16.msra.mxu0 %v746
        %764 = vmatprep.subr.bf16.mxu0 0
        %765 = vmatpush2.bf16.msra.mxu0 0
        %766 = vmatprep.subr.bf16.mxu0 0
        %767 = vmatpush2.bf16.msra.mxu0 0
        %768 = vmatprep.subr.bf16.mxu0 0
        %769 = vmatpush2.bf16.msra.mxu0 0
        %770 = vmatprep.subr.bf16.mxu0 0
        %771 = vmatpush2.bf16.msra.mxu0 0
        %772 = vmatprep.subr.bf16.mxu0 0
        %773 = vmatpush2.bf16.msra.mxu0 0
        %774 = vmatprep.subr.bf16.mxu0 0
        %775 = vmatpush2.bf16.msra.mxu0 0
        %776 = vmatprep.subr.bf16.mxu0 0
        %777 = vmatpush2.bf16.msra.mxu0 0
        %778 = vmatprep.subr.bf16.mxu0 0
        %779 = vmatpush2.bf16.msra.mxu0 0
        %780 = vmatprep.mubr.bf16.mxu0 0
        %781 = vmatmul.mubr.bf16.gmra.mxu0 %v742
        %v782 = vpop.f32.mrf.mxu0
        %v783 = vadd.f32 0.0, %v782
        %v784 = vpop.f32.mrf.mxu0
        %v785 = vpop.f32.mrf.mxu0
        %v786 = vpop.f32.mrf.mxu0
        %787 = vdwg.mxu0
        %v788 = vadd.f32 %v736, %v783
        %789 = vst.msk [vmem:[#allocation5] sm:$0xff] %vm658, %v788
        %790 = vst.msk [vmem:[#allocation3] sm:$0xff] %vm728, %v710
        %v791 = vld [vmem:[#allocation2] sm:$0xf]
        %v793 = vunpack.c.l.b16 %v791
        %v794 = vpack.c.b16 %v793, %v793
        %795 = vrot.lane.b32.xlu0 %v794, 120
        %v796 = vpop.permute.xlu0 %795
        %797 = vrot.lane.b32.xlu0 %v647, 120
        %v798 = vpop.permute.xlu0 %797
        %v800 = vsel %vm658, %v796, 0
        %v803 = vsel %vm658, %v798, 0
        %805 = vmatprep.subr.bf16.mxu0 0
        %806 = vmatpush1.bf16.xpose.msra.mxu0 0
        %807 = vmatprep.subr.bf16.mxu0 0
        %808 = vmatpush1.bf16.xpose.msra.mxu0 0
        %809 = vmatprep.subr.bf16.mxu0 0
        %810 = vmatpush1.bf16.xpose.msra.mxu0 0
        %811 = vmatprep.subr.bf16.mxu0 0
        %812 = vmatpush1.bf16.xpose.msra.mxu0 0
        %813 = vmatprep.subr.bf16.mxu0 0
        %814 = vmatpush1.bf16.xpose.msra.mxu0 0
        %815 = vmatprep.subr.bf16.mxu0 0
        %816 = vmatpush1.bf16.xpose.msra.mxu0 0
        %817 = vmatprep.subr.bf16.mxu0 0
        %818 = vmatpush1.bf16.xpose.msra.mxu0 0
        %819 = vmatprep.subr.bf16.mxu0 0
        %820 = vmatpush1.bf16.xpose.msra.mxu0 %v803
        %821 = vmatprep.subr.bf16.mxu0 0
        %822 = vmatpush2.bf16.xpose.msra.mxu0 0
        %823 = vmatprep.subr.bf16.mxu0 0
        %824 = vmatpush2.bf16.xpose.msra.mxu0 0
        %825 = vmatprep.subr.bf16.mxu0 0
        %826 = vmatpush2.bf16.xpose.msra.mxu0 0
        %827 = vmatprep.subr.bf16.mxu0 0
        %828 = vmatpush2.bf16.xpose.msra.mxu0 0
        %829 = vmatprep.subr.bf16.mxu0 0
        %830 = vmatpush2.bf16.xpose.msra.mxu0 0
        %831 = vmatprep.subr.bf16.mxu0 0
        %832 = vmatpush2.bf16.xpose.msra.mxu0 0
        %833 = vmatprep.subr.bf16.mxu0 0
        %834 = vmatpush2.bf16.xpose.msra.mxu0 0
        %835 = vmatprep.subr.bf16.mxu0 0
        %836 = vmatpush2.bf16.xpose.msra.mxu0 0
        %837 = vmatprep.mubr.bf16.mxu0 0
        %838 = vmatmul.mubr.bf16.gmra.mxu0 %v800
        %v839 = vpop.f32.mrf.mxu0
        %v840 = vadd.f32 0.0, %v839
        %v841 = vpop.f32.mrf.mxu0
        %v842 = vpop.f32.mrf.mxu0
        %v843 = vpop.f32.mrf.mxu0
        %844 = vdwg.mxu0
        %v845 = vsel %vm656, %v840, -1e+30
        %s846 = scalar_lea.vmem [#allocation3], 8
        %v847 = vld [vmem:[%s846] sm:$0xff]
        %v848 = vsel %vm658, %v845, -inf
        %849 = vmax.xlane.f32.xlu0 %v848
        %v850 = vpop.xlane.xlu0 %849
        %v851 = vmax.f32 %v847, %v850
        %v852 = vsub.f32 %v847, %v851
        %v853 = vmul.f32 %v852, 1.442695
        %v854 = vpow.pop %v853
        %856 = vset.pattern.permute.xlu0 0
        %857 = vperm.xlu0 %856, %v851
        %v858 = vpop.permute.xlu0 %857
        %v860 = vsub.f32 %v845, %v858
        %v861 = vmul.f32 %v860, 1.442695
        %v862 = vpow.pop %v861
        %s863 = scalar_lea.vmem [#allocation4], 8
        %v864 = vld [vmem:[%s863] sm:$0xff]
        %v865 = vmul.f32 %v854, %v864
        %v866 = vsel %vm658, %v862, 0.0
        %867 = vadd.xlane.f32.xlu0 %v866
        %v868 = vpop.xlane.xlu0 %867
        %v869 = vadd.f32 %v865, %v868
        %870 = vst.msk [vmem:[%s863] sm:$0xff] %vm728, %v869
        %v871 = vld [vmem:[#allocation5] sm:$0xff]
        %873 = vset.pattern.permute.xlu0 0
        %874 = vperm.xlu0 %873, %v854
        %v875 = vpop.permute.xlu0 %874
        %v877 = vmul.f32 %v875, %v871
        %v878 = vpack.c.bf16 %v862, %v862
        %879 = vrot.lane.b32.xlu0 %v647, 88
        %v880 = vpop.permute.xlu0 %879
        %v882 = vsel %vm658, %v878, 0
        %v885 = vsel %vm744, %v880, 0
        %887 = vmatprep.subr.bf16.mxu0 0
        %888 = vmatpush1.bf16.msra.mxu0 0
        %889 = vmatprep.subr.bf16.mxu0 0
        %890 = vmatpush1.bf16.msra.mxu0 0
        %891 = vmatprep.subr.bf16.mxu0 0
        %892 = vmatpush1.bf16.msra.mxu0 0
        %893 = vmatprep.subr.bf16.mxu0 0
        %894 = vmatpush1.bf16.msra.mxu0 0
        %895 = vmatprep.subr.bf16.mxu0 0
        %896 = vmatpush1.bf16.msra.mxu0 0
        %897 = vmatprep.subr.bf16.mxu0 0
        %898 = vmatpush1.bf16.msra.mxu0 0
        %899 = vmatprep.subr.bf16.mxu0 0
        %900 = vmatpush1.bf16.msra.mxu0 0
        %901 = vmatprep.subr.bf16.mxu0 0
        %902 = vmatpush1.bf16.msra.mxu0 %v885
        %903 = vmatprep.subr.bf16.mxu0 0
        %904 = vmatpush2.bf16.msra.mxu0 0
        %905 = vmatprep.subr.bf16.mxu0 0
        %906 = vmatpush2.bf16.msra.mxu0 0
        %907 = vmatprep.subr.bf16.mxu0 0
        %908 = vmatpush2.bf16.msra.mxu0 0
        %909 = vmatprep.subr.bf16.mxu0 0
        %910 = vmatpush2.bf16.msra.mxu0 0
        %911 = vmatprep.subr.bf16.mxu0 0
        %912 = vmatpush2.bf16.msra.mxu0 0
        %913 = vmatprep.subr.bf16.mxu0 0
        %914 = vmatpush2.bf16.msra.mxu0 0
        %915 = vmatprep.subr.bf16.mxu0 0
        %916 = vmatpush2.bf16.msra.mxu0 0
        %917 = vmatprep.subr.bf16.mxu0 0
        %918 = vmatpush2.bf16.msra.mxu0 0
        %919 = vmatprep.mubr.bf16.mxu0 0
        %920 = vmatmul.mubr.bf16.gmra.mxu0 %v882
        %v921 = vpop.f32.mrf.mxu0
        %v922 = vadd.f32 0.0, %v921
        %v923 = vpop.f32.mrf.mxu0
        %v924 = vpop.f32.mrf.mxu0
        %v925 = vpop.f32.mrf.mxu0
        %926 = vdwg.mxu0
        %928 = vrot.lane.b32.xlu0 %v922, 8
        %v929 = vpop.permute.xlu0 %928
        %v931 = vadd.f32 %v877, %v929
        %vm932 = vcmask 130112
        %933 = vst.msk [vmem:[#allocation5] sm:$0xff] %vm932, %v931
        %934 = vst.msk [vmem:[%s846] sm:$0xff] %vm728, %v851
        %v935 = vld [vmem:[#allocation2] sm:$0xf]
        %v937 = vunpack.c.l.b16 %v935
        %v938 = vpack.c.b16 %v937, %v937
        %939 = vrot.lane.b32.xlu0 %v938, 112
        %v940 = vpop.permute.xlu0 %939
        %941 = vrot.lane.b32.xlu0 %v647, 112
        %v942 = vpop.permute.xlu0 %941
        %v944 = vsel %vm658, %v940, 0
        %v947 = vsel %vm658, %v942, 0
        %949 = vmatprep.subr.bf16.mxu0 0
        %950 = vmatpush1.bf16.xpose.msra.mxu0 0
        %951 = vmatprep.subr.bf16.mxu0 0
        %952 = vmatpush1.bf16.xpose.msra.mxu0 0
        %953 = vmatprep.subr.bf16.mxu0 0
        %954 = vmatpush1.bf16.xpose.msra.mxu0 0
        %955 = vmatprep.subr.bf16.mxu0 0
        %956 = vmatpush1.bf16.xpose.msra.mxu0 0
        %957 = vmatprep.subr.bf16.mxu0 0
        %958 = vmatpush1.bf16.xpose.msra.mxu0 0
        %959 = vmatprep.subr.bf16.mxu0 0
        %960 = vmatpush1.bf16.xpose.msra.mxu0 0
        %961 = vmatprep.subr.bf16.mxu0 0
        %962 = vmatpush1.bf16.xpose.msra.mxu0 0
        %963 = vmatprep.subr.bf16.mxu0 0
        %964 = vmatpush1.bf16.xpose.msra.mxu0 %v947
        %965 = vmatprep.subr.bf16.mxu0 0
        %966 = vmatpush2.bf16.xpose.msra.mxu0 0
        %967 = vmatprep.subr.bf16.mxu0 0
        %968 = vmatpush2.bf16.xpose.msra.mxu0 0
        %969 = vmatprep.subr.bf16.mxu0 0
        %970 = vmatpush2.bf16.xpose.msra.mxu0 0
        %971 = vmatprep.subr.bf16.mxu0 0
        %972 = vmatpush2.bf16.xpose.msra.mxu0 0
        %973 = vmatprep.subr.bf16.mxu0 0
        %974 = vmatpush2.bf16.xpose.msra.mxu0 0
        %975 = vmatprep.subr.bf16.mxu0 0
        %976 = vmatpush2.bf16.xpose.msra.mxu0 0
        %977 = vmatprep.subr.bf16.mxu0 0
        %978 = vmatpush2.bf16.xpose.msra.mxu0 0
        %979 = vmatprep.subr.bf16.mxu0 0
        %980 = vmatpush2.bf16.xpose.msra.mxu0 0
        %981 = vmatprep.mubr.bf16.mxu0 0
        %982 = vmatmul.mubr.bf16.gmra.mxu0 %v944
        %v983 = vpop.f32.mrf.mxu0
        %v984 = vadd.f32 0.0, %v983
        %v985 = vpop.f32.mrf.mxu0
        %v986 = vpop.f32.mrf.mxu0
        %v987 = vpop.f32.mrf.mxu0
        %988 = vdwg.mxu0
        %v989 = vsel %vm656, %v984, -1e+30
        %s990 = scalar_lea.vmem [#allocation3], 16
        %v991 = vld [vmem:[%s990] sm:$0xff]
        %v992 = vsel %vm658, %v989, -inf
        %993 = vmax.xlane.f32.xlu0 %v992
        %v994 = vpop.xlane.xlu0 %993
        %v995 = vmax.f32 %v991, %v994
        %v996 = vsub.f32 %v991, %v995
        %v997 = vmul.f32 %v996, 1.442695
        %v998 = vpow.pop %v997
        %1000 = vset.pattern.permute.xlu0 0
        %1001 = vperm.xlu0 %1000, %v995
        %v1002 = vpop.permute.xlu0 %1001
        %v1004 = vsub.f32 %v989, %v1002
        %v1005 = vmul.f32 %v1004, 1.442695
        %v1006 = vpow.pop %v1005
        %s1007 = scalar_lea.vmem [#allocation4], 16
        %v1008 = vld [vmem:[%s1007] sm:$0xff]
        %v1009 = vmul.f32 %v998, %v1008
        %v1010 = vsel %vm658, %v1006, 0.0
        %1011 = vadd.xlane.f32.xlu0 %v1010
        %v1012 = vpop.xlane.xlu0 %1011
        %v1013 = vadd.f32 %v1009, %v1012
        %1014 = vst.msk [vmem:[%s1007] sm:$0xff] %vm728, %v1013
        %v1015 = vld [vmem:[#allocation5] sm:$0xff]
        %1017 = vset.pattern.permute.xlu0 0
        %1018 = vperm.xlu0 %1017, %v998
        %v1019 = vpop.permute.xlu0 %1018
        %v1021 = vmul.f32 %v1019, %v1015
        %v1022 = vpack.c.bf16 %v1006, %v1006
        %1023 = vrot.lane.b32.xlu0 %v647, 80
        %v1024 = vpop.permute.xlu0 %1023
        %v1026 = vsel %vm658, %v1022, 0
        %v1029 = vsel %vm744, %v1024, 0
        %1031 = vmatprep.subr.bf16.mxu0 0
        %1032 = vmatpush1.bf16.msra.mxu0 0
        %1033 = vmatprep.subr.bf16.mxu0 0
        %1034 = vmatpush1.bf16.msra.mxu0 0
        %1035 = vmatprep.subr.bf16.mxu0 0
        %1036 = vmatpush1.bf16.msra.mxu0 0
        %1037 = vmatprep.subr.bf16.mxu0 0
        %1038 = vmatpush1.bf16.msra.mxu0 0
        %1039 = vmatprep.subr.bf16.mxu0 0
        %1040 = vmatpush1.bf16.msra.mxu0 0
        %1041 = vmatprep.subr.bf16.mxu0 0
        %1042 = vmatpush1.bf16.msra.mxu0 0
        %1043 = vmatprep.subr.bf16.mxu0 0
        %1044 = vmatpush1.bf16.msra.mxu0 0
        %1045 = vmatprep.subr.bf16.mxu0 0
        %1046 = vmatpush1.bf16.msra.mxu0 %v1029
        %1047 = vmatprep.subr.bf16.mxu0 0
        %1048 = vmatpush2.bf16.msra.mxu0 0
        %1049 = vmatprep.subr.bf16.mxu0 0
        %1050 = vmatpush2.bf16.msra.mxu0 0
        %1051 = vmatprep.subr.bf16.mxu0 0
        %1052 = vmatpush2.bf16.msra.mxu0 0
        %1053 = vmatprep.subr.bf16.mxu0 0
        %1054 = vmatpush2.bf16.msra.mxu0 0
        %1055 = vmatprep.subr.bf16.mxu0 0
        %1056 = vmatpush2.bf16.msra.mxu0 0
        %1057 = vmatprep.subr.bf16.mxu0 0
        %1058 = vmatpush2.bf16.msra.mxu0 0
        %1059 = vmatprep.subr.bf16.mxu0 0
        %1060 = vmatpush2.bf16.msra.mxu0 0
        %1061 = vmatprep.subr.bf16.mxu0 0
        %1062 = vmatpush2.bf16.msra.mxu0 0
        %1063 = vmatprep.mubr.bf16.mxu0 0
        %1064 = vmatmul.mubr.bf16.gmra.mxu0 %v1026
        %v1065 = vpop.f32.mrf.mxu0
        %v1066 = vadd.f32 0.0, %v1065
        %v1067 = vpop.f32.mrf.mxu0
        %v1068 = vpop.f32.mrf.mxu0
        %v1069 = vpop.f32.mrf.mxu0
        %1070 = vdwg.mxu0
        %1072 = vrot.lane.b32.xlu0 %v1066, 16
        %v1073 = vpop.permute.xlu0 %1072
        %v1075 = vadd.f32 %v1021, %v1073
        %vm1076 = vcmask 195712
        %1077 = vst.msk [vmem:[#allocation5] sm:$0xff] %vm1076, %v1075
        %1078 = vst.msk [vmem:[%s990] sm:$0xff] %vm728, %v995
        %v1079 = vld [vmem:[#allocation2] sm:$0xf]
        %v1081 = vunpack.c.l.b16 %v1079
        %v1082 = vpack.c.b16 %v1081, %v1081
        %1083 = vrot.lane.b32.xlu0 %v1082, 104
        %v1084 = vpop.permute.xlu0 %1083
        %1085 = vrot.lane.b32.xlu0 %v647, 104
        %v1086 = vpop.permute.xlu0 %1085
        %v1088 = vsel %vm658, %v1084, 0
        %v1091 = vsel %vm658, %v1086, 0
        %1093 = vmatprep.subr.bf16.mxu0 0
        %1094 = vmatpush1.bf16.xpose.msra.mxu0 0
        %1095 = vmatprep.subr.bf16.mxu0 0
        %1096 = vmatpush1.bf16.xpose.msra.mxu0 0
        %1097 = vmatprep.subr.bf16.mxu0 0
        %1098 = vmatpush1.bf16.xpose.msra.mxu0 0
        %1099 = vmatprep.subr.bf16.mxu0 0
        %1100 = vmatpush1.bf16.xpose.msra.mxu0 0
        %1101 = vmatprep.subr.bf16.mxu0 0
        %1102 = vmatpush1.bf16.xpose.msra.mxu0 0
        %1103 = vmatprep.subr.bf16.mxu0 0
        %1104 = vmatpush1.bf16.xpose.msra.mxu0 0
        %1105 = vmatprep.subr.bf16.mxu0 0
        %1106 = vmatpush1.bf16.xpose.msra.mxu0 0
        %1107 = vmatprep.subr.bf16.mxu0 0
        %1108 = vmatpush1.bf16.xpose.msra.mxu0 %v1091
        %1109 = vmatprep.subr.bf16.mxu0 0
        %1110 = vmatpush2.bf16.xpose.msra.mxu0 0
        %1111 = vmatprep.subr.bf16.mxu0 0
        %1112 = vmatpush2.bf16.xpose.msra.mxu0 0
        %1113 = vmatprep.subr.bf16.mxu0 0
        %1114 = vmatpush2.bf16.xpose.msra.mxu0 0
        %1115 = vmatprep.subr.bf16.mxu0 0
        %1116 = vmatpush2.bf16.xpose.msra.mxu0 0
        %1117 = vmatprep.subr.bf16.mxu0 0
        %1118 = vmatpush2.bf16.xpose.msra.mxu0 0
        %1119 = vmatprep.subr.bf16.mxu0 0
        %1120 = vmatpush2.bf16.xpose.msra.mxu0 0
        %1121 = vmatprep.subr.bf16.mxu0 0
        %1122 = vmatpush2.bf16.xpose.msra.mxu0 0
        %1123 = vmatprep.subr.bf16.mxu0 0
        %1124 = vmatpush2.bf16.xpose.msra.mxu0 0
        %1125 = vmatprep.mubr.bf16.mxu0 0
        %1126 = vmatmul.mubr.bf16.gmra.mxu0 %v1088
        %v1127 = vpop.f32.mrf.mxu0
        %v1128 = vadd.f32 0.0, %v1127
        %v1129 = vpop.f32.mrf.mxu0
        %v1130 = vpop.f32.mrf.mxu0
        %v1131 = vpop.f32.mrf.mxu0
        %1132 = vdwg.mxu0
        %v1133 = vsel %vm656, %v1128, -1e+30
        %s1134 = scalar_lea.vmem [#allocation3], 24
        %v1135 = vld [vmem:[%s1134] sm:$0xff]
        %v1136 = vsel %vm658, %v1133, -inf
        %1137 = vmax.xlane.f32.xlu0 %v1136
        %v1138 = vpop.xlane.xlu0 %1137
        %v1139 = vmax.f32 %v1135, %v1138
        %v1140 = vsub.f32 %v1135, %v1139
        %v1141 = vmul.f32 %v1140, 1.442695
        %v1142 = vpow.pop %v1141
        %1144 = vset.pattern.permute.xlu0 0
        %1145 = vperm.xlu0 %1144, %v1139
        %v1146 = vpop.permute.xlu0 %1145
        %v1148 = vsub.f32 %v1133, %v1146
        %v1149 = vmul.f32 %v1148, 1.442695
        %v1150 = vpow.pop %v1149
        %s1151 = scalar_lea.vmem [#allocation4], 24
        %v1152 = vld [vmem:[%s1151] sm:$0xff]
        %v1153 = vmul.f32 %v1142, %v1152
        %v1154 = vsel %vm658, %v1150, 0.0
        %1155 = vadd.xlane.f32.xlu0 %v1154
        %v1156 = vpop.xlane.xlu0 %1155
        %v1157 = vadd.f32 %v1153, %v1156
        %1158 = vst.msk [vmem:[%s1151] sm:$0xff] %vm728, %v1157
        %v1159 = vld [vmem:[#allocation5] sm:$0xff]
        %1161 = vset.pattern.permute.xlu0 0
        %1162 = vperm.xlu0 %1161, %v1142
        %v1163 = vpop.permute.xlu0 %1162
        %v1165 = vmul.f32 %v1163, %v1159
        %v1166 = vpack.c.bf16 %v1150, %v1150
        %1167 = vrot.lane.b32.xlu0 %v647, 72
        %v1168 = vpop.permute.xlu0 %1167
        %v1170 = vsel %vm658, %v1166, 0
        %v1173 = vsel %vm744, %v1168, 0
        %1175 = vmatprep.subr.bf16.mxu0 0
        %1176 = vmatpush1.bf16.msra.mxu0 0
        %1177 = vmatprep.subr.bf16.mxu0 0
        %1178 = vmatpush1.bf16.msra.mxu0 0
        %1179 = vmatprep.subr.bf16.mxu0 0
        %1180 = vmatpush1.bf16.msra.mxu0 0
        %1181 = vmatprep.subr.bf16.mxu0 0
        %1182 = vmatpush1.bf16.msra.mxu0 0
        %1183 = vmatprep.subr.bf16.mxu0 0
        %1184 = vmatpush1.bf16.msra.mxu0 0
        %1185 = vmatprep.subr.bf16.mxu0 0
        %1186 = vmatpush1.bf16.msra.mxu0 0
        %1187 = vmatprep.subr.bf16.mxu0 0
        %1188 = vmatpush1.bf16.msra.mxu0 0
        %1189 = vmatprep.subr.bf16.mxu0 0
        %1190 = vmatpush1.bf16.msra.mxu0 %v1173
        %1191 = vmatprep.subr.bf16.mxu0 0
        %1192 = vmatpush2.bf16.msra.mxu0 0
        %1193 = vmatprep.subr.bf16.mxu0 0
        %1194 = vmatpush2.bf16.msra.mxu0 0
        %1195 = vmatprep.subr.bf16.mxu0 0
        %1196 = vmatpush2.bf16.msra.mxu0 0
        %1197 = vmatprep.subr.bf16.mxu0 0
        %1198 = vmatpush2.bf16.msra.mxu0 0
        %1199 = vmatprep.subr.bf16.mxu0 0
        %1200 = vmatpush2.bf16.msra.mxu0 0
        %1201 = vmatprep.subr.bf16.mxu0 0
        %1202 = vmatpush2.bf16.msra.mxu0 0
        %1203 = vmatprep.subr.bf16.mxu0 0
        %1204 = vmatpush2.bf16.msra.mxu0 0
        %1205 = vmatprep.subr.bf16.mxu0 0
        %1206 = vmatpush2.bf16.msra.mxu0 0
        %1207 = vmatprep.mubr.bf16.mxu0 0
        %1208 = vmatmul.mubr.bf16.gmra.mxu0 %v1170
        %v1209 = vpop.f32.mrf.mxu0
        %v1210 = vadd.f32 0.0, %v1209
        %v1211 = vpop.f32.mrf.mxu0
        %v1212 = vpop.f32.mrf.mxu0
        %v1213 = vpop.f32.mrf.mxu0
        %1214 = vdwg.mxu0
        %1216 = vrot.lane.b32.xlu0 %v1210, 24
        %v1217 = vpop.permute.xlu0 %1216
        %v1219 = vadd.f32 %v1165, %v1217
        %vm1220 = vcmask 261312
        %1221 = vst.msk [vmem:[#allocation5] sm:$0xff] %vm1220, %v1219
        %1222 = vst.msk [vmem:[%s1134] sm:$0xff] %vm728, %v1139
      $region68: #{opt_forward.5} parent=59 // pred_fallthru
        _
      // Predicated region
      $region69: #{opt_forward.5} parent=59 // pred_check
        %p1223 = pneg %p424
      $region70: #{opt_forward.5} parent=59 // pred_check_branch
        %1225 = sbr.rel (%p1223) target = $region72
      $region71: #{opt_forward.5} parent=59 // pred_region
        %v1226 = vld [vmem:[#allocation5] sm:$0xff]
        %v1227 = vld [vmem:[#allocation4] sm:$0xff]
        %v1228 = vrcp.pop %v1227
        %1230 = vset.pattern.permute.xlu0 0
        %1231 = vperm.xlu0 %1230, %v1228
        %v1232 = vpop.permute.xlu0 %1231
        %v1234 = vmul.f32 %v1226, %v1232
        %vm1235 = vcmask 64512
        %1236 = vst.msk [vmem:[#allocation5] sm:$0xff] %vm1235, %v1234
        %v1237 = vld [vmem:[#allocation5] sm:$0xff]
        %s1238 = scalar_lea.vmem [#allocation4], 8
        %v1239 = vld [vmem:[%s1238] sm:$0xff]
        %v1240 = vrcp.pop %v1239
        %1242 = vset.pattern.permute.xlu0 0
        %1243 = vperm.xlu0 %1242, %v1240
        %v1244 = vpop.permute.xlu0 %1243
        %v1246 = vmul.f32 %v1237, %v1244
        %vm1247 = vcmask 130112
        %1248 = vst.msk [vmem:[#allocation5] sm:$0xff] %vm1247, %v1246
        %v1249 = vld [vmem:[#allocation5] sm:$0xff]
        %s1250 = scalar_lea.vmem [#allocation4], 16
        %v1251 = vld [vmem:[%s1250] sm:$0xff]
        %v1252 = vrcp.pop %v1251
        %1254 = vset.pattern.permute.xlu0 0
        %1255 = vperm.xlu0 %1254, %v1252
        %v1256 = vpop.permute.xlu0 %1255
        %v1258 = vmul.f32 %v1249, %v1256
        %vm1259 = vcmask 195712
        %1260 = vst.msk [vmem:[#allocation5] sm:$0xff] %vm1259, %v1258
        %v1261 = vld [vmem:[#allocation5] sm:$0xff]
        %s1262 = scalar_lea.vmem [#allocation4], 24
        %v1263 = vld [vmem:[%s1262] sm:$0xff]
        %v1264 = vrcp.pop %v1263
        %1266 = vset.pattern.permute.xlu0 0
        %1267 = vperm.xlu0 %1266, %v1264
        %v1268 = vpop.permute.xlu0 %1267
        %v1270 = vmul.f32 %v1261, %v1268
        %vm1271 = vcmask 261312
        %1272 = vst.msk [vmem:[#allocation5] sm:$0xff] %vm1271, %v1270
        %v1273 = vld [vmem:[#allocation5] sm:$0xff]
        %v1274 = vpack.c.bf16 %v1273, %v1273
        %v1275 = vld [vmem:[%s8] sm:$0xf]
        %v1276 = vld [vmem:[%s8 + $0x4] sm:$0xf]
        %v1277 = vld [vmem:[%s8 + $0x8] sm:$0xf]
        %v1278 = vld [vmem:[%s8 + $0xc] sm:$0xf]
        %v1279 = vld [vmem:[%s9] sm:$0x1]
        %v1281 = vlaneseq
        %v1282 = vshrl.u32 %v1281, 7
        %v1283 = vsub.s32 0, %v1282
        %v1284 = vrot.slane %v1279, %v1283
        %v1290 = vunpack.c.l.b16 %v1275
        %v1291 = vunpack.c.l.b16 %v1276
        %v1292 = vunpack.c.l.b16 %v1277
        %v1293 = vunpack.c.l.b16 %v1278
        %v1294 = vpack.c.b16 %v1291, %v1290
        %v1295 = vpack.c.b16 %v1293, %v1292
        %vm1298 = vcmask 261120
        %v1300 = vsel %vm1298, %v1274, 0
        %1302 = vmatprep.subr.bf16.mxu0 0
        %1303 = vmatpush1.bf16.msra.mxu0 0
        %1304 = vmatprep.subr.bf16.mxu0 0
        %1305 = vmatpush1.bf16.msra.mxu0 0
        %1306 = vmatprep.subr.bf16.mxu0 0
        %1307 = vmatpush1.bf16.msra.mxu0 0
        %1308 = vmatprep.subr.bf16.mxu0 0
        %1309 = vmatpush1.bf16.msra.mxu0 0
        %1310 = vmatprep.subr.bf16.mxu0 0
        %1311 = vmatpush1.bf16.msra.mxu0 0
        %1312 = vmatprep.subr.bf16.mxu0 0
        %1313 = vmatpush1.bf16.msra.mxu0 0
        %1314 = vmatprep.subr.bf16.mxu0 0
        %1315 = vmatpush1.bf16.msra.mxu0 %v1295
        %1316 = vmatprep.subr.bf16.mxu0 0
        %1317 = vmatpush1.bf16.msra.mxu0 %v1294
        %1318 = vmatprep.subr.bf16.mxu0 0
        %1319 = vmatpush2.bf16.msra.mxu0 0
        %1320 = vmatprep.subr.bf16.mxu0 0
        %1321 = vmatpush2.bf16.msra.mxu0 0
        %1322 = vmatprep.subr.bf16.mxu0 0
        %1323 = vmatpush2.bf16.msra.mxu0 0
        %1324 = vmatprep.subr.bf16.mxu0 0
        %1325 = vmatpush2.bf16.msra.mxu0 0
        %1326 = vmatprep.subr.bf16.mxu0 0
        %1327 = vmatpush2.bf16.msra.mxu0 0
        %1328 = vmatprep.subr.bf16.mxu0 0
        %1329 = vmatpush2.bf16.msra.mxu0 0
        %1330 = vmatprep.subr.bf16.mxu0 0
        %1331 = vmatpush2.bf16.msra.mxu0 0
        %1332 = vmatprep.subr.bf16.mxu0 0
        %1333 = vmatpush2.bf16.msra.mxu0 0
        %1334 = vmatprep.mubr.bf16.mxu0 0
        %1335 = vmatmul.mubr.bf16.gmra.mxu0 %v1300
        %v1336 = vpop.f32.mrf.mxu0
        %v1337 = vadd.f32 %v1284, %v1336
        %v1338 = vpop.f32.mrf.mxu0
        %v1339 = vpop.f32.mrf.mxu0
        %v1340 = vpop.f32.mrf.mxu0
        %1341 = vdwg.mxu0
        %v1342 = vld [vmem:[%s406] sm:$0xf]
        %v1343 = vunpack.c.l.bf16 %v1342
        %v1344 = vadd.f32 %v1343, %v1337
        %v1345 = vpack.c.bf16 %v1344, %v1344
        %vm1346 = vcmask 257024
        %1347 = vst.msk [vmem:[%s420] sm:$0xf] %vm1346, %v1345
      $region72: #{opt_forward.5} parent=59 // pred_fallthru
        _
      %p1348 = scmp.lt.s32.totalorder %s26, 1
      %s1349 = scalar_select %p1348, %s26, 1
      %p1350 = scmp.lt.s32.totalorder %s27, 0
      %s1351 = scalar_select %p1350, %s27, 0
      %s1352 = sadd.s32 %s1351, %s1349
      %s1353 = smul.addr %s1352, 4
      %s1354 = scalar_lea.vmem %s10, %s1353
      // Predicated region
      $region73: #{opt_forward.5} parent=59 // pred_check
        %p1355 = pneg %p284
      $region74: #{opt_forward.5} parent=59 // pred_check_branch
        %1357 = sbr.rel (%p1355) target = $region76
      $region75: #{opt_forward.5} parent=59 // pred_region
        _
      $region76: #{opt_forward.5} parent=59 // pred_fallthru
        _
    $region60: #{opt_forward.5} parent=5 // pred_fallthru
      _
    %p1358 = scmp.le.s32.totalorder 2, %s16
    // Predicated region
    $region77: #{opt_forward.5} parent=5 // pred_check
      %p1359 = pneg %p1358
    $region78: #{opt_forward.5} parent=5 // pred_check_branch
      %1361 = sbr.rel (%p1359) target = $region80
    $region79: #{opt_forward.5} parent=5 // pred_region
      %s1362 = ssub.s32 %s16, 2
      // Predicated region
      $region81: #{opt_forward.5} parent=79 // pred_check
        %p1363 = pneg %p290
      $region82: #{opt_forward.5} parent=79 // pred_check_branch
        %1365 = sbr.rel (%p1363) target = $region84
      $region83: #{opt_forward.5} parent=79 // pred_region
        %p1366 = scmp.lt.s32.totalorder %s29, 1
        %s1367 = scalar_select %p1366, %s29, 1
        %p1368 = scmp.lt.s32.totalorder %s30, 0
        %s1369 = scalar_select %p1368, %s30, 0
        %s1370 = sadd.s32 %s1369, %s1367
        %s1371 = smul.addr %s1370, 4
        %s1372 = scalar_lea.vmem %s10, %s1371
      $region84: #{opt_forward.5} parent=79 // pred_fallthru
        _
    $region80: #{opt_forward.5} parent=5 // pred_fallthru
      _
  $region6: #{opt_forward.5} parent=0 // loop_footer
    %s20 = sadd.s32 1, %s16
  $region7: #{opt_forward.5} parent=0 // loop_footer_branch
    %15 = sbr.rel target = $region3
  $region8: #{opt_forward.5} parent=0 // loop_exit
    _

</llo_original>
